<compile_context>
chip_gen: v6e
topology: v6e:2x2x1
jax: 0.10.0
libtpu: 0.0.40
codegen_flags: <defaults>
</compile_context>

<pallas_src>
import jax
import jax.numpy as jnp
import numpy as np
from jax import lax
from jax.experimental import pallas as pl
from jax.experimental.pallas import tpu as pltpu


def _unet_up_kernel(xhi_ref, xlo_ref, wup_ref, bup_ref,
                    w1_ref, b1_ref, w2_ref, b2_ref,
                    o_ref, pad1_ref, pad2_ref):
    """Fused UnetUp forward for one batch element (NHWC activations).

    xhi_ref : (1, Hh, Wh, Cin)        coarse feature to upsample
    xlo_ref : (1, H2, W2, Clo)        skip feature(s), pre-concatenated along C
    wup_ref : (Cin, 4*Cout)           ConvTranspose2d weight, cols ordered (di, dj, co)
    bup_ref : (1, 4*Cout)             bias tiled over the 4 tap groups
    w1_ref  : (3, 3*Ccat, Cout)       conv1 weight, rows (kh)[kw, c] -> co
    b1_ref  : (1, Cout)
    w2_ref  : (3, 3*Cout, Cout)       conv2 weight
    b2_ref  : (1, Cout)
    o_ref   : (1, H2, W2, Cout)
    pad1_ref: VMEM (H2+2, W2+2, Ccat) conv1 input incl. zero halo (activation dtype)
    pad2_ref: VMEM (H2+2, W2+2, Cout) conv2 input incl. zero halo
    """
    f32 = jnp.float32
    _, Hh, Wh, Cin = xhi_ref.shape
    _, H2, W2, Cout = o_ref.shape
    Ccat = pad1_ref.shape[2]
    cdt = pad1_ref.dtype

    # ---- zero ONLY the 1-pixel halo ('same' padding).  The interior is fully
    # overwritten below; re-zeroing the halo every step keeps steps independent.
    for ref, c in ((pad1_ref, Ccat), (pad2_ref, Cout)):
        ref[0:1, :, :] = jnp.zeros((1, W2 + 2, c), cdt)
        ref[H2 + 1:H2 + 2, :, :] = jnp.zeros((1, W2 + 2, c), cdt)
        ref[:, 0:1, :] = jnp.zeros((H2 + 2, 1, c), cdt)
        ref[:, W2 + 1:W2 + 2, :] = jnp.zeros((H2 + 2, 1, c), cdt)

    # ---- ConvTranspose2d(kernel=2, stride=2): ONE MXU matmul for all 4 taps.
    # y[i*Wh + j, (2*di + dj)*Cout + co] is the value of output pixel (2i+di, 2j+dj).
    xh = xhi_ref[0].reshape(Hh * Wh, Cin)
    y = jnp.dot(xh, wup_ref[...], preferred_element_type=f32)          # (Hh*Wh, 4*Cout)
    y = (y + bup_ref[0, :].astype(f32)[None, :]).astype(cdt).reshape(Hh, Wh, 4 * Cout)
    taps = [y[:, :, k * Cout:(k + 1) * Cout] for k in range(4)]        # k = 2*di + dj

    # Column (W) interleave: one hoisted parity mask shared by both row parities.
    col = lax.broadcasted_iota(jnp.int32, (Hh, W2, Cout), 1)
    even_col = (col % 2) == 0

    def w_interleave(te, to):                                          # (Hh,Wh,C) x2 -> (Hh,W2,C)
        e = jnp.broadcast_to(te[:, :, None, :], (Hh, Wh, 2, Cout)).reshape(Hh, W2, Cout)
        o = jnp.broadcast_to(to[:, :, None, :], (Hh, Wh, 2, Cout)).reshape(Hh, W2, Cout)
        return jnp.where(even_col, e, o)

    r0 = w_interleave(taps[0], taps[1])            # output rows 2i
    r1 = w_interleave(taps[2], taps[3])            # output rows 2i+1
    # Row (H) interleave: pure leading-dim stack + merge (no per-row scatter loop).
    up = jnp.concatenate([r0[:, None], r1[:, None]], axis=1).reshape(H2, W2, Cout)

    # ---- conv1 input: channel concat with the skip feature, ONE slab store.
    pad1_ref[1:1 + H2, 1:1 + W2, :] = jnp.concatenate(
        [up, xlo_ref[0].astype(cdt)], axis=-1)

    # ---- 3x3 'same' conv + bias + ReLU with the kw taps folded: 3 matmuls, K = 3*cin.
    def conv3x3_relu(pad_ref, w_ref, b_ref):
        cin = pad_ref.shape[2]
        acc = jnp.zeros((H2 * W2, Cout), f32)
        for kh in range(3):
            patch = jnp.concatenate(
                [pad_ref[kh:kh + H2, kw:kw + W2, :].reshape(H2 * W2, cin)
                 for kw in range(3)], axis=-1)                         # (H2*W2, 3*cin)
            acc += jnp.dot(patch, w_ref[kh], preferred_element_type=f32)
        return jnp.maximum(acc + b_ref[0, :].astype(f32)[None, :], 0.0)

    a1 = conv3x3_relu(pad1_ref, w1_ref, b1_ref)                        # (H2*W2, Cout) f32
    pad2_ref[1:1 + H2, 1:1 + W2, :] = a1.astype(cdt).reshape(H2, W2, Cout)
    a2 = conv3x3_relu(pad2_ref, w2_ref, b2_ref)
    o_ref[0] = a2.reshape(H2, W2, Cout).astype(o_ref.dtype)


def unet_up_forward(high_nhwc, low_features, params):
    """UnetUp forward (is_deconv=True).  All tensors NHWC, weights HWIO-style.

    high_nhwc   : (N, Hh, Wh, in_size)
    low_features: tuple of skip features, each (N, 2*Hh, 2*Wh, C_i)
    params      : (w_up, b_up, w1, b1, w2, b2) with
                  w_up (2, 2, in_size, out_size), w1 (3, 3, out_size+sum(C_i), out_size),
                  w2 (3, 3, out_size, out_size), biases (out_size,)
    """
    w_up, b_up, w1, b1, w2, b2 = params
    N, Hh, Wh, Cin = high_nhwc.shape
    Cout = w_up.shape[-1]
    H2, W2 = 2 * Hh, 2 * Wh

    # Multiple skips (n_concat > 2) are concatenated here (cheap XLA concat); the
    # concat with the upsampled path happens inside the kernel, in VMEM.
    low = low_features[0] if len(low_features) == 1 else jnp.concatenate(low_features, axis=-1)
    Clo = low.shape[-1]
    Ccat = Cout + Clo
    assert low.shape[:3] == (N, H2, W2), low.shape
    assert w1.shape == (3, 3, Ccat, Cout), w1.shape
    assert w2.shape == (3, 3, Cout, Cout), w2.shape

    # Fused-matmul weight layouts (built once in XLA, outside the kernel).
    w_up_flat = jnp.transpose(w_up, (2, 0, 1, 3)).reshape(Cin, 4 * Cout)   # cols (di,dj,co)
    b_up_flat = jnp.tile(b_up, 4).reshape(1, 4 * Cout)
    w1_r = w1.reshape(3, 3 * Ccat, Cout)                                   # rows (kh)[kw,c]
    w2_r = w2.reshape(3, 3 * Cout, Cout)
    b1_2 = b1.reshape(1, Cout)
    b2_2 = b2.reshape(1, Cout)

    cdt = high_nhwc.dtype          # scratch / MXU-operand dtype (bf16 in production)
    xs = jnp.dtype(cdt).itemsize
    ws = jnp.dtype(w1.dtype).itemsize
    scratch_bytes = (H2 + 2) * (W2 + 2) * (Ccat + Cout) * xs
    io_block_bytes = (Hh * Wh * Cin + H2 * W2 * (Clo + Cout)) * xs
    w_bytes = (Cin * 4 * Cout + 4 * Cout + 9 * Ccat * Cout + 9 * Cout * Cout + 2 * Cout) * ws
    vmem_limit = int(min(48 * 1024 * 1024,
                         max(8 * 1024 * 1024,
                             2 * (io_block_bytes + w_bytes) + scratch_bytes + 2 * 1024 * 1024)))

    return pl.pallas_call(
        _unet_up_kernel,
        out_shape=jax.ShapeDtypeStruct((N, H2, W2, Cout), high_nhwc.dtype),
        grid_spec=pltpu.PrefetchScalarGridSpec(
            num_scalar_prefetch=0,
            grid=(N,),
            in_specs=[
                pl.BlockSpec((1, Hh, Wh, Cin), lambda n: (n, 0, 0, 0)),
                pl.BlockSpec((1, H2, W2, Clo), lambda n: (n, 0, 0, 0)),
                pl.BlockSpec((Cin, 4 * Cout), lambda n: (0, 0)),
                pl.BlockSpec((1, 4 * Cout), lambda n: (0, 0)),
                pl.BlockSpec((3, 3 * Ccat, Cout), lambda n: (0, 0, 0)),
                pl.BlockSpec((1, Cout), lambda n: (0, 0)),
                pl.BlockSpec((3, 3 * Cout, Cout), lambda n: (0, 0, 0)),
                pl.BlockSpec((1, Cout), lambda n: (0, 0)),
            ],
            out_specs=pl.BlockSpec((1, H2, W2, Cout), lambda n: (n, 0, 0, 0)),
            scratch_shapes=[
                pltpu.VMEM((H2 + 2, W2 + 2, Ccat), cdt),
                pltpu.VMEM((H2 + 2, W2 + 2, Cout), cdt),
            ],
        ),
        compiler_params=pltpu.CompilerParams(
            dimension_semantics=("parallel",),
            vmem_limit_bytes=vmem_limit,
        ),
    )(high_nhwc, low, w_up_flat, b_up_flat, w1_r, b1_2, w2_r, b2_2)


def init_params(key, in_size, out_size, n_concat=2):
    """Deterministic kaiming-ish init in HWIO-style layouts."""
    c_cat = in_size + (n_concat - 2) * out_size
    k_up, k_bu, k1, k_b1, k2, k_b2 = jax.random.split(key, 6)

    def kaiming(k, shape, fan_in):
        return jax.random.normal(k, shape, jnp.float32) * float(np.sqrt(2.0 / fan_in))

    # ConvTranspose2d(in_size, out_size, 2, 2): torch (in, out, 2, 2) -> (2, 2, in, out)
    w_up = kaiming(k_up, (2, 2, in_size, out_size), in_size * 4)
    b_up = jax.random.normal(k_bu, (out_size,), jnp.float32) * 0.01
    # Conv2d weights: torch OIHW -> HWIO
    w1 = kaiming(k1, (3, 3, c_cat, out_size), c_cat * 9)
    b1 = jax.random.normal(k_b1, (out_size,), jnp.float32) * 0.01
    w2 = kaiming(k2, (3, 3, out_size, out_size), out_size * 9)
    b2 = jax.random.normal(k_b2, (out_size,), jnp.float32) * 0.01
    return (w_up, b_up, w1, b1, w2, b2)


def _reference_forward(high, low_features, params):
    """Plain-JAX reference (einsum deconv + lax.conv, NHWC end-to-end)."""
    w_up, b_up, w1, b1, w2, b2 = params
    up = jnp.einsum('nhwc,ijcf->nhiwjf', high, w_up)        # (N, Hh, 2, Wh, 2, Cout)
    N, Hh, _, Wh, _, Cout = up.shape
    x = up.reshape(N, 2 * Hh, 2 * Wh, Cout) + b_up[None, None, None, :]
    for feat in low_features:
        x = jnp.concatenate([x, feat], axis=-1)
    for (w, b) in ((w1, b1), (w2, b2)):
        y = lax.conv_general_dilated(
            x, w, window_strides=(1, 1), padding=((1, 1), (1, 1)),
            dimension_numbers=("NHWC", "HWIO", "NHWC"),
            preferred_element_type=jnp.float32)
        x = jnp.maximum(y + b[None, None, None, :], 0.0)
    return x.astype(high.dtype)


if __name__ == "__main__":
    key = jax.random.PRNGKey(0)
    k_hi, k_lo, k_p = jax.random.split(key, 3)

    N = 2
    in_size, out_size = 16, 8      # classic UNet decoder stage: in_size = 2 * out_size
    Hh = Wh = 8                    # coarse spatial; upsampled output is 16x16

    high = jax.random.normal(k_hi, (N, Hh, Wh, in_size), jnp.float32)
    low = jax.random.normal(k_lo, (N, 2 * Hh, 2 * Wh, out_size), jnp.float32)
    params = init_params(k_p, in_size, out_size, n_concat=2)

    out = jax.block_until_ready(unet_up_forward(high, (low,), params))
    assert out.shape == (N, 2 * Hh, 2 * Wh, out_size), out.shape

    ref = jax.block_until_ready(_reference_forward(high, (low,), params))
    if not np.allclose(np.asarray(out), np.asarray(ref), rtol=1e-3, atol=1e-3):
        err = float(np.max(np.abs(np.asarray(out) - np.asarray(ref))))
        raise AssertionError(f"Pallas UnetUp output mismatch vs reference (max abs err {err})")

    print("KERNEL_OK")
</pallas_src>

<mosaic_0001>
module attributes {stable_mosaic.version = 11 : i64} {
  func.func @_unet_up_kernel(%arg0: i32, %arg1: memref<1x8x8x16xf32, #tpu.memory_space<vmem>>, %arg2: memref<1x16x16x8xf32, #tpu.memory_space<vmem>>, %arg3: memref<16x32xf32, #tpu.memory_space<vmem>>, %arg4: memref<1x32xf32, #tpu.memory_space<vmem>>, %arg5: memref<3x48x8xf32, #tpu.memory_space<vmem>>, %arg6: memref<1x8xf32, #tpu.memory_space<vmem>>, %arg7: memref<3x24x8xf32, #tpu.memory_space<vmem>>, %arg8: memref<1x8xf32, #tpu.memory_space<vmem>>, %arg9: memref<1x16x16x8xf32, #tpu.memory_space<vmem>>, %arg10: memref<18x18x16xf32, #tpu.memory_space<vmem>>, %arg11: memref<18x18x8xf32, #tpu.memory_space<vmem>>) attributes {dimension_semantics = [#tpu.dimension_semantics<parallel>], iteration_bounds = array<i64: 2>, scalar_prefetch = 0 : i64, scratch_operands = 2 : i64, tpu.core_type = #tpu.core_type<tc>, window_params = [{transform_indices = @transform_0, window_bounds = array<i64: 1, 8, 8, 16>}, {transform_indices = @transform_1, window_bounds = array<i64: 1, 16, 16, 8>}, {pipeline_mode = #tpu.pipeline_mode<synchronous>, transform_indices = @transform_2, window_bounds = array<i64: 16, 32>}, {pipeline_mode = #tpu.pipeline_mode<synchronous>, transform_indices = @transform_3, window_bounds = array<i64: 1, 32>}, {pipeline_mode = #tpu.pipeline_mode<synchronous>, transform_indices = @transform_4, window_bounds = array<i64: 3, 48, 8>}, {pipeline_mode = #tpu.pipeline_mode<synchronous>, transform_indices = @transform_5, window_bounds = array<i64: 1, 8>}, {pipeline_mode = #tpu.pipeline_mode<synchronous>, transform_indices = @transform_6, window_bounds = array<i64: 3, 24, 8>}, {pipeline_mode = #tpu.pipeline_mode<synchronous>, transform_indices = @transform_7, window_bounds = array<i64: 1, 8>}, {transform_indices = @transform_8, window_bounds = array<i64: 1, 16, 16, 8>}]} {
    %cst = arith.constant 0.000000e+00 : f32
    %0 = vector.broadcast %cst : f32 to vector<1x18x16xf32>
    %c0 = arith.constant 0 : index
    %c0_0 = arith.constant 0 : index
    %c0_1 = arith.constant 0 : index
    %1 = vector.load %arg10[%c0, %c0_0, %c0_1] : memref<18x18x16xf32, #tpu.memory_space<vmem>>, vector<1x18x16xf32>
    tpu.vector_store %arg10[%c0, %c0_0, %c0_1], %0 {strides = array<i32>} : memref<18x18x16xf32, #tpu.memory_space<vmem>>, vector<1x18x16xf32>,
    %cst_2 = arith.constant 0.000000e+00 : f32
    %2 = vector.broadcast %cst_2 : f32 to vector<1x18x16xf32>
    %c17 = arith.constant 17 : index
    %c0_3 = arith.constant 0 : index
    %c0_4 = arith.constant 0 : index
    %3 = vector.load %arg10[%c17, %c0_3, %c0_4] : memref<18x18x16xf32, #tpu.memory_space<vmem>>, vector<1x18x16xf32>
    tpu.vector_store %arg10[%c17, %c0_3, %c0_4], %2 {strides = array<i32>} : memref<18x18x16xf32, #tpu.memory_space<vmem>>, vector<1x18x16xf32>,
    %cst_5 = arith.constant 0.000000e+00 : f32
    %4 = vector.broadcast %cst_5 : f32 to vector<18x1x16xf32>
    %c0_6 = arith.constant 0 : index
    %c0_7 = arith.constant 0 : index
    %c0_8 = arith.constant 0 : index
    %5 = vector.load %arg10[%c0_6, %c0_7, %c0_8] : memref<18x18x16xf32, #tpu.memory_space<vmem>>, vector<18x1x16xf32>
    tpu.vector_store %arg10[%c0_6, %c0_7, %c0_8], %4 {strides = array<i32>} : memref<18x18x16xf32, #tpu.memory_space<vmem>>, vector<18x1x16xf32>,
    %cst_9 = arith.constant 0.000000e+00 : f32
    %6 = vector.broadcast %cst_9 : f32 to vector<18x1x16xf32>
    %c0_10 = arith.constant 0 : index
    %c17_11 = arith.constant 17 : index
    %c0_12 = arith.constant 0 : index
    %7 = vector.load %arg10[%c0_10, %c17_11, %c0_12] : memref<18x18x16xf32, #tpu.memory_space<vmem>>, vector<18x1x16xf32>
    tpu.vector_store %arg10[%c0_10, %c17_11, %c0_12], %6 {strides = array<i32>} : memref<18x18x16xf32, #tpu.memory_space<vmem>>, vector<18x1x16xf32>,
    %cst_13 = arith.constant 0.000000e+00 : f32
    %8 = vector.broadcast %cst_13 : f32 to vector<1x18x8xf32>
    %c0_14 = arith.constant 0 : index
    %c0_15 = arith.constant 0 : index
    %c0_16 = arith.constant 0 : index
    %9 = vector.load %arg11[%c0_14, %c0_15, %c0_16] : memref<18x18x8xf32, #tpu.memory_space<vmem>>, vector<1x18x8xf32>
    tpu.vector_store %arg11[%c0_14, %c0_15, %c0_16], %8 {strides = array<i32>} : memref<18x18x8xf32, #tpu.memory_space<vmem>>, vector<1x18x8xf32>,
    %cst_17 = arith.constant 0.000000e+00 : f32
    %10 = vector.broadcast %cst_17 : f32 to vector<1x18x8xf32>
    %c17_18 = arith.constant 17 : index
    %c0_19 = arith.constant 0 : index
    %c0_20 = arith.constant 0 : index
    %11 = vector.load %arg11[%c17_18, %c0_19, %c0_20] : memref<18x18x8xf32, #tpu.memory_space<vmem>>, vector<1x18x8xf32>
    tpu.vector_store %arg11[%c17_18, %c0_19, %c0_20], %10 {strides = array<i32>} : memref<18x18x8xf32, #tpu.memory_space<vmem>>, vector<1x18x8xf32>,
    %cst_21 = arith.constant 0.000000e+00 : f32
    %12 = vector.broadcast %cst_21 : f32 to vector<18x1x8xf32>
    %c0_22 = arith.constant 0 : index
    %c0_23 = arith.constant 0 : index
    %c0_24 = arith.constant 0 : index
    %13 = vector.load %arg11[%c0_22, %c0_23, %c0_24] : memref<18x18x8xf32, #tpu.memory_space<vmem>>, vector<18x1x8xf32>
    tpu.vector_store %arg11[%c0_22, %c0_23, %c0_24], %12 {strides = array<i32>} : memref<18x18x8xf32, #tpu.memory_space<vmem>>, vector<18x1x8xf32>,
    %cst_25 = arith.constant 0.000000e+00 : f32
    %14 = vector.broadcast %cst_25 : f32 to vector<18x1x8xf32>
    %c0_26 = arith.constant 0 : index
    %c17_27 = arith.constant 17 : index
    %c0_28 = arith.constant 0 : index
    %15 = vector.load %arg11[%c0_26, %c17_27, %c0_28] : memref<18x18x8xf32, #tpu.memory_space<vmem>>, vector<18x1x8xf32>
    tpu.vector_store %arg11[%c0_26, %c17_27, %c0_28], %14 {strides = array<i32>} : memref<18x18x8xf32, #tpu.memory_space<vmem>>, vector<18x1x8xf32>,
    %c0_29 = arith.constant 0 : index
    %c0_30 = arith.constant 0 : index
    %c0_31 = arith.constant 0 : index
    %c0_32 = arith.constant 0 : index
    %16 = vector.load %arg1[%c0_29, %c0_30, %c0_31, %c0_32] : memref<1x8x8x16xf32, #tpu.memory_space<vmem>>, vector<1x8x8x16xf32>
    %17 = vector.shape_cast %16 : vector<1x8x8x16xf32> to vector<8x8x16xf32>
    %18 = vector.shape_cast %17 : vector<8x8x16xf32> to vector<64x16xf32>
    %c0_33 = arith.constant 0 : index
    %c0_34 = arith.constant 0 : index
    %19 = vector.load %arg3[%c0_33, %c0_34] : memref<16x32xf32, #tpu.memory_space<vmem>>, vector<16x32xf32>
    %cst_35 = arith.constant dense<0.000000e+00> : vector<64x32xf32>
    %20 = tpu.matmul %18, %19, %cst_35 {dimension_numbers = #tpu.dot_dimension_numbers<[1], [0], [0], [1], [0, 0, 1, 1], [], []>} : vector<64x16xf32>, vector<16x32xf32>, vector<64x32xf32> -> vector<64x32xf32>
    %c0_36 = arith.constant 0 : index
    %c0_37 = arith.constant 0 : index
    %21 = vector.load %arg4[%c0_36, %c0_37] : memref<1x32xf32, #tpu.memory_space<vmem>>, vector<1x32xf32>
    %22 = vector.shape_cast %21 : vector<1x32xf32> to vector<32xf32>
    %23 = vector.shape_cast %22 : vector<32xf32> to vector<1x32xf32>
    %24 = vector.broadcast %23 : vector<1x32xf32> to vector<64x32xf32>
    %25 = arith.addf %20, %24 : vector<64x32xf32>
    %26 = vector.shape_cast %25 : vector<64x32xf32> to vector<8x8x32xf32>
    %27 = vector.extract_strided_slice %26 {offsets = [0, 0, 0], sizes = [8, 8, 8], strides = [1, 1, 1]} : vector<8x8x32xf32> to vector<8x8x8xf32>
    %28 = vector.extract_strided_slice %26 {offsets = [0, 0, 8], sizes = [8, 8, 8], strides = [1, 1, 1]} : vector<8x8x32xf32> to vector<8x8x8xf32>
    %29 = vector.extract_strided_slice %26 {offsets = [0, 0, 16], sizes = [8, 8, 8], strides = [1, 1, 1]} : vector<8x8x32xf32> to vector<8x8x8xf32>
    %30 = vector.extract_strided_slice %26 {offsets = [0, 0, 24], sizes = [8, 8, 8], strides = [1, 1, 1]} : vector<8x8x32xf32> to vector<8x8x8xf32>
    %31 = tpu.iota {dimensions = array<i32: 1>} : vector<8x16x8xi32>
    %c2_i32 = arith.constant 2 : i32
    %c0_i32 = arith.constant 0 : i32
    %32 = arith.cmpi eq, %c2_i32, %c0_i32 : i32
    %c1_i32 = arith.constant 1 : i32
    %33 = arith.select %32, %c1_i32, %c2_i32 : i32
    %34 = vector.broadcast %33 : i32 to vector<8x16x8xi32>
    %35 = arith.remsi %31, %34 : vector<8x16x8xi32>
    %c0_i32_38 = arith.constant 0 : i32
    %36 = vector.broadcast %c0_i32_38 : i32 to vector<8x16x8xi32>
    %37 = arith.cmpi ne, %35, %36 : vector<8x16x8xi32>
    %c0_i32_39 = arith.constant 0 : i32
    %38 = vector.broadcast %c0_i32_39 : i32 to vector<8x16x8xi32>
    %39 = arith.cmpi slt, %35, %38 : vector<8x16x8xi32>
    %c0_i32_40 = arith.constant 0 : i32
    %40 = arith.cmpi slt, %33, %c0_i32_40 : i32
    %41 = vector.broadcast %40 : i1 to vector<8x16x8xi1>
    %42 = vector.broadcast %41 : vector<8x16x8xi1> to vector<8x16x8xi1>
    %43 = arith.xori %39, %42 : vector<8x16x8xi1>
    %44 = arith.andi %43, %37 : vector<8x16x8xi1>
    %45 = vector.broadcast %33 : i32 to vector<8x16x8xi32>
    %46 = arith.addi %35, %45 : vector<8x16x8xi32>
    %47 = arith.select %44, %46, %35 : vector<8x16x8xi1>, vector<8x16x8xi32>
    %c0_i32_41 = arith.constant 0 : i32
    %48 = vector.broadcast %c0_i32_41 : i32 to vector<8x16x8xi32>
    %49 = arith.cmpi eq, %47, %48 : vector<8x16x8xi32>
    %50 = vector.shape_cast %27 : vector<8x8x8xf32> to vector<8x8x1x8xf32>
    %51 = vector.shape_cast %50 : vector<8x8x1x8xf32> to vector<8x8x1x8xf32>
    %52 = vector.broadcast %51 : vector<8x8x1x8xf32> to vector<8x8x2x8xf32>
    %53 = vector.shape_cast %52 : vector<8x8x2x8xf32> to vector<8x16x8xf32>
    %54 = vector.shape_cast %28 : vector<8x8x8xf32> to vector<8x8x1x8xf32>
    %55 = vector.shape_cast %54 : vector<8x8x1x8xf32> to vector<8x8x1x8xf32>
    %56 = vector.broadcast %55 : vector<8x8x1x8xf32> to vector<8x8x2x8xf32>
    %57 = vector.shape_cast %56 : vector<8x8x2x8xf32> to vector<8x16x8xf32>
    %58 = arith.select %49, %53, %57 : vector<8x16x8xi1>, vector<8x16x8xf32>
    %59 = vector.shape_cast %29 : vector<8x8x8xf32> to vector<8x8x1x8xf32>
    %60 = vector.shape_cast %59 : vector<8x8x1x8xf32> to vector<8x8x1x8xf32>
    %61 = vector.broadcast %60 : vector<8x8x1x8xf32> to vector<8x8x2x8xf32>
    %62 = vector.shape_cast %61 : vector<8x8x2x8xf32> to vector<8x16x8xf32>
    %63 = vector.shape_cast %30 : vector<8x8x8xf32> to vector<8x8x1x8xf32>
    %64 = vector.shape_cast %63 : vector<8x8x1x8xf32> to vector<8x8x1x8xf32>
    %65 = vector.broadcast %64 : vector<8x8x1x8xf32> to vector<8x8x2x8xf32>
    %66 = vector.shape_cast %65 : vector<8x8x2x8xf32> to vector<8x16x8xf32>
    %67 = arith.select %49, %62, %66 : vector<8x16x8xi1>, vector<8x16x8xf32>
    %68 = vector.shape_cast %58 : vector<8x16x8xf32> to vector<8x1x16x8xf32>
    %69 = vector.shape_cast %67 : vector<8x16x8xf32> to vector<8x1x16x8xf32>
    %70 = tpu.concatenate %68, %69 in 1 : vector<8x1x16x8xf32>, vector<8x1x16x8xf32> -> vector<8x2x16x8xf32>
    %71 = vector.shape_cast %70 : vector<8x2x16x8xf32> to vector<16x16x8xf32>
    %c0_42 = arith.constant 0 : index
    %c0_43 = arith.constant 0 : index
    %c0_44 = arith.constant 0 : index
    %c0_45 = arith.constant 0 : index
    %72 = vector.load %arg2[%c0_42, %c0_43, %c0_44, %c0_45] : memref<1x16x16x8xf32, #tpu.memory_space<vmem>>, vector<1x16x16x8xf32>
    %73 = vector.shape_cast %72 : vector<1x16x16x8xf32> to vector<16x16x8xf32>
    %74 = tpu.concatenate %71, %73 in 2 : vector<16x16x8xf32>, vector<16x16x8xf32> -> vector<16x16x16xf32>
    %c1 = arith.constant 1 : index
    %c1_46 = arith.constant 1 : index
    %c0_47 = arith.constant 0 : index
    %75 = vector.load %arg10[%c1, %c1_46, %c0_47] : memref<18x18x16xf32, #tpu.memory_space<vmem>>, vector<16x16x16xf32>
    tpu.vector_store %arg10[%c1, %c1_46, %c0_47], %74 {strides = array<i32>} : memref<18x18x16xf32, #tpu.memory_space<vmem>>, vector<16x16x16xf32>,
    %cst_48 = arith.constant 0.000000e+00 : f32
    %76 = vector.broadcast %cst_48 : f32 to vector<256x8xf32>
    %c0_49 = arith.constant 0 : index
    %c0_50 = arith.constant 0 : index
    %c0_51 = arith.constant 0 : index
    %77 = vector.load %arg10[%c0_49, %c0_50, %c0_51] : memref<18x18x16xf32, #tpu.memory_space<vmem>>, vector<16x16x16xf32>
    %78 = vector.shape_cast %77 : vector<16x16x16xf32> to vector<256x16xf32>
    %c0_52 = arith.constant 0 : index
    %c1_53 = arith.constant 1 : index
    %c0_54 = arith.constant 0 : index
    %79 = vector.load %arg10[%c0_52, %c1_53, %c0_54] : memref<18x18x16xf32, #tpu.memory_space<vmem>>, vector<16x16x16xf32>
    %80 = vector.shape_cast %79 : vector<16x16x16xf32> to vector<256x16xf32>
    %c0_55 = arith.constant 0 : index
    %c2 = arith.constant 2 : index
    %c0_56 = arith.constant 0 : index
    %81 = vector.load %arg10[%c0_55, %c2, %c0_56] : memref<18x18x16xf32, #tpu.memory_space<vmem>>, vector<16x16x16xf32>
    %82 = vector.shape_cast %81 : vector<16x16x16xf32> to vector<256x16xf32>
    %83 = tpu.concatenate %78, %80, %82 in 1 : vector<256x16xf32>, vector<256x16xf32>, vector<256x16xf32> -> vector<256x48xf32>
    %c0_57 = arith.constant 0 : index
    %c0_58 = arith.constant 0 : index
    %c0_59 = arith.constant 0 : index
    %84 = vector.load %arg5[%c0_57, %c0_58, %c0_59] : memref<3x48x8xf32, #tpu.memory_space<vmem>>, vector<1x48x8xf32>
    %85 = vector.shape_cast %84 : vector<1x48x8xf32> to vector<48x8xf32>
    %cst_60 = arith.constant dense<0.000000e+00> : vector<256x8xf32>
    %86 = tpu.matmul %83, %85, %cst_60 {dimension_numbers = #tpu.dot_dimension_numbers<[1], [0], [0], [1], [0, 0, 1, 1], [], []>} : vector<256x48xf32>, vector<48x8xf32>, vector<256x8xf32> -> vector<256x8xf32>
    %87 = arith.addf %76, %86 : vector<256x8xf32>
    %c1_61 = arith.constant 1 : index
    %c0_62 = arith.constant 0 : index
    %c0_63 = arith.constant 0 : index
    %88 = vector.load %arg10[%c1_61, %c0_62, %c0_63] : memref<18x18x16xf32, #tpu.memory_space<vmem>>, vector<16x16x16xf32>
    %89 = vector.shape_cast %88 : vector<16x16x16xf32> to vector<256x16xf32>
    %c1_64 = arith.constant 1 : index
    %c1_65 = arith.constant 1 : index
    %c0_66 = arith.constant 0 : index
    %90 = vector.load %arg10[%c1_64, %c1_65, %c0_66] : memref<18x18x16xf32, #tpu.memory_space<vmem>>, vector<16x16x16xf32>
    %91 = vector.shape_cast %90 : vector<16x16x16xf32> to vector<256x16xf32>
    %c1_67 = arith.constant 1 : index
    %c2_68 = arith.constant 2 : index
    %c0_69 = arith.constant 0 : index
    %92 = vector.load %arg10[%c1_67, %c2_68, %c0_69] : memref<18x18x16xf32, #tpu.memory_space<vmem>>, vector<16x16x16xf32>
    %93 = vector.shape_cast %92 : vector<16x16x16xf32> to vector<256x16xf32>
    %94 = tpu.concatenate %89, %91, %93 in 1 : vector<256x16xf32>, vector<256x16xf32>, vector<256x16xf32> -> vector<256x48xf32>
    %c1_70 = arith.constant 1 : index
    %c0_71 = arith.constant 0 : index
    %c0_72 = arith.constant 0 : index
    %95 = vector.load %arg5[%c1_70, %c0_71, %c0_72] : memref<3x48x8xf32, #tpu.memory_space<vmem>>, vector<1x48x8xf32>
    %96 = vector.shape_cast %95 : vector<1x48x8xf32> to vector<48x8xf32>
    %cst_73 = arith.constant dense<0.000000e+00> : vector<256x8xf32>
    %97 = tpu.matmul %94, %96, %cst_73 {dimension_numbers = #tpu.dot_dimension_numbers<[1], [0], [0], [1], [0, 0, 1, 1], [], []>} : vector<256x48xf32>, vector<48x8xf32>, vector<256x8xf32> -> vector<256x8xf32>
    %98 = arith.addf %87, %97 : vector<256x8xf32>
    %c2_74 = arith.constant 2 : index
    %c0_75 = arith.constant 0 : index
    %c0_76 = arith.constant 0 : index
    %99 = vector.load %arg10[%c2_74, %c0_75, %c0_76] : memref<18x18x16xf32, #tpu.memory_space<vmem>>, vector<16x16x16xf32>
    %100 = vector.shape_cast %99 : vector<16x16x16xf32> to vector<256x16xf32>
    %c2_77 = arith.constant 2 : index
    %c1_78 = arith.constant 1 : index
    %c0_79 = arith.constant 0 : index
    %101 = vector.load %arg10[%c2_77, %c1_78, %c0_79] : memref<18x18x16xf32, #tpu.memory_space<vmem>>, vector<16x16x16xf32>
    %102 = vector.shape_cast %101 : vector<16x16x16xf32> to vector<256x16xf32>
    %c2_80 = arith.constant 2 : index
    %c2_81 = arith.constant 2 : index
    %c0_82 = arith.constant 0 : index
    %103 = vector.load %arg10[%c2_80, %c2_81, %c0_82] : memref<18x18x16xf32, #tpu.memory_space<vmem>>, vector<16x16x16xf32>
    %104 = vector.shape_cast %103 : vector<16x16x16xf32> to vector<256x16xf32>
    %105 = tpu.concatenate %100, %102, %104 in 1 : vector<256x16xf32>, vector<256x16xf32>, vector<256x16xf32> -> vector<256x48xf32>
    %c2_83 = arith.constant 2 : index
    %c0_84 = arith.constant 0 : index
    %c0_85 = arith.constant 0 : index
    %106 = vector.load %arg5[%c2_83, %c0_84, %c0_85] : memref<3x48x8xf32, #tpu.memory_space<vmem>>, vector<1x48x8xf32>
    %107 = vector.shape_cast %106 : vector<1x48x8xf32> to vector<48x8xf32>
    %cst_86 = arith.constant dense<0.000000e+00> : vector<256x8xf32>
    %108 = tpu.matmul %105, %107, %cst_86 {dimension_numbers = #tpu.dot_dimension_numbers<[1], [0], [0], [1], [0, 0, 1, 1], [], []>} : vector<256x48xf32>, vector<48x8xf32>, vector<256x8xf32> -> vector<256x8xf32>
    %109 = arith.addf %98, %108 : vector<256x8xf32>
    %c0_87 = arith.constant 0 : index
    %c0_88 = arith.constant 0 : index
    %110 = vector.load %arg6[%c0_87, %c0_88] : memref<1x8xf32, #tpu.memory_space<vmem>>, vector<1x8xf32>
    %111 = vector.shape_cast %110 : vector<1x8xf32> to vector<8xf32>
    %112 = vector.shape_cast %111 : vector<8xf32> to vector<1x8xf32>
    %113 = vector.broadcast %112 : vector<1x8xf32> to vector<256x8xf32>
    %114 = arith.addf %109, %113 : vector<256x8xf32>
    %cst_89 = arith.constant 0.000000e+00 : f32
    %115 = vector.broadcast %cst_89 : f32 to vector<256x8xf32>
    %116 = arith.maximumf %114, %115 : vector<256x8xf32>
    %117 = vector.shape_cast %116 : vector<256x8xf32> to vector<16x16x8xf32>
    %c1_90 = arith.constant 1 : index
    %c1_91 = arith.constant 1 : index
    %c0_92 = arith.constant 0 : index
    %118 = vector.load %arg11[%c1_90, %c1_91, %c0_92] : memref<18x18x8xf32, #tpu.memory_space<vmem>>, vector<16x16x8xf32>
    tpu.vector_store %arg11[%c1_90, %c1_91, %c0_92], %117 {strides = array<i32>} : memref<18x18x8xf32, #tpu.memory_space<vmem>>, vector<16x16x8xf32>,
    %cst_93 = arith.constant 0.000000e+00 : f32
    %119 = vector.broadcast %cst_93 : f32 to vector<256x8xf32>
    %c0_94 = arith.constant 0 : index
    %c0_95 = arith.constant 0 : index
    %c0_96 = arith.constant 0 : index
    %120 = vector.load %arg11[%c0_94, %c0_95, %c0_96] : memref<18x18x8xf32, #tpu.memory_space<vmem>>, vector<16x16x8xf32>
    %121 = vector.shape_cast %120 : vector<16x16x8xf32> to vector<256x8xf32>
    %c0_97 = arith.constant 0 : index
    %c1_98 = arith.constant 1 : index
    %c0_99 = arith.constant 0 : index
    %122 = vector.load %arg11[%c0_97, %c1_98, %c0_99] : memref<18x18x8xf32, #tpu.memory_space<vmem>>, vector<16x16x8xf32>
    %123 = vector.shape_cast %122 : vector<16x16x8xf32> to vector<256x8xf32>
    %c0_100 = arith.constant 0 : index
    %c2_101 = arith.constant 2 : index
    %c0_102 = arith.constant 0 : index
    %124 = vector.load %arg11[%c0_100, %c2_101, %c0_102] : memref<18x18x8xf32, #tpu.memory_space<vmem>>, vector<16x16x8xf32>
    %125 = vector.shape_cast %124 : vector<16x16x8xf32> to vector<256x8xf32>
    %126 = tpu.concatenate %121, %123, %125 in 1 : vector<256x8xf32>, vector<256x8xf32>, vector<256x8xf32> -> vector<256x24xf32>
    %c0_103 = arith.constant 0 : index
    %c0_104 = arith.constant 0 : index
    %c0_105 = arith.constant 0 : index
    %127 = vector.load %arg7[%c0_103, %c0_104, %c0_105] : memref<3x24x8xf32, #tpu.memory_space<vmem>>, vector<1x24x8xf32>
    %128 = vector.shape_cast %127 : vector<1x24x8xf32> to vector<24x8xf32>
    %cst_106 = arith.constant dense<0.000000e+00> : vector<256x8xf32>
    %129 = tpu.matmul %126, %128, %cst_106 {dimension_numbers = #tpu.dot_dimension_numbers<[1], [0], [0], [1], [0, 0, 1, 1], [], []>} : vector<256x24xf32>, vector<24x8xf32>, vector<256x8xf32> -> vector<256x8xf32>
    %130 = arith.addf %119, %129 : vector<256x8xf32>
    %c1_107 = arith.constant 1 : index
    %c0_108 = arith.constant 0 : index
    %c0_109 = arith.constant 0 : index
    %131 = vector.load %arg11[%c1_107, %c0_108, %c0_109] : memref<18x18x8xf32, #tpu.memory_space<vmem>>, vector<16x16x8xf32>
    %132 = vector.shape_cast %131 : vector<16x16x8xf32> to vector<256x8xf32>
    %c1_110 = arith.constant 1 : index
    %c1_111 = arith.constant 1 : index
    %c0_112 = arith.constant 0 : index
    %133 = vector.load %arg11[%c1_110, %c1_111, %c0_112] : memref<18x18x8xf32, #tpu.memory_space<vmem>>, vector<16x16x8xf32>
    %134 = vector.shape_cast %133 : vector<16x16x8xf32> to vector<256x8xf32>
    %c1_113 = arith.constant 1 : index
    %c2_114 = arith.constant 2 : index
    %c0_115 = arith.constant 0 : index
    %135 = vector.load %arg11[%c1_113, %c2_114, %c0_115] : memref<18x18x8xf32, #tpu.memory_space<vmem>>, vector<16x16x8xf32>
    %136 = vector.shape_cast %135 : vector<16x16x8xf32> to vector<256x8xf32>
    %137 = tpu.concatenate %132, %134, %136 in 1 : vector<256x8xf32>, vector<256x8xf32>, vector<256x8xf32> -> vector<256x24xf32>
    %c1_116 = arith.constant 1 : index
    %c0_117 = arith.constant 0 : index
    %c0_118 = arith.constant 0 : index
    %138 = vector.load %arg7[%c1_116, %c0_117, %c0_118] : memref<3x24x8xf32, #tpu.memory_space<vmem>>, vector<1x24x8xf32>
    %139 = vector.shape_cast %138 : vector<1x24x8xf32> to vector<24x8xf32>
    %cst_119 = arith.constant dense<0.000000e+00> : vector<256x8xf32>
    %140 = tpu.matmul %137, %139, %cst_119 {dimension_numbers = #tpu.dot_dimension_numbers<[1], [0], [0], [1], [0, 0, 1, 1], [], []>} : vector<256x24xf32>, vector<24x8xf32>, vector<256x8xf32> -> vector<256x8xf32>
    %141 = arith.addf %130, %140 : vector<256x8xf32>
    %c2_120 = arith.constant 2 : index
    %c0_121 = arith.constant 0 : index
    %c0_122 = arith.constant 0 : index
    %142 = vector.load %arg11[%c2_120, %c0_121, %c0_122] : memref<18x18x8xf32, #tpu.memory_space<vmem>>, vector<16x16x8xf32>
    %143 = vector.shape_cast %142 : vector<16x16x8xf32> to vector<256x8xf32>
    %c2_123 = arith.constant 2 : index
    %c1_124 = arith.constant 1 : index
    %c0_125 = arith.constant 0 : index
    %144 = vector.load %arg11[%c2_123, %c1_124, %c0_125] : memref<18x18x8xf32, #tpu.memory_space<vmem>>, vector<16x16x8xf32>
    %145 = vector.shape_cast %144 : vector<16x16x8xf32> to vector<256x8xf32>
    %c2_126 = arith.constant 2 : index
    %c2_127 = arith.constant 2 : index
    %c0_128 = arith.constant 0 : index
    %146 = vector.load %arg11[%c2_126, %c2_127, %c0_128] : memref<18x18x8xf32, #tpu.memory_space<vmem>>, vector<16x16x8xf32>
    %147 = vector.shape_cast %146 : vector<16x16x8xf32> to vector<256x8xf32>
    %148 = tpu.concatenate %143, %145, %147 in 1 : vector<256x8xf32>, vector<256x8xf32>, vector<256x8xf32> -> vector<256x24xf32>
    %c2_129 = arith.constant 2 : index
    %c0_130 = arith.constant 0 : index
    %c0_131 = arith.constant 0 : index
    %149 = vector.load %arg7[%c2_129, %c0_130, %c0_131] : memref<3x24x8xf32, #tpu.memory_space<vmem>>, vector<1x24x8xf32>
    %150 = vector.shape_cast %149 : vector<1x24x8xf32> to vector<24x8xf32>
    %cst_132 = arith.constant dense<0.000000e+00> : vector<256x8xf32>
    %151 = tpu.matmul %148, %150, %cst_132 {dimension_numbers = #tpu.dot_dimension_numbers<[1], [0], [0], [1], [0, 0, 1, 1], [], []>} : vector<256x24xf32>, vector<24x8xf32>, vector<256x8xf32> -> vector<256x8xf32>
    %152 = arith.addf %141, %151 : vector<256x8xf32>
    %c0_133 = arith.constant 0 : index
    %c0_134 = arith.constant 0 : index
    %153 = vector.load %arg8[%c0_133, %c0_134] : memref<1x8xf32, #tpu.memory_space<vmem>>, vector<1x8xf32>
    %154 = vector.shape_cast %153 : vector<1x8xf32> to vector<8xf32>
    %155 = vector.shape_cast %154 : vector<8xf32> to vector<1x8xf32>
    %156 = vector.broadcast %155 : vector<1x8xf32> to vector<256x8xf32>
    %157 = arith.addf %152, %156 : vector<256x8xf32>
    %cst_135 = arith.constant 0.000000e+00 : f32
    %158 = vector.broadcast %cst_135 : f32 to vector<256x8xf32>
    %159 = arith.maximumf %157, %158 : vector<256x8xf32>
    %160 = vector.shape_cast %159 : vector<256x8xf32> to vector<16x16x8xf32>
    %c0_136 = arith.constant 0 : index
    %c0_137 = arith.constant 0 : index
    %c0_138 = arith.constant 0 : index
    %c0_139 = arith.constant 0 : index
    %161 = vector.load %arg9[%c0_136, %c0_137, %c0_138, %c0_139] : memref<1x16x16x8xf32, #tpu.memory_space<vmem>>, vector<1x16x16x8xf32>
    %162 = vector.shape_cast %161 : vector<1x16x16x8xf32> to vector<16x16x8xf32>
    %163 = vector.shape_cast %160 : vector<16x16x8xf32> to vector<1x16x16x8xf32>
    tpu.vector_store %arg9[%c0_136, %c0_137, %c0_138, %c0_139], %163 {strides = array<i32>} : memref<1x16x16x8xf32, #tpu.memory_space<vmem>>, vector<1x16x16x8xf32>,
    return
  }
  func.func @transform_0(%arg0: i32) -> (i32, i32, i32, i32) {
    %c0_i32 = arith.constant 0 : i32
    %c0_i32_0 = arith.constant 0 : i32
    %c0_i32_1 = arith.constant 0 : i32
    %c0_i32_2 = arith.constant 0 : i32
    return %arg0, %c0_i32, %c0_i32_0, %c0_i32_1 : i32, i32, i32, i32
  }
  func.func @transform_1(%arg0: i32) -> (i32, i32, i32, i32) {
    %c0_i32 = arith.constant 0 : i32
    %c0_i32_0 = arith.constant 0 : i32
    %c0_i32_1 = arith.constant 0 : i32
    %c0_i32_2 = arith.constant 0 : i32
    return %arg0, %c0_i32, %c0_i32_0, %c0_i32_1 : i32, i32, i32, i32
  }
  func.func @transform_2(%arg0: i32) -> (i32, i32) {
    %c0_i32 = arith.constant 0 : i32
    %c0_i32_0 = arith.constant 0 : i32
    %c0_i32_1 = arith.constant 0 : i32
    return %c0_i32, %c0_i32_0 : i32, i32
  }
  func.func @transform_3(%arg0: i32) -> (i32, i32) {
    %c0_i32 = arith.constant 0 : i32
    %c0_i32_0 = arith.constant 0 : i32
    %c0_i32_1 = arith.constant 0 : i32
    return %c0_i32, %c0_i32_0 : i32, i32
  }
  func.func @transform_4(%arg0: i32) -> (i32, i32, i32) {
    %c0_i32 = arith.constant 0 : i32
    %c0_i32_0 = arith.constant 0 : i32
    %c0_i32_1 = arith.constant 0 : i32
    %c0_i32_2 = arith.constant 0 : i32
    return %c0_i32, %c0_i32_0, %c0_i32_1 : i32, i32, i32
  }
  func.func @transform_5(%arg0: i32) -> (i32, i32) {
    %c0_i32 = arith.constant 0 : i32
    %c0_i32_0 = arith.constant 0 : i32
    %c0_i32_1 = arith.constant 0 : i32
    return %c0_i32, %c0_i32_0 : i32, i32
  }
  func.func @transform_6(%arg0: i32) -> (i32, i32, i32) {
    %c0_i32 = arith.constant 0 : i32
    %c0_i32_0 = arith.constant 0 : i32
    %c0_i32_1 = arith.constant 0 : i32
    %c0_i32_2 = arith.constant 0 : i32
    return %c0_i32, %c0_i32_0, %c0_i32_1 : i32, i32, i32
  }
  func.func @transform_7(%arg0: i32) -> (i32, i32) {
    %c0_i32 = arith.constant 0 : i32
    %c0_i32_0 = arith.constant 0 : i32
    %c0_i32_1 = arith.constant 0 : i32
    return %c0_i32, %c0_i32_0 : i32, i32
  }
  func.func @transform_8(%arg0: i32) -> (i32, i32, i32, i32) {
    %c0_i32 = arith.constant 0 : i32
    %c0_i32_0 = arith.constant 0 : i32
    %c0_i32_1 = arith.constant 0 : i32
    %c0_i32_2 = arith.constant 0 : i32
    return %arg0, %c0_i32, %c0_i32_0, %c0_i32_1 : i32, i32, i32, i32
  }
}

</mosaic_0001>

<llo_original>
// kernel: tpu_custom_call.1
$region0: #{tpu_custom_call.1}
  #allocation0 [shape = 'u32[]', space=smem, size = 0x4, offset = 0x4, fixed_abs, tag = 'smem constant byte address 0x4 - core index']
  #allocation1 [shape = 'u32[144,128]{1,0:T(1,128)}', space=vmem, size = 0x12000, scoped, tag = 'internal scratch']
  #allocation2 [shape = 'f32[18,18,16]{2,1,0:T(8,128)}', space=vmem, size = 0x36000, scoped, tag = 'scratch operand']
  #allocation3 [shape = 'f32[18,18,8]{2,1,0:T(8,128)}', space=vmem, size = 0x36000, scoped, tag = 'scratch operand']
  %s0 = inlined_call_operand.vmem [shape: f32[2,8,8,16], index: 0, kind: input, shape index: {}]
  %s1 = inlined_call_operand.vmem [shape: f32[2,16,16,8], index: 1, kind: input, shape index: {}]
  %s2 = inlined_call_operand.vmem [shape: f32[16,32], index: 2, kind: input, shape index: {}]
  %s3 = inlined_call_operand.vmem [shape: f32[1,32], index: 3, kind: input, shape index: {}]
  %s4 = inlined_call_operand.vmem [shape: f32[3,48,8], index: 4, kind: input, shape index: {}]
  %s5 = inlined_call_operand.vmem [shape: f32[1,8], index: 5, kind: input, shape index: {}]
  %s6 = inlined_call_operand.vmem [shape: f32[3,24,8], index: 6, kind: input, shape index: {}]
  %s7 = inlined_call_operand.vmem [shape: f32[1,8], index: 7, kind: input, shape index: {}]
  %s8 = inlined_call_operand.vmem [shape: f32[2,16,16,8], index: 8, kind: output, shape index: {}]
  %s9 = sld [smem:[#allocation0]]
  $region65: #{tpu_custom_call.1} parent=0
    _
  %s11 = ssub.s32 1, %s9
  %s12 = scalar_select 0, %s11, %s9
  loop: start=0, step=1, limit=4
  $region2: #{tpu_custom_call.1} parent=0 // loop_pre_header
    _
  $region3: #{tpu_custom_call.1} parent=0 // loop_header
    %s14 = sphi 0, %s18
    %p15 = scmp.ge.s32.totalorder %s14, 4
    %s24 = sphi 0, %s26
    %s27 = sphi 0, %s24
    %s28 = sphi 0, %s27
    %s44 = sphi 0, %s28
    %s50 = sphi 0, %s52
    %s53 = sphi 0, %s50
    %s54 = sphi 0, %s53
    %s70 = sphi 0, %s54
    %s74 = sphi 0, %s74
    %s76 = sphi 0, %s74
    %s77 = sphi 0, %s76
    %s91 = sphi 0, %s77
    %s95 = sphi 0, %s95
    %s97 = sphi 0, %s95
    %s98 = sphi 0, %s97
    %s112 = sphi 0, %s98
    %s116 = sphi 0, %s116
    %s118 = sphi 0, %s116
    %s119 = sphi 0, %s118
    %s133 = sphi 0, %s119
    %s137 = sphi 0, %s137
    %s139 = sphi 0, %s137
    %s140 = sphi 0, %s139
    %s154 = sphi 0, %s140
    %s158 = sphi 0, %s158
    %s160 = sphi 0, %s158
    %s161 = sphi 0, %s160
    %s175 = sphi 0, %s161
    %s179 = sphi 0, %s179
    %s181 = sphi 0, %s179
    %s182 = sphi 0, %s181
    %s196 = sphi 0, %s182
    %s202 = sphi 0, %s204
    %s205 = sphi 0, %s202
    %s206 = sphi 0, %s205
    %s222 = sphi 0, %s206
  $region4: #{tpu_custom_call.1} parent=0 // loop_header_branch
    %17 = sbr.rel (%p15) target = $region8
  $region5: #{tpu_custom_call.1} parent=0 // loop_body
    %s19 = ssub.s32 %s14, 1
    %s20 = ssub.s32 %s14, 2
    %s21 = sadd.s32 %s14, 1
    %s22 = ssub.s32 %s14, %s21
    %p23 = scmp.eq.s32.totalorder %s22, 0
    %s25 = sadd.s32 %s24, 1
    %s26 = scalar_select %p23, %s24, %s25
    %p29 = pneg %p23
    %p30 = scmp.eq.s32.totalorder %s14, 1
    %p31 = por %p29, %p30
    %p32 = scmp.ne.s32.totalorder %s24, %s27
    %p33 = scmp.eq.s32.totalorder %s14, 0
    %p34 = por %p32, %p33
    %p35 = scmp.ne.s32.totalorder %s24, %s27
    %p36 = scmp.eq.s32.totalorder %s19, 1
    %p37 = por %p35, %p36
    %p38 = scmp.ne.s32.totalorder %s27, %s28
    %p39 = scmp.eq.s32.totalorder %s19, 0
    %p40 = por %p38, %p39
    %p41 = scmp.ne.s32.totalorder %s27, %s28
    %p42 = scmp.eq.s32.totalorder %s20, 1
    %p43 = por %p41, %p42
    %p45 = scmp.ne.s32.totalorder %s28, %s44
    %p46 = scmp.eq.s32.totalorder %s20, 0
    %p47 = por %p45, %p46
    %s48 = ssub.s32 %s14, %s21
    %p49 = scmp.eq.s32.totalorder %s48, 0
    %s51 = sadd.s32 %s50, 1
    %s52 = scalar_select %p49, %s50, %s51
    %p55 = pneg %p49
    %p56 = scmp.eq.s32.totalorder %s14, 1
    %p57 = por %p55, %p56
    %p58 = scmp.ne.s32.totalorder %s50, %s53
    %p59 = scmp.eq.s32.totalorder %s14, 0
    %p60 = por %p58, %p59
    %p61 = scmp.ne.s32.totalorder %s50, %s53
    %p62 = scmp.eq.s32.totalorder %s19, 1
    %p63 = por %p61, %p62
    %p64 = scmp.ne.s32.totalorder %s53, %s54
    %p65 = scmp.eq.s32.totalorder %s19, 0
    %p66 = por %p64, %p65
    %p67 = scmp.ne.s32.totalorder %s53, %s54
    %p68 = scmp.eq.s32.totalorder %s20, 1
    %p69 = por %p67, %p68
    %p71 = scmp.ne.s32.totalorder %s54, %s70
    %p72 = scmp.eq.s32.totalorder %s20, 0
    %p73 = por %p71, %p72
    %s75 = sadd.s32 %s74, 1
    %p78 = scmp.eq.s32.totalorder %s14, 1
    %p79 = scmp.ne.s32.totalorder %s74, %s76
    %p80 = scmp.eq.s32.totalorder %s14, 0
    %p81 = por %p79, %p80
    %p82 = scmp.ne.s32.totalorder %s74, %s76
    %p83 = scmp.eq.s32.totalorder %s19, 1
    %p84 = por %p82, %p83
    %p85 = scmp.ne.s32.totalorder %s76, %s77
    %p86 = scmp.eq.s32.totalorder %s19, 0
    %p87 = por %p85, %p86
    %p88 = scmp.ne.s32.totalorder %s76, %s77
    %p89 = scmp.eq.s32.totalorder %s20, 1
    %p90 = por %p88, %p89
    %p92 = scmp.ne.s32.totalorder %s77, %s91
    %p93 = scmp.eq.s32.totalorder %s20, 0
    %p94 = por %p92, %p93
    %s96 = sadd.s32 %s95, 1
    %p99 = scmp.eq.s32.totalorder %s14, 1
    %p100 = scmp.ne.s32.totalorder %s95, %s97
    %p101 = scmp.eq.s32.totalorder %s14, 0
    %p102 = por %p100, %p101
    %p103 = scmp.ne.s32.totalorder %s95, %s97
    %p104 = scmp.eq.s32.totalorder %s19, 1
    %p105 = por %p103, %p104
    %p106 = scmp.ne.s32.totalorder %s97, %s98
    %p107 = scmp.eq.s32.totalorder %s19, 0
    %p108 = por %p106, %p107
    %p109 = scmp.ne.s32.totalorder %s97, %s98
    %p110 = scmp.eq.s32.totalorder %s20, 1
    %p111 = por %p109, %p110
    %p113 = scmp.ne.s32.totalorder %s98, %s112
    %p114 = scmp.eq.s32.totalorder %s20, 0
    %p115 = por %p113, %p114
    %s117 = sadd.s32 %s116, 1
    %p120 = scmp.eq.s32.totalorder %s14, 1
    %p121 = scmp.ne.s32.totalorder %s116, %s118
    %p122 = scmp.eq.s32.totalorder %s14, 0
    %p123 = por %p121, %p122
    %p124 = scmp.ne.s32.totalorder %s116, %s118
    %p125 = scmp.eq.s32.totalorder %s19, 1
    %p126 = por %p124, %p125
    %p127 = scmp.ne.s32.totalorder %s118, %s119
    %p128 = scmp.eq.s32.totalorder %s19, 0
    %p129 = por %p127, %p128
    %p130 = scmp.ne.s32.totalorder %s118, %s119
    %p131 = scmp.eq.s32.totalorder %s20, 1
    %p132 = por %p130, %p131
    %p134 = scmp.ne.s32.totalorder %s119, %s133
    %p135 = scmp.eq.s32.totalorder %s20, 0
    %p136 = por %p134, %p135
    %s138 = sadd.s32 %s137, 1
    %p141 = scmp.eq.s32.totalorder %s14, 1
    %p142 = scmp.ne.s32.totalorder %s137, %s139
    %p143 = scmp.eq.s32.totalorder %s14, 0
    %p144 = por %p142, %p143
    %p145 = scmp.ne.s32.totalorder %s137, %s139
    %p146 = scmp.eq.s32.totalorder %s19, 1
    %p147 = por %p145, %p146
    %p148 = scmp.ne.s32.totalorder %s139, %s140
    %p149 = scmp.eq.s32.totalorder %s19, 0
    %p150 = por %p148, %p149
    %p151 = scmp.ne.s32.totalorder %s139, %s140
    %p152 = scmp.eq.s32.totalorder %s20, 1
    %p153 = por %p151, %p152
    %p155 = scmp.ne.s32.totalorder %s140, %s154
    %p156 = scmp.eq.s32.totalorder %s20, 0
    %p157 = por %p155, %p156
    %s159 = sadd.s32 %s158, 1
    %p162 = scmp.eq.s32.totalorder %s14, 1
    %p163 = scmp.ne.s32.totalorder %s158, %s160
    %p164 = scmp.eq.s32.totalorder %s14, 0
    %p165 = por %p163, %p164
    %p166 = scmp.ne.s32.totalorder %s158, %s160
    %p167 = scmp.eq.s32.totalorder %s19, 1
    %p168 = por %p166, %p167
    %p169 = scmp.ne.s32.totalorder %s160, %s161
    %p170 = scmp.eq.s32.totalorder %s19, 0
    %p171 = por %p169, %p170
    %p172 = scmp.ne.s32.totalorder %s160, %s161
    %p173 = scmp.eq.s32.totalorder %s20, 1
    %p174 = por %p172, %p173
    %p176 = scmp.ne.s32.totalorder %s161, %s175
    %p177 = scmp.eq.s32.totalorder %s20, 0
    %p178 = por %p176, %p177
    %s180 = sadd.s32 %s179, 1
    %p183 = scmp.eq.s32.totalorder %s14, 1
    %p184 = scmp.ne.s32.totalorder %s179, %s181
    %p185 = scmp.eq.s32.totalorder %s14, 0
    %p186 = por %p184, %p185
    %p187 = scmp.ne.s32.totalorder %s179, %s181
    %p188 = scmp.eq.s32.totalorder %s19, 1
    %p189 = por %p187, %p188
    %p190 = scmp.ne.s32.totalorder %s181, %s182
    %p191 = scmp.eq.s32.totalorder %s19, 0
    %p192 = por %p190, %p191
    %p193 = scmp.ne.s32.totalorder %s181, %s182
    %p194 = scmp.eq.s32.totalorder %s20, 1
    %p195 = por %p193, %p194
    %p197 = scmp.ne.s32.totalorder %s182, %s196
    %p198 = scmp.eq.s32.totalorder %s20, 0
    %p199 = por %p197, %p198
    %s200 = ssub.s32 %s14, %s21
    %p201 = scmp.eq.s32.totalorder %s200, 0
    %s203 = sadd.s32 %s202, 1
    %s204 = scalar_select %p201, %s202, %s203
    %p207 = pneg %p201
    %p208 = scmp.eq.s32.totalorder %s14, 1
    %p209 = por %p207, %p208
    %p210 = scmp.ne.s32.totalorder %s202, %s205
    %p211 = scmp.eq.s32.totalorder %s14, 0
    %p212 = por %p210, %p211
    %p213 = scmp.ne.s32.totalorder %s202, %s205
    %p214 = scmp.eq.s32.totalorder %s19, 1
    %p215 = por %p213, %p214
    %p216 = scmp.ne.s32.totalorder %s205, %s206
    %p217 = scmp.eq.s32.totalorder %s19, 0
    %p218 = por %p216, %p217
    %p219 = scmp.ne.s32.totalorder %s205, %s206
    %p220 = scmp.eq.s32.totalorder %s20, 1
    %p221 = por %p219, %p220
    %p223 = scmp.ne.s32.totalorder %s206, %s222
    %p224 = scmp.eq.s32.totalorder %s20, 0
    %p225 = por %p223, %p224
    %p226 = scmp.le.s32.totalorder 1, %s14
    %p227 = scmp.lt.s32.totalorder %s14, 3
    %p228 = pnand %p226, %p227
    %p229 = pneg %p228
    // Predicated region
    $region9: #{tpu_custom_call.1} parent=5 // pred_check
      _
    $region10: #{tpu_custom_call.1} parent=5 // pred_check_branch
      %231 = sbr.rel (%p228) target = $region12
    $region11: #{tpu_custom_call.1} parent=5 // pred_region
      %s232 = ssub.s32 %s14, 1
      // Predicated region
      $region13: #{tpu_custom_call.1} parent=11 // pred_check
        %p233 = pneg %p87
      $region14: #{tpu_custom_call.1} parent=11 // pred_check_branch
        %235 = sbr.rel (%p233) target = $region16
      $region15: #{tpu_custom_call.1} parent=11 // pred_region
        _
      $region16: #{tpu_custom_call.1} parent=11 // pred_fallthru
        _
      // Predicated region
      $region17: #{tpu_custom_call.1} parent=11 // pred_check
        %p236 = pneg %p108
      $region18: #{tpu_custom_call.1} parent=11 // pred_check_branch
        %238 = sbr.rel (%p236) target = $region20
      $region19: #{tpu_custom_call.1} parent=11 // pred_region
        _
      $region20: #{tpu_custom_call.1} parent=11 // pred_fallthru
        _
      // Predicated region
      $region21: #{tpu_custom_call.1} parent=11 // pred_check
        %p239 = pneg %p129
      $region22: #{tpu_custom_call.1} parent=11 // pred_check_branch
        %241 = sbr.rel (%p239) target = $region24
      $region23: #{tpu_custom_call.1} parent=11 // pred_region
        _
      $region24: #{tpu_custom_call.1} parent=11 // pred_fallthru
        _
      // Predicated region
      $region25: #{tpu_custom_call.1} parent=11 // pred_check
        %p242 = pneg %p150
      $region26: #{tpu_custom_call.1} parent=11 // pred_check_branch
        %244 = sbr.rel (%p242) target = $region28
      $region27: #{tpu_custom_call.1} parent=11 // pred_region
        _
      $region28: #{tpu_custom_call.1} parent=11 // pred_fallthru
        _
      // Predicated region
      $region29: #{tpu_custom_call.1} parent=11 // pred_check
        %p245 = pneg %p171
      $region30: #{tpu_custom_call.1} parent=11 // pred_check_branch
        %247 = sbr.rel (%p245) target = $region32
      $region31: #{tpu_custom_call.1} parent=11 // pred_region
        _
      $region32: #{tpu_custom_call.1} parent=11 // pred_fallthru
        _
      // Predicated region
      $region33: #{tpu_custom_call.1} parent=11 // pred_check
        %p248 = pneg %p192
      $region34: #{tpu_custom_call.1} parent=11 // pred_check_branch
        %250 = sbr.rel (%p248) target = $region36
      $region35: #{tpu_custom_call.1} parent=11 // pred_region
        _
      $region36: #{tpu_custom_call.1} parent=11 // pred_fallthru
        _
    $region12: #{tpu_custom_call.1} parent=5 // pred_fallthru
      _
    %p251 = scmp.lt.s32.totalorder %s14, 2
    // Predicated region
    $region37: #{tpu_custom_call.1} parent=5 // pred_check
      %p252 = pneg %p251
    $region38: #{tpu_custom_call.1} parent=5 // pred_check_branch
      %254 = sbr.rel (%p252) target = $region40
    $region39: #{tpu_custom_call.1} parent=5 // pred_region
      // Predicated region
      $region41: #{tpu_custom_call.1} parent=39 // pred_check
        %p255 = pneg %p34
      $region42: #{tpu_custom_call.1} parent=39 // pred_check_branch
        %257 = sbr.rel (%p255) target = $region44
      $region43: #{tpu_custom_call.1} parent=39 // pred_region
        %p258 = scmp.lt.s32.totalorder %s14, 1
        %s259 = scalar_select %p258, %s14, 1
        %s260 = smul.addr %s259, 8
        %s261 = smul.addr %s260, 8
        %s262 = scalar_lea.vmem %s0, %s261
      $region44: #{tpu_custom_call.1} parent=39 // pred_fallthru
        _
      // Predicated region
      $region45: #{tpu_custom_call.1} parent=39 // pred_check
        %p263 = pneg %p60
      $region46: #{tpu_custom_call.1} parent=39 // pred_check_branch
        %265 = sbr.rel (%p263) target = $region48
      $region47: #{tpu_custom_call.1} parent=39 // pred_region
        %p266 = scmp.lt.s32.totalorder %s14, 1
        %s267 = scalar_select %p266, %s14, 1
        %s268 = smul.addr %s267, 32
        %s269 = smul.addr %s268, 8
        %s270 = scalar_lea.vmem %s1, %s269
      $region48: #{tpu_custom_call.1} parent=39 // pred_fallthru
        _
    $region40: #{tpu_custom_call.1} parent=5 // pred_fallthru
      _
    %p271 = scmp.le.s32.totalorder 1, %s14
    %p272 = scmp.lt.s32.totalorder %s14, 3
    %p273 = pnand %p271, %p272
    %p274 = pneg %p273
    // Predicated region
    $region49: #{tpu_custom_call.1} parent=5 // pred_check
      _
    $region50: #{tpu_custom_call.1} parent=5 // pred_check_branch
      %276 = sbr.rel (%p273) target = $region52
    $region51: #{tpu_custom_call.1} parent=5 // pred_region
      %s277 = ssub.s32 %s14, 1
      %p278 = scmp.lt.s32.totalorder %s19, 1
      %s279 = scalar_select %p278, %s19, 1
      %s280 = smul.addr %s279, 8
      %s281 = smul.addr %s280, 8
      %s282 = scalar_lea.vmem %s0, %s281
      %p283 = pneg %p40
      %p284 = pneg %p37
      %p285 = scmp.lt.s32.totalorder %s19, 1
      %s286 = scalar_select %p285, %s19, 1
      %s287 = smul.addr %s286, 32
      %s288 = smul.addr %s287, 8
      %s289 = scalar_lea.vmem %s1, %s288
      %p290 = pneg %p66
      %p291 = pneg %p63
      %p292 = pneg %p87
      %p293 = pneg %p84
      %p294 = pneg %p108
      %p295 = pneg %p105
      %p296 = pneg %p129
      %p297 = pneg %p126
      %p298 = pneg %p150
      %p299 = pneg %p147
      %p300 = pneg %p171
      %p301 = pneg %p168
      %p302 = pneg %p192
      %p303 = pneg %p189
      %p304 = pneg %p218
      %p305 = pneg %p215
      %p306 = scmp.lt.s32.totalorder %s19, 1
      %s307 = scalar_select %p306, %s19, 1
      %s308 = smul.addr %s307, 32
      %s309 = smul.addr %s308, 8
      %s310 = scalar_lea.vmem %s8, %s309
      %p311 = scmp.lt.s32.totalorder %s19, 1
      %s312 = scalar_select %p311, %s19, 1
      %s313 = smul.addr %s312, 8
      %s314 = smul.addr %s313, 8
      %s315 = scalar_lea.vmem %s0, %s314
      %p316 = scmp.lt.s32.totalorder %s19, 1
      %s317 = scalar_select %p316, %s19, 1
      %s318 = smul.addr %s317, 32
      %s319 = smul.addr %s318, 8
      %s320 = scalar_lea.vmem %s1, %s319
      %p321 = scmp.lt.s32.totalorder %s19, 1
      %s322 = scalar_select %p321, %s19, 1
      %s323 = smul.addr %s322, 32
      %s324 = smul.addr %s323, 8
      %s325 = scalar_lea.vmem %s8, %s324
      %vm326 = vcmask 130048
      %327 = vst.msk [vmem:[#allocation2] sm:$0xff] %vm326, 0.0
      %328 = vst.msk [vmem:[#allocation2 + $0x8] sm:$0xff] %vm326, 0.0
      %vm329 = vcmask 123904
      %330 = vst.msk [vmem:[#allocation2 + $0x10] sm:$0x3] %vm329, 0.0
      %s331 = scalar_lea.vmem [#allocation2], 408
      %332 = vst.msk [vmem:[%s331] sm:$0xff] %vm326, 0.0
      %333 = vst.msk [vmem:[%s331 + $0x8] sm:$0xff] %vm326, 0.0
      %334 = vst.msk [vmem:[%s331 + $0x10] sm:$0x3] %vm329, 0.0
      %vm335 = vcmask 122880
      %336 = vst.msk [vmem:[#allocation2] sm:$0x1] %vm335, 0.0
      %337 = vst.msk [vmem:[#allocation2 + $0x18] sm:$0x1] %vm335, 0.0
      %338 = vst.msk [vmem:[#allocation2 + $0x30] sm:$0x1] %vm335, 0.0
      %339 = vst.msk [vmem:[#allocation2 + $0x48] sm:$0x1] %vm335, 0.0
      %340 = vst.msk [vmem:[#allocation2 + $0x60] sm:$0x1] %vm335, 0.0
      %341 = vst.msk [vmem:[#allocation2 + $0x78] sm:$0x1] %vm335, 0.0
      %342 = vst.msk [vmem:[#allocation2 + $0x90] sm:$0x1] %vm335, 0.0
      %343 = vst.msk [vmem:[#allocation2 + $0xa8] sm:$0x1] %vm335, 0.0
      %344 = vst.msk [vmem:[#allocation2 + $0xc0] sm:$0x1] %vm335, 0.0
      %345 = vst.msk [vmem:[#allocation2 + $0xd8] sm:$0x1] %vm335, 0.0
      %346 = vst.msk [vmem:[#allocation2 + $0xf0] sm:$0x1] %vm335, 0.0
      %347 = vst.msk [vmem:[#allocation2 + $0x108] sm:$0x1] %vm335, 0.0
      %348 = vst.msk [vmem:[#allocation2 + $0x120] sm:$0x1] %vm335, 0.0
      %349 = vst.msk [vmem:[#allocation2 + $0x138] sm:$0x1] %vm335, 0.0
      %350 = vst.msk [vmem:[#allocation2 + $0x150] sm:$0x1] %vm335, 0.0
      %351 = vst.msk [vmem:[#allocation2 + $0x168] sm:$0x1] %vm335, 0.0
      %352 = vst.msk [vmem:[#allocation2 + $0x180] sm:$0x1] %vm335, 0.0
      %353 = vst.msk [vmem:[#allocation2 + $0x198] sm:$0x1] %vm335, 0.0
      %354 = vst.msk [vmem:[#allocation2 + $0x11] sm:$0x1] %vm335, 0.0
      %355 = vst.msk [vmem:[#allocation2 + $0x29] sm:$0x1] %vm335, 0.0
      %356 = vst.msk [vmem:[#allocation2 + $0x41] sm:$0x1] %vm335, 0.0
      %357 = vst.msk [vmem:[#allocation2 + $0x59] sm:$0x1] %vm335, 0.0
      %358 = vst.msk [vmem:[#allocation2 + $0x71] sm:$0x1] %vm335, 0.0
      %359 = vst.msk [vmem:[#allocation2 + $0x89] sm:$0x1] %vm335, 0.0
      %360 = vst.msk [vmem:[#allocation2 + $0xa1] sm:$0x1] %vm335, 0.0
      %361 = vst.msk [vmem:[#allocation2 + $0xb9] sm:$0x1] %vm335, 0.0
      %362 = vst.msk [vmem:[#allocation2 + $0xd1] sm:$0x1] %vm335, 0.0
      %363 = vst.msk [vmem:[#allocation2 + $0xe9] sm:$0x1] %vm335, 0.0
      %364 = vst.msk [vmem:[#allocation2 + $0x101] sm:$0x1] %vm335, 0.0
      %365 = vst.msk [vmem:[#allocation2 + $0x119] sm:$0x1] %vm335, 0.0
      %366 = vst.msk [vmem:[#allocation2 + $0x131] sm:$0x1] %vm335, 0.0
      %367 = vst.msk [vmem:[#allocation2 + $0x149] sm:$0x1] %vm335, 0.0
      %368 = vst.msk [vmem:[#allocation2 + $0x161] sm:$0x1] %vm335, 0.0
      %369 = vst.msk [vmem:[#allocation2 + $0x179] sm:$0x1] %vm335, 0.0
      %370 = vst.msk [vmem:[#allocation2 + $0x191] sm:$0x1] %vm335, 0.0
      %371 = vst.msk [vmem:[#allocation2 + $0x1a9] sm:$0x1] %vm335, 0.0
      %vm372 = vcmask 64512
      %373 = vst.msk [vmem:[#allocation3] sm:$0xff] %vm372, 0.0
      %374 = vst.msk [vmem:[#allocation3 + $0x8] sm:$0xff] %vm372, 0.0
      %vm375 = vcmask 58368
      %376 = vst.msk [vmem:[#allocation3 + $0x10] sm:$0x3] %vm375, 0.0
      %s377 = scalar_lea.vmem [#allocation3], 408
      %378 = vst.msk [vmem:[%s377] sm:$0xff] %vm372, 0.0
      %379 = vst.msk [vmem:[%s377 + $0x8] sm:$0xff] %vm372, 0.0
      %380 = vst.msk [vmem:[%s377 + $0x10] sm:$0x3] %vm375, 0.0
      %vm381 = vcmask 57344
      %382 = vst.msk [vmem:[#allocation3] sm:$0x1] %vm381, 0.0
      %383 = vst.msk [vmem:[#allocation3 + $0x18] sm:$0x1] %vm381, 0.0
      %384 = vst.msk [vmem:[#allocation3 + $0x30] sm:$0x1] %vm381, 0.0
      %385 = vst.msk [vmem:[#allocation3 + $0x48] sm:$0x1] %vm381, 0.0
      %386 = vst.msk [vmem:[#allocation3 + $0x60] sm:$0x1] %vm381, 0.0
      %387 = vst.msk [vmem:[#allocation3 + $0x78] sm:$0x1] %vm381, 0.0
      %388 = vst.msk [vmem:[#allocation3 + $0x90] sm:$0x1] %vm381, 0.0
      %389 = vst.msk [vmem:[#allocation3 + $0xa8] sm:$0x1] %vm381, 0.0
      %390 = vst.msk [vmem:[#allocation3 + $0xc0] sm:$0x1] %vm381, 0.0
      %391 = vst.msk [vmem:[#allocation3 + $0xd8] sm:$0x1] %vm381, 0.0
      %392 = vst.msk [vmem:[#allocation3 + $0xf0] sm:$0x1] %vm381, 0.0
      %393 = vst.msk [vmem:[#allocation3 + $0x108] sm:$0x1] %vm381, 0.0
      %394 = vst.msk [vmem:[#allocation3 + $0x120] sm:$0x1] %vm381, 0.0
      %395 = vst.msk [vmem:[#allocation3 + $0x138] sm:$0x1] %vm381, 0.0
      %396 = vst.msk [vmem:[#allocation3 + $0x150] sm:$0x1] %vm381, 0.0
      %397 = vst.msk [vmem:[#allocation3 + $0x168] sm:$0x1] %vm381, 0.0
      %398 = vst.msk [vmem:[#allocation3 + $0x180] sm:$0x1] %vm381, 0.0
      %399 = vst.msk [vmem:[#allocation3 + $0x198] sm:$0x1] %vm381, 0.0
      %400 = vst.msk [vmem:[#allocation3 + $0x11] sm:$0x1] %vm381, 0.0
      %401 = vst.msk [vmem:[#allocation3 + $0x29] sm:$0x1] %vm381, 0.0
      %402 = vst.msk [vmem:[#allocation3 + $0x41] sm:$0x1] %vm381, 0.0
      %403 = vst.msk [vmem:[#allocation3 + $0x59] sm:$0x1] %vm381, 0.0
      %404 = vst.msk [vmem:[#allocation3 + $0x71] sm:$0x1] %vm381, 0.0
      %405 = vst.msk [vmem:[#allocation3 + $0x89] sm:$0x1] %vm381, 0.0
      %406 = vst.msk [vmem:[#allocation3 + $0xa1] sm:$0x1] %vm381, 0.0
      %407 = vst.msk [vmem:[#allocation3 + $0xb9] sm:$0x1] %vm381, 0.0
      %408 = vst.msk [vmem:[#allocation3 + $0xd1] sm:$0x1] %vm381, 0.0
      %409 = vst.msk [vmem:[#allocation3 + $0xe9] sm:$0x1] %vm381, 0.0
      %410 = vst.msk [vmem:[#allocation3 + $0x101] sm:$0x1] %vm381, 0.0
      %411 = vst.msk [vmem:[#allocation3 + $0x119] sm:$0x1] %vm381, 0.0
      %412 = vst.msk [vmem:[#allocation3 + $0x131] sm:$0x1] %vm381, 0.0
      %413 = vst.msk [vmem:[#allocation3 + $0x149] sm:$0x1] %vm381, 0.0
      %414 = vst.msk [vmem:[#allocation3 + $0x161] sm:$0x1] %vm381, 0.0
      %415 = vst.msk [vmem:[#allocation3 + $0x179] sm:$0x1] %vm381, 0.0
      %416 = vst.msk [vmem:[#allocation3 + $0x191] sm:$0x1] %vm381, 0.0
      %417 = vst.msk [vmem:[#allocation3 + $0x1a9] sm:$0x1] %vm381, 0.0
      %v418 = vld [vmem:[%s315] sm:$0xff]
      %v419 = vld [vmem:[%s315 + $0x8] sm:$0xff]
      %v420 = vld [vmem:[%s315 + $0x10] sm:$0xff]
      %v421 = vld [vmem:[%s315 + $0x18] sm:$0xff]
      %v422 = vld [vmem:[%s315 + $0x20] sm:$0xff]
      %v423 = vld [vmem:[%s315 + $0x28] sm:$0xff]
      %v424 = vld [vmem:[%s315 + $0x30] sm:$0xff]
      %v425 = vld [vmem:[%s315 + $0x38] sm:$0xff]
      %v426 = vld [vmem:[%s2] sm:$0xff]
      %v427 = vld [vmem:[%s2 + $0x8] sm:$0xff]
      %v428 = vld [vmem:[%s3] sm:$0x1]
      %v430 = vlaneseq
      %v431 = vshrl.u32 %v430, 7
      %v432 = vsub.s32 0, %v431
      %v433 = vrot.slane %v428, %v432
      %v436 = vsel %vm326, %v418, 0
      %v439 = vsel %vm326, %v419, 0
      %v442 = vsel %vm326, %v420, 0
      %v445 = vsel %vm326, %v421, 0
      %v448 = vsel %vm326, %v422, 0
      %v451 = vsel %vm326, %v423, 0
      %v454 = vsel %vm326, %v424, 0
      %v457 = vsel %vm326, %v425, 0
      %459 = vmatprep.subr.mxu0 0.0
      %460 = vmatpush1.msra.mxu0 0.0
      %461 = vmatprep.subr.mxu0 0.0
      %462 = vmatpush1.msra.mxu0 0.0
      %463 = vmatprep.subr.mxu0 0.0
      %464 = vmatpush1.msra.mxu0 0.0
      %465 = vmatprep.subr.mxu0 0.0
      %466 = vmatpush1.msra.mxu0 0.0
      %467 = vmatprep.subr.mxu0 0.0
      %468 = vmatpush1.msra.mxu0 0.0
      %469 = vmatprep.subr.mxu0 0.0
      %470 = vmatpush1.msra.mxu0 0.0
      %471 = vmatprep.subr.mxu0 0.0
      %472 = vmatpush1.msra.mxu0 0.0
      %473 = vmatprep.subr.mxu0 0.0
      %474 = vmatpush1.msra.mxu0 0.0
      %475 = vmatprep.subr.mxu0 0.0
      %476 = vmatpush1.msra.mxu0 0.0
      %477 = vmatprep.subr.mxu0 0.0
      %478 = vmatpush1.msra.mxu0 0.0
      %479 = vmatprep.subr.mxu0 0.0
      %480 = vmatpush1.msra.mxu0 0.0
      %481 = vmatprep.subr.mxu0 0.0
      %482 = vmatpush1.msra.mxu0 0.0
      %483 = vmatprep.subr.mxu0 0.0
      %484 = vmatpush1.msra.mxu0 0.0
      %485 = vmatprep.subr.mxu0 0.0
      %486 = vmatpush1.msra.mxu0 0.0
      %487 = vmatprep.subr.mxu0 0.0
      %488 = vmatpush1.msra.mxu0 %v427
      %489 = vmatprep.subr.mxu0 0.0
      %490 = vmatpush1.msra.mxu0 %v426
      %491 = vmatprep.subr.mxu0 0.0
      %492 = vmatpush2.msra.mxu0 0.0
      %493 = vmatprep.subr.mxu0 0.0
      %494 = vmatpush2.msra.mxu0 0.0
      %495 = vmatprep.subr.mxu0 0.0
      %496 = vmatpush2.msra.mxu0 0.0
      %497 = vmatprep.subr.mxu0 0.0
      %498 = vmatpush2.msra.mxu0 0.0
      %499 = vmatprep.subr.mxu0 0.0
      %500 = vmatpush2.msra.mxu0 0.0
      %501 = vmatprep.subr.mxu0 0.0
      %502 = vmatpush2.msra.mxu0 0.0
      %503 = vmatprep.subr.mxu0 0.0
      %504 = vmatpush2.msra.mxu0 0.0
      %505 = vmatprep.subr.mxu0 0.0
      %506 = vmatpush2.msra.mxu0 0.0
      %507 = vmatprep.subr.mxu0 0.0
      %508 = vmatpush2.msra.mxu0 0.0
      %509 = vmatprep.subr.mxu0 0.0
      %510 = vmatpush2.msra.mxu0 0.0
      %511 = vmatprep.subr.mxu0 0.0
      %512 = vmatpush2.msra.mxu0 0.0
      %513 = vmatprep.subr.mxu0 0.0
      %514 = vmatpush2.msra.mxu0 0.0
      %515 = vmatprep.subr.mxu0 0.0
      %516 = vmatpush2.msra.mxu0 0.0
      %517 = vmatprep.subr.mxu0 0.0
      %518 = vmatpush2.msra.mxu0 0.0
      %519 = vmatprep.subr.mxu0 0.0
      %520 = vmatpush2.msra.mxu0 0.0
      %521 = vmatprep.subr.mxu0 0.0
      %522 = vmatpush2.msra.mxu0 0.0
      %523 = vmatprep.mubr.f32.mxu0 0.0
      %524 = vmatmul.mubr.f32.gmra.mxu0 %v436
      %v525 = vpop.f32.mrf.mxu0
      %v526 = vadd.f32 %v433, %v525
      %v527 = vpop.f32.mrf.mxu0
      %528 = vmatprep.mubr.f32.mxu0 0.0
      %529 = vmatmul.mubr.f32.gmra.mxu0 %v439
      %v530 = vpop.f32.mrf.mxu0
      %v531 = vadd.f32 %v433, %v530
      %v532 = vpop.f32.mrf.mxu0
      %533 = vmatprep.mubr.f32.mxu0 0.0
      %534 = vmatmul.mubr.f32.gmra.mxu0 %v442
      %v535 = vpop.f32.mrf.mxu0
      %v536 = vadd.f32 %v433, %v535
      %v537 = vpop.f32.mrf.mxu0
      %538 = vmatprep.mubr.f32.mxu0 0.0
      %539 = vmatmul.mubr.f32.gmra.mxu0 %v445
      %v540 = vpop.f32.mrf.mxu0
      %v541 = vadd.f32 %v433, %v540
      %v542 = vpop.f32.mrf.mxu0
      %543 = vmatprep.mubr.f32.mxu0 0.0
      %544 = vmatmul.mubr.f32.gmra.mxu0 %v448
      %v545 = vpop.f32.mrf.mxu0
      %v546 = vadd.f32 %v433, %v545
      %v547 = vpop.f32.mrf.mxu0
      %548 = vmatprep.mubr.f32.mxu0 0.0
      %549 = vmatmul.mubr.f32.gmra.mxu0 %v451
      %v550 = vpop.f32.mrf.mxu0
      %v551 = vadd.f32 %v433, %v550
      %v552 = vpop.f32.mrf.mxu0
      %553 = vmatprep.mubr.f32.mxu0 0.0
      %554 = vmatmul.mubr.f32.gmra.mxu0 %v454
      %v555 = vpop.f32.mrf.mxu0
      %v556 = vadd.f32 %v433, %v555
      %v557 = vpop.f32.mrf.mxu0
      %558 = vmatprep.mubr.f32.mxu0 0.0
      %559 = vmatmul.mubr.f32.gmra.mxu0 %v457
      %v560 = vpop.f32.mrf.mxu0
      %v561 = vadd.f32 %v433, %v560
      %v562 = vpop.f32.mrf.mxu0
      %563 = vdwg.mxu0
      %v564 = vlaneseq
      %v565 = vshrl.u32 %v564, 7
      %v566 = vadd.s32 %v565, 8
      %vm567 = vcmp.lt.s32.totalorder %v565, 0
      %v568 = vsub.s32 0, %v565
      %v569 = vsel %vm567, %v568, %v565
      %v570 = vshrl.u32 %v569, 1
      %v571 = vand.u32 %v569, 1
      %v572 = vsub.s32 0, %v571
      %v573 = vsel %vm567, %v572, %v571
      %vm574 = vcmp.lt.s32.totalorder %v566, 0
      %v575 = vsub.s32 0, %v566
      %v576 = vsel %vm574, %v575, %v566
      %v577 = vshrl.u32 %v576, 1
      %v578 = vand.u32 %v576, 1
      %v579 = vsub.s32 0, %v578
      %v580 = vsel %vm574, %v579, %v578
      %vm581 = vcmp.ne.s32.totalorder %v573, 0
      %vm582 = vcmp.ne.s32.totalorder %v580, 0
      %vm583 = vcmp.lt.s32.totalorder %v573, 0
      %vm584 = vcmp.lt.s32.totalorder %v580, 0
      %vm585 = vmand %vm583, %vm581
      %vm586 = vmand %vm584, %vm582
      %v587 = vadd.s32 %v573, 2
      %v588 = vadd.s32 %v580, 2
      %v589 = vsel %vm585, %v587, %v573
      %v590 = vsel %vm586, %v588, %v580
      %vm591 = vcmp.eq.s32.totalorder %v589, 0
      %vm592 = vcmp.eq.s32.totalorder %v590, 0
      %v601 = vcombine.high %v526, %v526
      %v603 = vunpack.c.l.s4 1966171168
      %v604 = vunpack.c.0.s8 %v603
      %v605 = vlaneseq
      %v606 = vshrl.u32 %v605, 7
      %v607 = vsub.s32 %v604, %v606
      %v608 = vrot.slane %v526, %v607
      %v610 = vunpack.c.l.s4 1966171168
      %v611 = vunpack.c.0.s8 %v610
      %v612 = vlaneseq
      %v613 = vshrl.u32 %v612, 7
      %v614 = vsub.s32 %v611, %v613
      %v615 = vrot.slane %v601, %v614
      %v616 = vcombine.high %v608, %v608
      %v617 = vcombine.high %v615, %v615
      %v619 = vunpack.c.l.s4 1966171168
      %v620 = vunpack.c.0.s8 %v619
      %v621 = vlaneseq
      %v622 = vshrl.u32 %v621, 7
      %v623 = vsub.s32 %v620, %v622
      %v624 = vrot.slane %v608, %v623
      %v626 = vunpack.c.l.s4 1966171168
      %v627 = vunpack.c.0.s8 %v626
      %v628 = vlaneseq
      %v629 = vshrl.u32 %v628, 7
      %v630 = vsub.s32 %v627, %v629
      %v631 = vrot.slane %v615, %v630
      %v633 = vunpack.c.l.s4 1966171168
      %v634 = vunpack.c.0.s8 %v633
      %v635 = vlaneseq
      %v636 = vshrl.u32 %v635, 7
      %v637 = vsub.s32 %v634, %v636
      %v638 = vrot.slane %v616, %v637
      %v640 = vunpack.c.l.s4 1966171168
      %v641 = vunpack.c.0.s8 %v640
      %v642 = vlaneseq
      %v643 = vshrl.u32 %v642, 7
      %v644 = vsub.s32 %v641, %v643
      %v645 = vrot.slane %v617, %v644
      %v646 = vcombine.high %v624, %v624
      %v647 = vcombine.high %v631, %v631
      %v648 = vcombine.high %v638, %v638
      %v649 = vcombine.high %v645, %v645
      %v650 = vcombine.high %v531, %v531
      %v652 = vunpack.c.l.s4 1966171168
      %v653 = vunpack.c.0.s8 %v652
      %v654 = vlaneseq
      %v655 = vshrl.u32 %v654, 7
      %v656 = vsub.s32 %v653, %v655
      %v657 = vrot.slane %v531, %v656
      %v659 = vunpack.c.l.s4 1966171168
      %v660 = vunpack.c.0.s8 %v659
      %v661 = vlaneseq
      %v662 = vshrl.u32 %v661, 7
      %v663 = vsub.s32 %v660, %v662
      %v664 = vrot.slane %v650, %v663
      %v665 = vcombine.high %v657, %v657
      %v666 = vcombine.high %v664, %v664
      %v668 = vunpack.c.l.s4 1966171168
      %v669 = vunpack.c.0.s8 %v668
      %v670 = vlaneseq
      %v671 = vshrl.u32 %v670, 7
      %v672 = vsub.s32 %v669, %v671
      %v673 = vrot.slane %v657, %v672
      %v675 = vunpack.c.l.s4 1966171168
      %v676 = vunpack.c.0.s8 %v675
      %v677 = vlaneseq
      %v678 = vshrl.u32 %v677, 7
      %v679 = vsub.s32 %v676, %v678
      %v680 = vrot.slane %v664, %v679
      %v682 = vunpack.c.l.s4 1966171168
      %v683 = vunpack.c.0.s8 %v682
      %v684 = vlaneseq
      %v685 = vshrl.u32 %v684, 7
      %v686 = vsub.s32 %v683, %v685
      %v687 = vrot.slane %v665, %v686
      %v689 = vunpack.c.l.s4 1966171168
      %v690 = vunpack.c.0.s8 %v689
      %v691 = vlaneseq
      %v692 = vshrl.u32 %v691, 7
      %v693 = vsub.s32 %v690, %v692
      %v694 = vrot.slane %v666, %v693
      %v695 = vcombine.high %v673, %v673
      %v696 = vcombine.high %v680, %v680
      %v697 = vcombine.high %v687, %v687
      %v698 = vcombine.high %v694, %v694
      %v699 = vcombine.high %v536, %v536
      %v701 = vunpack.c.l.s4 1966171168
      %v702 = vunpack.c.0.s8 %v701
      %v703 = vlaneseq
      %v704 = vshrl.u32 %v703, 7
      %v705 = vsub.s32 %v702, %v704
      %v706 = vrot.slane %v536, %v705
      %v708 = vunpack.c.l.s4 1966171168
      %v709 = vunpack.c.0.s8 %v708
      %v710 = vlaneseq
      %v711 = vshrl.u32 %v710, 7
      %v712 = vsub.s32 %v709, %v711
      %v713 = vrot.slane %v699, %v712
      %v714 = vcombine.high %v706, %v706
      %v715 = vcombine.high %v713, %v713
      %v717 = vunpack.c.l.s4 1966171168
      %v718 = vunpack.c.0.s8 %v717
      %v719 = vlaneseq
      %v720 = vshrl.u32 %v719, 7
      %v721 = vsub.s32 %v718, %v720
      %v722 = vrot.slane %v706, %v721
      %v724 = vunpack.c.l.s4 1966171168
      %v725 = vunpack.c.0.s8 %v724
      %v726 = vlaneseq
      %v727 = vshrl.u32 %v726, 7
      %v728 = vsub.s32 %v725, %v727
      %v729 = vrot.slane %v713, %v728
      %v731 = vunpack.c.l.s4 1966171168
      %v732 = vunpack.c.0.s8 %v731
      %v733 = vlaneseq
      %v734 = vshrl.u32 %v733, 7
      %v735 = vsub.s32 %v732, %v734
      %v736 = vrot.slane %v714, %v735
      %v738 = vunpack.c.l.s4 1966171168
      %v739 = vunpack.c.0.s8 %v738
      %v740 = vlaneseq
      %v741 = vshrl.u32 %v740, 7
      %v742 = vsub.s32 %v739, %v741
      %v743 = vrot.slane %v715, %v742
      %v744 = vcombine.high %v722, %v722
      %v745 = vcombine.high %v729, %v729
      %v746 = vcombine.high %v736, %v736
      %v747 = vcombine.high %v743, %v743
      %v748 = vcombine.high %v541, %v541
      %v750 = vunpack.c.l.s4 1966171168
      %v751 = vunpack.c.0.s8 %v750
      %v752 = vlaneseq
      %v753 = vshrl.u32 %v752, 7
      %v754 = vsub.s32 %v751, %v753
      %v755 = vrot.slane %v541, %v754
      %v757 = vunpack.c.l.s4 1966171168
      %v758 = vunpack.c.0.s8 %v757
      %v759 = vlaneseq
      %v760 = vshrl.u32 %v759, 7
      %v761 = vsub.s32 %v758, %v760
      %v762 = vrot.slane %v748, %v761
      %v763 = vcombine.high %v755, %v755
      %v764 = vcombine.high %v762, %v762
      %v766 = vunpack.c.l.s4 1966171168
      %v767 = vunpack.c.0.s8 %v766
      %v768 = vlaneseq
      %v769 = vshrl.u32 %v768, 7
      %v770 = vsub.s32 %v767, %v769
      %v771 = vrot.slane %v755, %v770
      %v773 = vunpack.c.l.s4 1966171168
      %v774 = vunpack.c.0.s8 %v773
      %v775 = vlaneseq
      %v776 = vshrl.u32 %v775, 7
      %v777 = vsub.s32 %v774, %v776
      %v778 = vrot.slane %v762, %v777
      %v780 = vunpack.c.l.s4 1966171168
      %v781 = vunpack.c.0.s8 %v780
      %v782 = vlaneseq
      %v783 = vshrl.u32 %v782, 7
      %v784 = vsub.s32 %v781, %v783
      %v785 = vrot.slane %v763, %v784
      %v787 = vunpack.c.l.s4 1966171168
      %v788 = vunpack.c.0.s8 %v787
      %v789 = vlaneseq
      %v790 = vshrl.u32 %v789, 7
      %v791 = vsub.s32 %v788, %v790
      %v792 = vrot.slane %v764, %v791
      %v793 = vcombine.high %v771, %v771
      %v794 = vcombine.high %v778, %v778
      %v795 = vcombine.high %v785, %v785
      %v796 = vcombine.high %v792, %v792
      %v797 = vcombine.high %v546, %v546
      %v799 = vunpack.c.l.s4 1966171168
      %v800 = vunpack.c.0.s8 %v799
      %v801 = vlaneseq
      %v802 = vshrl.u32 %v801, 7
      %v803 = vsub.s32 %v800, %v802
      %v804 = vrot.slane %v546, %v803
      %v806 = vunpack.c.l.s4 1966171168
      %v807 = vunpack.c.0.s8 %v806
      %v808 = vlaneseq
      %v809 = vshrl.u32 %v808, 7
      %v810 = vsub.s32 %v807, %v809
      %v811 = vrot.slane %v797, %v810
      %v812 = vcombine.high %v804, %v804
      %v813 = vcombine.high %v811, %v811
      %v815 = vunpack.c.l.s4 1966171168
      %v816 = vunpack.c.0.s8 %v815
      %v817 = vlaneseq
      %v818 = vshrl.u32 %v817, 7
      %v819 = vsub.s32 %v816, %v818
      %v820 = vrot.slane %v804, %v819
      %v822 = vunpack.c.l.s4 1966171168
      %v823 = vunpack.c.0.s8 %v822
      %v824 = vlaneseq
      %v825 = vshrl.u32 %v824, 7
      %v826 = vsub.s32 %v823, %v825
      %v827 = vrot.slane %v811, %v826
      %v829 = vunpack.c.l.s4 1966171168
      %v830 = vunpack.c.0.s8 %v829
      %v831 = vlaneseq
      %v832 = vshrl.u32 %v831, 7
      %v833 = vsub.s32 %v830, %v832
      %v834 = vrot.slane %v812, %v833
      %v836 = vunpack.c.l.s4 1966171168
      %v837 = vunpack.c.0.s8 %v836
      %v838 = vlaneseq
      %v839 = vshrl.u32 %v838, 7
      %v840 = vsub.s32 %v837, %v839
      %v841 = vrot.slane %v813, %v840
      %v842 = vcombine.high %v820, %v820
      %v843 = vcombine.high %v827, %v827
      %v844 = vcombine.high %v834, %v834
      %v845 = vcombine.high %v841, %v841
      %v846 = vcombine.high %v551, %v551
      %v848 = vunpack.c.l.s4 1966171168
      %v849 = vunpack.c.0.s8 %v848
      %v850 = vlaneseq
      %v851 = vshrl.u32 %v850, 7
      %v852 = vsub.s32 %v849, %v851
      %v853 = vrot.slane %v551, %v852
      %v855 = vunpack.c.l.s4 1966171168
      %v856 = vunpack.c.0.s8 %v855
      %v857 = vlaneseq
      %v858 = vshrl.u32 %v857, 7
      %v859 = vsub.s32 %v856, %v858
      %v860 = vrot.slane %v846, %v859
      %v861 = vcombine.high %v853, %v853
      %v862 = vcombine.high %v860, %v860
      %v864 = vunpack.c.l.s4 1966171168
      %v865 = vunpack.c.0.s8 %v864
      %v866 = vlaneseq
      %v867 = vshrl.u32 %v866, 7
      %v868 = vsub.s32 %v865, %v867
      %v869 = vrot.slane %v853, %v868
      %v871 = vunpack.c.l.s4 1966171168
      %v872 = vunpack.c.0.s8 %v871
      %v873 = vlaneseq
      %v874 = vshrl.u32 %v873, 7
      %v875 = vsub.s32 %v872, %v874
      %v876 = vrot.slane %v860, %v875
      %v878 = vunpack.c.l.s4 1966171168
      %v879 = vunpack.c.0.s8 %v878
      %v880 = vlaneseq
      %v881 = vshrl.u32 %v880, 7
      %v882 = vsub.s32 %v879, %v881
      %v883 = vrot.slane %v861, %v882
      %v885 = vunpack.c.l.s4 1966171168
      %v886 = vunpack.c.0.s8 %v885
      %v887 = vlaneseq
      %v888 = vshrl.u32 %v887, 7
      %v889 = vsub.s32 %v886, %v888
      %v890 = vrot.slane %v862, %v889
      %v891 = vcombine.high %v869, %v869
      %v892 = vcombine.high %v876, %v876
      %v893 = vcombine.high %v883, %v883
      %v894 = vcombine.high %v890, %v890
      %v895 = vcombine.high %v556, %v556
      %v897 = vunpack.c.l.s4 1966171168
      %v898 = vunpack.c.0.s8 %v897
      %v899 = vlaneseq
      %v900 = vshrl.u32 %v899, 7
      %v901 = vsub.s32 %v898, %v900
      %v902 = vrot.slane %v556, %v901
      %v904 = vunpack.c.l.s4 1966171168
      %v905 = vunpack.c.0.s8 %v904
      %v906 = vlaneseq
      %v907 = vshrl.u32 %v906, 7
      %v908 = vsub.s32 %v905, %v907
      %v909 = vrot.slane %v895, %v908
      %v910 = vcombine.high %v902, %v902
      %v911 = vcombine.high %v909, %v909
      %v913 = vunpack.c.l.s4 1966171168
      %v914 = vunpack.c.0.s8 %v913
      %v915 = vlaneseq
      %v916 = vshrl.u32 %v915, 7
      %v917 = vsub.s32 %v914, %v916
      %v918 = vrot.slane %v902, %v917
      %v920 = vunpack.c.l.s4 1966171168
      %v921 = vunpack.c.0.s8 %v920
      %v922 = vlaneseq
      %v923 = vshrl.u32 %v922, 7
      %v924 = vsub.s32 %v921, %v923
      %v925 = vrot.slane %v909, %v924
      %v927 = vunpack.c.l.s4 1966171168
      %v928 = vunpack.c.0.s8 %v927
      %v929 = vlaneseq
      %v930 = vshrl.u32 %v929, 7
      %v931 = vsub.s32 %v928, %v930
      %v932 = vrot.slane %v910, %v931
      %v934 = vunpack.c.l.s4 1966171168
      %v935 = vunpack.c.0.s8 %v934
      %v936 = vlaneseq
      %v937 = vshrl.u32 %v936, 7
      %v938 = vsub.s32 %v935, %v937
      %v939 = vrot.slane %v911, %v938
      %v940 = vcombine.high %v918, %v918
      %v941 = vcombine.high %v925, %v925
      %v942 = vcombine.high %v932, %v932
      %v943 = vcombine.high %v939, %v939
      %v944 = vcombine.high %v561, %v561
      %v946 = vunpack.c.l.s4 1966171168
      %v947 = vunpack.c.0.s8 %v946
      %v948 = vlaneseq
      %v949 = vshrl.u32 %v948, 7
      %v950 = vsub.s32 %v947, %v949
      %v951 = vrot.slane %v561, %v950
      %v953 = vunpack.c.l.s4 1966171168
      %v954 = vunpack.c.0.s8 %v953
      %v955 = vlaneseq
      %v956 = vshrl.u32 %v955, 7
      %v957 = vsub.s32 %v954, %v956
      %v958 = vrot.slane %v944, %v957
      %v959 = vcombine.high %v951, %v951
      %v960 = vcombine.high %v958, %v958
      %v962 = vunpack.c.l.s4 1966171168
      %v963 = vunpack.c.0.s8 %v962
      %v964 = vlaneseq
      %v965 = vshrl.u32 %v964, 7
      %v966 = vsub.s32 %v963, %v965
      %v967 = vrot.slane %v951, %v966
      %v969 = vunpack.c.l.s4 1966171168
      %v970 = vunpack.c.0.s8 %v969
      %v971 = vlaneseq
      %v972 = vshrl.u32 %v971, 7
      %v973 = vsub.s32 %v970, %v972
      %v974 = vrot.slane %v958, %v973
      %v976 = vunpack.c.l.s4 1966171168
      %v977 = vunpack.c.0.s8 %v976
      %v978 = vlaneseq
      %v979 = vshrl.u32 %v978, 7
      %v980 = vsub.s32 %v977, %v979
      %v981 = vrot.slane %v959, %v980
      %v983 = vunpack.c.l.s4 1966171168
      %v984 = vunpack.c.0.s8 %v983
      %v985 = vlaneseq
      %v986 = vshrl.u32 %v985, 7
      %v987 = vsub.s32 %v984, %v986
      %v988 = vrot.slane %v960, %v987
      %v989 = vcombine.high %v967, %v967
      %v990 = vcombine.high %v974, %v974
      %v991 = vcombine.high %v981, %v981
      %v992 = vcombine.high %v988, %v988
      %v993 = vlaneseq
      %v994 = vshrl.u32 %v993, 7
      %v995 = vsub.s32 0, %v994
      %v996 = vrot.slane %v624, %v995
      %v997 = vlaneseq
      %v998 = vshrl.u32 %v997, 7
      %v999 = vsub.s32 0, %v998
      %v1000 = vrot.slane %v638, %v999
      %v1001 = vlaneseq
      %v1002 = vshrl.u32 %v1001, 7
      %v1003 = vsub.s32 0, %v1002
      %v1004 = vrot.slane %v646, %v1003
      %v1005 = vlaneseq
      %v1006 = vshrl.u32 %v1005, 7
      %v1007 = vsub.s32 0, %v1006
      %v1008 = vrot.slane %v648, %v1007
      %v1009 = vlaneseq
      %v1010 = vshrl.u32 %v1009, 7
      %v1011 = vsub.s32 0, %v1010
      %v1012 = vrot.slane %v631, %v1011
      %v1013 = vlaneseq
      %v1014 = vshrl.u32 %v1013, 7
      %v1015 = vsub.s32 0, %v1014
      %v1016 = vrot.slane %v645, %v1015
      %v1017 = vlaneseq
      %v1018 = vshrl.u32 %v1017, 7
      %v1019 = vsub.s32 0, %v1018
      %v1020 = vrot.slane %v647, %v1019
      %v1021 = vlaneseq
      %v1022 = vshrl.u32 %v1021, 7
      %v1023 = vsub.s32 0, %v1022
      %v1024 = vrot.slane %v649, %v1023
      %v1025 = vlaneseq
      %v1026 = vshrl.u32 %v1025, 7
      %v1027 = vsub.s32 0, %v1026
      %v1028 = vrot.slane %v673, %v1027
      %v1029 = vlaneseq
      %v1030 = vshrl.u32 %v1029, 7
      %v1031 = vsub.s32 0, %v1030
      %v1032 = vrot.slane %v687, %v1031
      %v1033 = vlaneseq
      %v1034 = vshrl.u32 %v1033, 7
      %v1035 = vsub.s32 0, %v1034
      %v1036 = vrot.slane %v695, %v1035
      %v1037 = vlaneseq
      %v1038 = vshrl.u32 %v1037, 7
      %v1039 = vsub.s32 0, %v1038
      %v1040 = vrot.slane %v697, %v1039
      %v1041 = vlaneseq
      %v1042 = vshrl.u32 %v1041, 7
      %v1043 = vsub.s32 0, %v1042
      %v1044 = vrot.slane %v680, %v1043
      %v1045 = vlaneseq
      %v1046 = vshrl.u32 %v1045, 7
      %v1047 = vsub.s32 0, %v1046
      %v1048 = vrot.slane %v694, %v1047
      %v1049 = vlaneseq
      %v1050 = vshrl.u32 %v1049, 7
      %v1051 = vsub.s32 0, %v1050
      %v1052 = vrot.slane %v696, %v1051
      %v1053 = vlaneseq
      %v1054 = vshrl.u32 %v1053, 7
      %v1055 = vsub.s32 0, %v1054
      %v1056 = vrot.slane %v698, %v1055
      %v1057 = vlaneseq
      %v1058 = vshrl.u32 %v1057, 7
      %v1059 = vsub.s32 0, %v1058
      %v1060 = vrot.slane %v722, %v1059
      %v1061 = vlaneseq
      %v1062 = vshrl.u32 %v1061, 7
      %v1063 = vsub.s32 0, %v1062
      %v1064 = vrot.slane %v736, %v1063
      %v1065 = vlaneseq
      %v1066 = vshrl.u32 %v1065, 7
      %v1067 = vsub.s32 0, %v1066
      %v1068 = vrot.slane %v744, %v1067
      %v1069 = vlaneseq
      %v1070 = vshrl.u32 %v1069, 7
      %v1071 = vsub.s32 0, %v1070
      %v1072 = vrot.slane %v746, %v1071
      %v1073 = vlaneseq
      %v1074 = vshrl.u32 %v1073, 7
      %v1075 = vsub.s32 0, %v1074
      %v1076 = vrot.slane %v729, %v1075
      %v1077 = vlaneseq
      %v1078 = vshrl.u32 %v1077, 7
      %v1079 = vsub.s32 0, %v1078
      %v1080 = vrot.slane %v743, %v1079
      %v1081 = vlaneseq
      %v1082 = vshrl.u32 %v1081, 7
      %v1083 = vsub.s32 0, %v1082
      %v1084 = vrot.slane %v745, %v1083
      %v1085 = vlaneseq
      %v1086 = vshrl.u32 %v1085, 7
      %v1087 = vsub.s32 0, %v1086
      %v1088 = vrot.slane %v747, %v1087
      %v1089 = vlaneseq
      %v1090 = vshrl.u32 %v1089, 7
      %v1091 = vsub.s32 0, %v1090
      %v1092 = vrot.slane %v771, %v1091
      %v1093 = vlaneseq
      %v1094 = vshrl.u32 %v1093, 7
      %v1095 = vsub.s32 0, %v1094
      %v1096 = vrot.slane %v785, %v1095
      %v1097 = vlaneseq
      %v1098 = vshrl.u32 %v1097, 7
      %v1099 = vsub.s32 0, %v1098
      %v1100 = vrot.slane %v793, %v1099
      %v1101 = vlaneseq
      %v1102 = vshrl.u32 %v1101, 7
      %v1103 = vsub.s32 0, %v1102
      %v1104 = vrot.slane %v795, %v1103
      %v1105 = vlaneseq
      %v1106 = vshrl.u32 %v1105, 7
      %v1107 = vsub.s32 0, %v1106
      %v1108 = vrot.slane %v778, %v1107
      %v1109 = vlaneseq
      %v1110 = vshrl.u32 %v1109, 7
      %v1111 = vsub.s32 0, %v1110
      %v1112 = vrot.slane %v792, %v1111
      %v1113 = vlaneseq
      %v1114 = vshrl.u32 %v1113, 7
      %v1115 = vsub.s32 0, %v1114
      %v1116 = vrot.slane %v794, %v1115
      %v1117 = vlaneseq
      %v1118 = vshrl.u32 %v1117, 7
      %v1119 = vsub.s32 0, %v1118
      %v1120 = vrot.slane %v796, %v1119
      %v1121 = vlaneseq
      %v1122 = vshrl.u32 %v1121, 7
      %v1123 = vsub.s32 0, %v1122
      %v1124 = vrot.slane %v820, %v1123
      %v1125 = vlaneseq
      %v1126 = vshrl.u32 %v1125, 7
      %v1127 = vsub.s32 0, %v1126
      %v1128 = vrot.slane %v834, %v1127
      %v1129 = vlaneseq
      %v1130 = vshrl.u32 %v1129, 7
      %v1131 = vsub.s32 0, %v1130
      %v1132 = vrot.slane %v842, %v1131
      %v1133 = vlaneseq
      %v1134 = vshrl.u32 %v1133, 7
      %v1135 = vsub.s32 0, %v1134
      %v1136 = vrot.slane %v844, %v1135
      %v1137 = vlaneseq
      %v1138 = vshrl.u32 %v1137, 7
      %v1139 = vsub.s32 0, %v1138
      %v1140 = vrot.slane %v827, %v1139
      %v1141 = vlaneseq
      %v1142 = vshrl.u32 %v1141, 7
      %v1143 = vsub.s32 0, %v1142
      %v1144 = vrot.slane %v841, %v1143
      %v1145 = vlaneseq
      %v1146 = vshrl.u32 %v1145, 7
      %v1147 = vsub.s32 0, %v1146
      %v1148 = vrot.slane %v843, %v1147
      %v1149 = vlaneseq
      %v1150 = vshrl.u32 %v1149, 7
      %v1151 = vsub.s32 0, %v1150
      %v1152 = vrot.slane %v845, %v1151
      %v1153 = vlaneseq
      %v1154 = vshrl.u32 %v1153, 7
      %v1155 = vsub.s32 0, %v1154
      %v1156 = vrot.slane %v869, %v1155
      %v1157 = vlaneseq
      %v1158 = vshrl.u32 %v1157, 7
      %v1159 = vsub.s32 0, %v1158
      %v1160 = vrot.slane %v883, %v1159
      %v1161 = vlaneseq
      %v1162 = vshrl.u32 %v1161, 7
      %v1163 = vsub.s32 0, %v1162
      %v1164 = vrot.slane %v891, %v1163
      %v1165 = vlaneseq
      %v1166 = vshrl.u32 %v1165, 7
      %v1167 = vsub.s32 0, %v1166
      %v1168 = vrot.slane %v893, %v1167
      %v1169 = vlaneseq
      %v1170 = vshrl.u32 %v1169, 7
      %v1171 = vsub.s32 0, %v1170
      %v1172 = vrot.slane %v876, %v1171
      %v1173 = vlaneseq
      %v1174 = vshrl.u32 %v1173, 7
      %v1175 = vsub.s32 0, %v1174
      %v1176 = vrot.slane %v890, %v1175
      %v1177 = vlaneseq
      %v1178 = vshrl.u32 %v1177, 7
      %v1179 = vsub.s32 0, %v1178
      %v1180 = vrot.slane %v892, %v1179
      %v1181 = vlaneseq
      %v1182 = vshrl.u32 %v1181, 7
      %v1183 = vsub.s32 0, %v1182
      %v1184 = vrot.slane %v894, %v1183
      %v1185 = vlaneseq
      %v1186 = vshrl.u32 %v1185, 7
      %v1187 = vsub.s32 0, %v1186
      %v1188 = vrot.slane %v918, %v1187
      %v1189 = vlaneseq
      %v1190 = vshrl.u32 %v1189, 7
      %v1191 = vsub.s32 0, %v1190
      %v1192 = vrot.slane %v932, %v1191
      %v1193 = vlaneseq
      %v1194 = vshrl.u32 %v1193, 7
      %v1195 = vsub.s32 0, %v1194
      %v1196 = vrot.slane %v940, %v1195
      %v1197 = vlaneseq
      %v1198 = vshrl.u32 %v1197, 7
      %v1199 = vsub.s32 0, %v1198
      %v1200 = vrot.slane %v942, %v1199
      %v1201 = vlaneseq
      %v1202 = vshrl.u32 %v1201, 7
      %v1203 = vsub.s32 0, %v1202
      %v1204 = vrot.slane %v925, %v1203
      %v1205 = vlaneseq
      %v1206 = vshrl.u32 %v1205, 7
      %v1207 = vsub.s32 0, %v1206
      %v1208 = vrot.slane %v939, %v1207
      %v1209 = vlaneseq
      %v1210 = vshrl.u32 %v1209, 7
      %v1211 = vsub.s32 0, %v1210
      %v1212 = vrot.slane %v941, %v1211
      %v1213 = vlaneseq
      %v1214 = vshrl.u32 %v1213, 7
      %v1215 = vsub.s32 0, %v1214
      %v1216 = vrot.slane %v943, %v1215
      %v1217 = vlaneseq
      %v1218 = vshrl.u32 %v1217, 7
      %v1219 = vsub.s32 0, %v1218
      %v1220 = vrot.slane %v967, %v1219
      %v1221 = vlaneseq
      %v1222 = vshrl.u32 %v1221, 7
      %v1223 = vsub.s32 0, %v1222
      %v1224 = vrot.slane %v981, %v1223
      %v1225 = vlaneseq
      %v1226 = vshrl.u32 %v1225, 7
      %v1227 = vsub.s32 0, %v1226
      %v1228 = vrot.slane %v989, %v1227
      %v1229 = vlaneseq
      %v1230 = vshrl.u32 %v1229, 7
      %v1231 = vsub.s32 0, %v1230
      %v1232 = vrot.slane %v991, %v1231
      %v1233 = vlaneseq
      %v1234 = vshrl.u32 %v1233, 7
      %v1235 = vsub.s32 0, %v1234
      %v1236 = vrot.slane %v974, %v1235
      %v1237 = vlaneseq
      %v1238 = vshrl.u32 %v1237, 7
      %v1239 = vsub.s32 0, %v1238
      %v1240 = vrot.slane %v988, %v1239
      %v1241 = vlaneseq
      %v1242 = vshrl.u32 %v1241, 7
      %v1243 = vsub.s32 0, %v1242
      %v1244 = vrot.slane %v990, %v1243
      %v1245 = vlaneseq
      %v1246 = vshrl.u32 %v1245, 7
      %v1247 = vsub.s32 0, %v1246
      %v1248 = vrot.slane %v992, %v1247
      %v1249 = vcombine.low %v996, %v1000
      %v1250 = vcombine.low %v1004, %v1008
      %v1252 = vunpack.c.l.s4 1983009808
      %v1253 = vunpack.c.0.s8 %v1252
      %v1254 = vlaneseq
      %v1255 = vshrl.u32 %v1254, 7
      %v1256 = vsub.s32 %v1253, %v1255
      %v1257 = vrot.slane %v1249, %v1256
      %v1259 = vunpack.c.l.s4 1983009808
      %v1260 = vunpack.c.0.s8 %v1259
      %v1261 = vlaneseq
      %v1262 = vshrl.u32 %v1261, 7
      %v1263 = vsub.s32 %v1260, %v1262
      %v1264 = vrot.slane %v1250, %v1263
      %v1265 = vcombine.low %v1257, %v1264
      %v1266 = vcombine.low %v1012, %v1016
      %v1267 = vcombine.low %v1020, %v1024
      %v1269 = vunpack.c.l.s4 1983009808
      %v1270 = vunpack.c.0.s8 %v1269
      %v1271 = vlaneseq
      %v1272 = vshrl.u32 %v1271, 7
      %v1273 = vsub.s32 %v1270, %v1272
      %v1274 = vrot.slane %v1266, %v1273
      %v1276 = vunpack.c.l.s4 1983009808
      %v1277 = vunpack.c.0.s8 %v1276
      %v1278 = vlaneseq
      %v1279 = vshrl.u32 %v1278, 7
      %v1280 = vsub.s32 %v1277, %v1279
      %v1281 = vrot.slane %v1267, %v1280
      %v1282 = vcombine.low %v1274, %v1281
      %v1283 = vcombine.low %v1028, %v1032
      %v1284 = vcombine.low %v1036, %v1040
      %v1286 = vunpack.c.l.s4 1983009808
      %v1287 = vunpack.c.0.s8 %v1286
      %v1288 = vlaneseq
      %v1289 = vshrl.u32 %v1288, 7
      %v1290 = vsub.s32 %v1287, %v1289
      %v1291 = vrot.slane %v1283, %v1290
      %v1293 = vunpack.c.l.s4 1983009808
      %v1294 = vunpack.c.0.s8 %v1293
      %v1295 = vlaneseq
      %v1296 = vshrl.u32 %v1295, 7
      %v1297 = vsub.s32 %v1294, %v1296
      %v1298 = vrot.slane %v1284, %v1297
      %v1299 = vcombine.low %v1291, %v1298
      %v1300 = vcombine.low %v1044, %v1048
      %v1301 = vcombine.low %v1052, %v1056
      %v1303 = vunpack.c.l.s4 1983009808
      %v1304 = vunpack.c.0.s8 %v1303
      %v1305 = vlaneseq
      %v1306 = vshrl.u32 %v1305, 7
      %v1307 = vsub.s32 %v1304, %v1306
      %v1308 = vrot.slane %v1300, %v1307
      %v1310 = vunpack.c.l.s4 1983009808
      %v1311 = vunpack.c.0.s8 %v1310
      %v1312 = vlaneseq
      %v1313 = vshrl.u32 %v1312, 7
      %v1314 = vsub.s32 %v1311, %v1313
      %v1315 = vrot.slane %v1301, %v1314
      %v1316 = vcombine.low %v1308, %v1315
      %v1317 = vcombine.low %v1060, %v1064
      %v1318 = vcombine.low %v1068, %v1072
      %v1320 = vunpack.c.l.s4 1983009808
      %v1321 = vunpack.c.0.s8 %v1320
      %v1322 = vlaneseq
      %v1323 = vshrl.u32 %v1322, 7
      %v1324 = vsub.s32 %v1321, %v1323
      %v1325 = vrot.slane %v1317, %v1324
      %v1327 = vunpack.c.l.s4 1983009808
      %v1328 = vunpack.c.0.s8 %v1327
      %v1329 = vlaneseq
      %v1330 = vshrl.u32 %v1329, 7
      %v1331 = vsub.s32 %v1328, %v1330
      %v1332 = vrot.slane %v1318, %v1331
      %v1333 = vcombine.low %v1325, %v1332
      %v1334 = vcombine.low %v1076, %v1080
      %v1335 = vcombine.low %v1084, %v1088
      %v1337 = vunpack.c.l.s4 1983009808
      %v1338 = vunpack.c.0.s8 %v1337
      %v1339 = vlaneseq
      %v1340 = vshrl.u32 %v1339, 7
      %v1341 = vsub.s32 %v1338, %v1340
      %v1342 = vrot.slane %v1334, %v1341
      %v1344 = vunpack.c.l.s4 1983009808
      %v1345 = vunpack.c.0.s8 %v1344
      %v1346 = vlaneseq
      %v1347 = vshrl.u32 %v1346, 7
      %v1348 = vsub.s32 %v1345, %v1347
      %v1349 = vrot.slane %v1335, %v1348
      %v1350 = vcombine.low %v1342, %v1349
      %v1351 = vcombine.low %v1092, %v1096
      %v1352 = vcombine.low %v1100, %v1104
      %v1354 = vunpack.c.l.s4 1983009808
      %v1355 = vunpack.c.0.s8 %v1354
      %v1356 = vlaneseq
      %v1357 = vshrl.u32 %v1356, 7
      %v1358 = vsub.s32 %v1355, %v1357
      %v1359 = vrot.slane %v1351, %v1358
      %v1361 = vunpack.c.l.s4 1983009808
      %v1362 = vunpack.c.0.s8 %v1361
      %v1363 = vlaneseq
      %v1364 = vshrl.u32 %v1363, 7
      %v1365 = vsub.s32 %v1362, %v1364
      %v1366 = vrot.slane %v1352, %v1365
      %v1367 = vcombine.low %v1359, %v1366
      %v1368 = vcombine.low %v1108, %v1112
      %v1369 = vcombine.low %v1116, %v1120
      %v1371 = vunpack.c.l.s4 1983009808
      %v1372 = vunpack.c.0.s8 %v1371
      %v1373 = vlaneseq
      %v1374 = vshrl.u32 %v1373, 7
      %v1375 = vsub.s32 %v1372, %v1374
      %v1376 = vrot.slane %v1368, %v1375
      %v1378 = vunpack.c.l.s4 1983009808
      %v1379 = vunpack.c.0.s8 %v1378
      %v1380 = vlaneseq
      %v1381 = vshrl.u32 %v1380, 7
      %v1382 = vsub.s32 %v1379, %v1381
      %v1383 = vrot.slane %v1369, %v1382
      %v1384 = vcombine.low %v1376, %v1383
      %v1385 = vcombine.low %v1124, %v1128
      %v1386 = vcombine.low %v1132, %v1136
      %v1388 = vunpack.c.l.s4 1983009808
      %v1389 = vunpack.c.0.s8 %v1388
      %v1390 = vlaneseq
      %v1391 = vshrl.u32 %v1390, 7
      %v1392 = vsub.s32 %v1389, %v1391
      %v1393 = vrot.slane %v1385, %v1392
      %v1395 = vunpack.c.l.s4 1983009808
      %v1396 = vunpack.c.0.s8 %v1395
      %v1397 = vlaneseq
      %v1398 = vshrl.u32 %v1397, 7
      %v1399 = vsub.s32 %v1396, %v1398
      %v1400 = vrot.slane %v1386, %v1399
      %v1401 = vcombine.low %v1393, %v1400
      %v1402 = vcombine.low %v1140, %v1144
      %v1403 = vcombine.low %v1148, %v1152
      %v1405 = vunpack.c.l.s4 1983009808
      %v1406 = vunpack.c.0.s8 %v1405
      %v1407 = vlaneseq
      %v1408 = vshrl.u32 %v1407, 7
      %v1409 = vsub.s32 %v1406, %v1408
      %v1410 = vrot.slane %v1402, %v1409
      %v1412 = vunpack.c.l.s4 1983009808
      %v1413 = vunpack.c.0.s8 %v1412
      %v1414 = vlaneseq
      %v1415 = vshrl.u32 %v1414, 7
      %v1416 = vsub.s32 %v1413, %v1415
      %v1417 = vrot.slane %v1403, %v1416
      %v1418 = vcombine.low %v1410, %v1417
      %v1419 = vcombine.low %v1156, %v1160
      %v1420 = vcombine.low %v1164, %v1168
      %v1422 = vunpack.c.l.s4 1983009808
      %v1423 = vunpack.c.0.s8 %v1422
      %v1424 = vlaneseq
      %v1425 = vshrl.u32 %v1424, 7
      %v1426 = vsub.s32 %v1423, %v1425
      %v1427 = vrot.slane %v1419, %v1426
      %v1429 = vunpack.c.l.s4 1983009808
      %v1430 = vunpack.c.0.s8 %v1429
      %v1431 = vlaneseq
      %v1432 = vshrl.u32 %v1431, 7
      %v1433 = vsub.s32 %v1430, %v1432
      %v1434 = vrot.slane %v1420, %v1433
      %v1435 = vcombine.low %v1427, %v1434
      %v1436 = vcombine.low %v1172, %v1176
      %v1437 = vcombine.low %v1180, %v1184
      %v1439 = vunpack.c.l.s4 1983009808
      %v1440 = vunpack.c.0.s8 %v1439
      %v1441 = vlaneseq
      %v1442 = vshrl.u32 %v1441, 7
      %v1443 = vsub.s32 %v1440, %v1442
      %v1444 = vrot.slane %v1436, %v1443
      %v1446 = vunpack.c.l.s4 1983009808
      %v1447 = vunpack.c.0.s8 %v1446
      %v1448 = vlaneseq
      %v1449 = vshrl.u32 %v1448, 7
      %v1450 = vsub.s32 %v1447, %v1449
      %v1451 = vrot.slane %v1437, %v1450
      %v1452 = vcombine.low %v1444, %v1451
      %v1453 = vcombine.low %v1188, %v1192
      %v1454 = vcombine.low %v1196, %v1200
      %v1456 = vunpack.c.l.s4 1983009808
      %v1457 = vunpack.c.0.s8 %v1456
      %v1458 = vlaneseq
      %v1459 = vshrl.u32 %v1458, 7
      %v1460 = vsub.s32 %v1457, %v1459
      %v1461 = vrot.slane %v1453, %v1460
      %v1463 = vunpack.c.l.s4 1983009808
      %v1464 = vunpack.c.0.s8 %v1463
      %v1465 = vlaneseq
      %v1466 = vshrl.u32 %v1465, 7
      %v1467 = vsub.s32 %v1464, %v1466
      %v1468 = vrot.slane %v1454, %v1467
      %v1469 = vcombine.low %v1461, %v1468
      %v1470 = vcombine.low %v1204, %v1208
      %v1471 = vcombine.low %v1212, %v1216
      %v1473 = vunpack.c.l.s4 1983009808
      %v1474 = vunpack.c.0.s8 %v1473
      %v1475 = vlaneseq
      %v1476 = vshrl.u32 %v1475, 7
      %v1477 = vsub.s32 %v1474, %v1476
      %v1478 = vrot.slane %v1470, %v1477
      %v1480 = vunpack.c.l.s4 1983009808
      %v1481 = vunpack.c.0.s8 %v1480
      %v1482 = vlaneseq
      %v1483 = vshrl.u32 %v1482, 7
      %v1484 = vsub.s32 %v1481, %v1483
      %v1485 = vrot.slane %v1471, %v1484
      %v1486 = vcombine.low %v1478, %v1485
      %v1487 = vcombine.low %v1220, %v1224
      %v1488 = vcombine.low %v1228, %v1232
      %v1490 = vunpack.c.l.s4 1983009808
      %v1491 = vunpack.c.0.s8 %v1490
      %v1492 = vlaneseq
      %v1493 = vshrl.u32 %v1492, 7
      %v1494 = vsub.s32 %v1491, %v1493
      %v1495 = vrot.slane %v1487, %v1494
      %v1497 = vunpack.c.l.s4 1983009808
      %v1498 = vunpack.c.0.s8 %v1497
      %v1499 = vlaneseq
      %v1500 = vshrl.u32 %v1499, 7
      %v1501 = vsub.s32 %v1498, %v1500
      %v1502 = vrot.slane %v1488, %v1501
      %v1503 = vcombine.low %v1495, %v1502
      %v1504 = vcombine.low %v1236, %v1240
      %v1505 = vcombine.low %v1244, %v1248
      %v1507 = vunpack.c.l.s4 1983009808
      %v1508 = vunpack.c.0.s8 %v1507
      %v1509 = vlaneseq
      %v1510 = vshrl.u32 %v1509, 7
      %v1511 = vsub.s32 %v1508, %v1510
      %v1512 = vrot.slane %v1504, %v1511
      %v1514 = vunpack.c.l.s4 1983009808
      %v1515 = vunpack.c.0.s8 %v1514
      %v1516 = vlaneseq
      %v1517 = vshrl.u32 %v1516, 7
      %v1518 = vsub.s32 %v1515, %v1517
      %v1519 = vrot.slane %v1505, %v1518
      %v1520 = vcombine.low %v1512, %v1519
      %1537 = vrot.lane.b32.xlu0 %v1265, 120
      %v1538 = vpop.permute.xlu0 %1537
      %1539 = vrot.lane.b32.xlu0 %v1282, 120
      %v1540 = vpop.permute.xlu0 %1539
      %1541 = vrot.lane.b32.xlu0 %v1299, 120
      %v1542 = vpop.permute.xlu0 %1541
      %1543 = vrot.lane.b32.xlu0 %v1316, 120
      %v1544 = vpop.permute.xlu0 %1543
      %1545 = vrot.lane.b32.xlu0 %v1333, 120
      %v1546 = vpop.permute.xlu0 %1545
      %1547 = vrot.lane.b32.xlu0 %v1350, 120
      %v1548 = vpop.permute.xlu0 %1547
      %1549 = vrot.lane.b32.xlu0 %v1367, 120
      %v1550 = vpop.permute.xlu0 %1549
      %1551 = vrot.lane.b32.xlu0 %v1384, 120
      %v1552 = vpop.permute.xlu0 %1551
      %1553 = vrot.lane.b32.xlu0 %v1401, 120
      %v1554 = vpop.permute.xlu0 %1553
      %1555 = vrot.lane.b32.xlu0 %v1418, 120
      %v1556 = vpop.permute.xlu0 %1555
      %1557 = vrot.lane.b32.xlu0 %v1435, 120
      %v1558 = vpop.permute.xlu0 %1557
      %1559 = vrot.lane.b32.xlu0 %v1452, 120
      %v1560 = vpop.permute.xlu0 %1559
      %1561 = vrot.lane.b32.xlu0 %v1469, 120
      %v1562 = vpop.permute.xlu0 %1561
      %1563 = vrot.lane.b32.xlu0 %v1486, 120
      %v1564 = vpop.permute.xlu0 %1563
      %1565 = vrot.lane.b32.xlu0 %v1503, 120
      %v1566 = vpop.permute.xlu0 %1565
      %1567 = vrot.lane.b32.xlu0 %v1520, 120
      %v1568 = vpop.permute.xlu0 %1567
      %v1585 = vsel %vm591, %v1265, %v1538
      %v1586 = vsel %vm592, %v1282, %v1540
      %v1587 = vsel %vm591, %v1299, %v1542
      %v1588 = vsel %vm592, %v1316, %v1544
      %v1589 = vsel %vm591, %v1333, %v1546
      %v1590 = vsel %vm592, %v1350, %v1548
      %v1591 = vsel %vm591, %v1367, %v1550
      %v1592 = vsel %vm592, %v1384, %v1552
      %v1593 = vsel %vm591, %v1401, %v1554
      %v1594 = vsel %vm592, %v1418, %v1556
      %v1595 = vsel %vm591, %v1435, %v1558
      %v1596 = vsel %vm592, %v1452, %v1560
      %v1597 = vsel %vm591, %v1469, %v1562
      %v1598 = vsel %vm592, %v1486, %v1564
      %v1599 = vsel %vm591, %v1503, %v1566
      %v1600 = vsel %vm592, %v1520, %v1568
      %1601 = vrot.lane.b32.xlu0 %v1265, 112
      %v1602 = vpop.permute.xlu0 %1601
      %1603 = vrot.lane.b32.xlu0 %v1282, 112
      %v1604 = vpop.permute.xlu0 %1603
      %1605 = vrot.lane.b32.xlu0 %v1299, 112
      %v1606 = vpop.permute.xlu0 %1605
      %1607 = vrot.lane.b32.xlu0 %v1316, 112
      %v1608 = vpop.permute.xlu0 %1607
      %1609 = vrot.lane.b32.xlu0 %v1333, 112
      %v1610 = vpop.permute.xlu0 %1609
      %1611 = vrot.lane.b32.xlu0 %v1350, 112
      %v1612 = vpop.permute.xlu0 %1611
      %1613 = vrot.lane.b32.xlu0 %v1367, 112
      %v1614 = vpop.permute.xlu0 %1613
      %1615 = vrot.lane.b32.xlu0 %v1384, 112
      %v1616 = vpop.permute.xlu0 %1615
      %1617 = vrot.lane.b32.xlu0 %v1401, 112
      %v1618 = vpop.permute.xlu0 %1617
      %1619 = vrot.lane.b32.xlu0 %v1418, 112
      %v1620 = vpop.permute.xlu0 %1619
      %1621 = vrot.lane.b32.xlu0 %v1435, 112
      %v1622 = vpop.permute.xlu0 %1621
      %1623 = vrot.lane.b32.xlu0 %v1452, 112
      %v1624 = vpop.permute.xlu0 %1623
      %1625 = vrot.lane.b32.xlu0 %v1469, 112
      %v1626 = vpop.permute.xlu0 %1625
      %1627 = vrot.lane.b32.xlu0 %v1486, 112
      %v1628 = vpop.permute.xlu0 %1627
      %1629 = vrot.lane.b32.xlu0 %v1503, 112
      %v1630 = vpop.permute.xlu0 %1629
      %1631 = vrot.lane.b32.xlu0 %v1520, 112
      %v1632 = vpop.permute.xlu0 %1631
      %1649 = vrot.lane.b32.xlu0 %v1265, 104
      %v1650 = vpop.permute.xlu0 %1649
      %1651 = vrot.lane.b32.xlu0 %v1282, 104
      %v1652 = vpop.permute.xlu0 %1651
      %1653 = vrot.lane.b32.xlu0 %v1299, 104
      %v1654 = vpop.permute.xlu0 %1653
      %1655 = vrot.lane.b32.xlu0 %v1316, 104
      %v1656 = vpop.permute.xlu0 %1655
      %1657 = vrot.lane.b32.xlu0 %v1333, 104
      %v1658 = vpop.permute.xlu0 %1657
      %1659 = vrot.lane.b32.xlu0 %v1350, 104
      %v1660 = vpop.permute.xlu0 %1659
      %1661 = vrot.lane.b32.xlu0 %v1367, 104
      %v1662 = vpop.permute.xlu0 %1661
      %1663 = vrot.lane.b32.xlu0 %v1384, 104
      %v1664 = vpop.permute.xlu0 %1663
      %1665 = vrot.lane.b32.xlu0 %v1401, 104
      %v1666 = vpop.permute.xlu0 %1665
      %1667 = vrot.lane.b32.xlu0 %v1418, 104
      %v1668 = vpop.permute.xlu0 %1667
      %1669 = vrot.lane.b32.xlu0 %v1435, 104
      %v1670 = vpop.permute.xlu0 %1669
      %1671 = vrot.lane.b32.xlu0 %v1452, 104
      %v1672 = vpop.permute.xlu0 %1671
      %1673 = vrot.lane.b32.xlu0 %v1469, 104
      %v1674 = vpop.permute.xlu0 %1673
      %1675 = vrot.lane.b32.xlu0 %v1486, 104
      %v1676 = vpop.permute.xlu0 %1675
      %1677 = vrot.lane.b32.xlu0 %v1503, 104
      %v1678 = vpop.permute.xlu0 %1677
      %1679 = vrot.lane.b32.xlu0 %v1520, 104
      %v1680 = vpop.permute.xlu0 %1679
      %v1697 = vsel %vm591, %v1602, %v1650
      %v1698 = vsel %vm592, %v1604, %v1652
      %v1699 = vsel %vm591, %v1606, %v1654
      %v1700 = vsel %vm592, %v1608, %v1656
      %v1701 = vsel %vm591, %v1610, %v1658
      %v1702 = vsel %vm592, %v1612, %v1660
      %v1703 = vsel %vm591, %v1614, %v1662
      %v1704 = vsel %vm592, %v1616, %v1664
      %v1705 = vsel %vm591, %v1618, %v1666
      %v1706 = vsel %vm592, %v1620, %v1668
      %v1707 = vsel %vm591, %v1622, %v1670
      %v1708 = vsel %vm592, %v1624, %v1672
      %v1709 = vsel %vm591, %v1626, %v1674
      %v1710 = vsel %vm592, %v1628, %v1676
      %v1711 = vsel %vm591, %v1630, %v1678
      %v1712 = vsel %vm592, %v1632, %v1680
      %v1713 = vld [vmem:[%s320] sm:$0xff]
      %v1714 = vld [vmem:[%s320 + $0x8] sm:$0xff]
      %v1715 = vld [vmem:[%s320 + $0x10] sm:$0xff]
      %v1716 = vld [vmem:[%s320 + $0x18] sm:$0xff]
      %v1717 = vld [vmem:[%s320 + $0x20] sm:$0xff]
      %v1718 = vld [vmem:[%s320 + $0x28] sm:$0xff]
      %v1719 = vld [vmem:[%s320 + $0x30] sm:$0xff]
      %v1720 = vld [vmem:[%s320 + $0x38] sm:$0xff]
      %v1721 = vld [vmem:[%s320 + $0x40] sm:$0xff]
      %v1722 = vld [vmem:[%s320 + $0x48] sm:$0xff]
      %v1723 = vld [vmem:[%s320 + $0x50] sm:$0xff]
      %v1724 = vld [vmem:[%s320 + $0x58] sm:$0xff]
      %v1725 = vld [vmem:[%s320 + $0x60] sm:$0xff]
      %v1726 = vld [vmem:[%s320 + $0x68] sm:$0xff]
      %v1727 = vld [vmem:[%s320 + $0x70] sm:$0xff]
      %v1728 = vld [vmem:[%s320 + $0x78] sm:$0xff]
      %v1729 = vld [vmem:[%s320 + $0x80] sm:$0xff]
      %v1730 = vld [vmem:[%s320 + $0x88] sm:$0xff]
      %v1731 = vld [vmem:[%s320 + $0x90] sm:$0xff]
      %v1732 = vld [vmem:[%s320 + $0x98] sm:$0xff]
      %v1733 = vld [vmem:[%s320 + $0xa0] sm:$0xff]
      %v1734 = vld [vmem:[%s320 + $0xa8] sm:$0xff]
      %v1735 = vld [vmem:[%s320 + $0xb0] sm:$0xff]
      %v1736 = vld [vmem:[%s320 + $0xb8] sm:$0xff]
      %v1737 = vld [vmem:[%s320 + $0xc0] sm:$0xff]
      %v1738 = vld [vmem:[%s320 + $0xc8] sm:$0xff]
      %v1739 = vld [vmem:[%s320 + $0xd0] sm:$0xff]
      %v1740 = vld [vmem:[%s320 + $0xd8] sm:$0xff]
      %v1741 = vld [vmem:[%s320 + $0xe0] sm:$0xff]
      %v1742 = vld [vmem:[%s320 + $0xe8] sm:$0xff]
      %v1743 = vld [vmem:[%s320 + $0xf0] sm:$0xff]
      %v1744 = vld [vmem:[%s320 + $0xf8] sm:$0xff]
      %1777 = vrot.lane.b32.xlu0 %v1713, 8
      %v1778 = vpop.permute.xlu0 %1777
      %1779 = vrot.lane.b32.xlu0 %v1714, 8
      %v1780 = vpop.permute.xlu0 %1779
      %1781 = vrot.lane.b32.xlu0 %v1715, 8
      %v1782 = vpop.permute.xlu0 %1781
      %1783 = vrot.lane.b32.xlu0 %v1716, 8
      %v1784 = vpop.permute.xlu0 %1783
      %1785 = vrot.lane.b32.xlu0 %v1717, 8
      %v1786 = vpop.permute.xlu0 %1785
      %1787 = vrot.lane.b32.xlu0 %v1718, 8
      %v1788 = vpop.permute.xlu0 %1787
      %1789 = vrot.lane.b32.xlu0 %v1719, 8
      %v1790 = vpop.permute.xlu0 %1789
      %1791 = vrot.lane.b32.xlu0 %v1720, 8
      %v1792 = vpop.permute.xlu0 %1791
      %1793 = vrot.lane.b32.xlu0 %v1721, 8
      %v1794 = vpop.permute.xlu0 %1793
      %1795 = vrot.lane.b32.xlu0 %v1722, 8
      %v1796 = vpop.permute.xlu0 %1795
      %1797 = vrot.lane.b32.xlu0 %v1723, 8
      %v1798 = vpop.permute.xlu0 %1797
      %1799 = vrot.lane.b32.xlu0 %v1724, 8
      %v1800 = vpop.permute.xlu0 %1799
      %1801 = vrot.lane.b32.xlu0 %v1725, 8
      %v1802 = vpop.permute.xlu0 %1801
      %1803 = vrot.lane.b32.xlu0 %v1726, 8
      %v1804 = vpop.permute.xlu0 %1803
      %1805 = vrot.lane.b32.xlu0 %v1727, 8
      %v1806 = vpop.permute.xlu0 %1805
      %1807 = vrot.lane.b32.xlu0 %v1728, 8
      %v1808 = vpop.permute.xlu0 %1807
      %1809 = vrot.lane.b32.xlu0 %v1729, 8
      %v1810 = vpop.permute.xlu0 %1809
      %1811 = vrot.lane.b32.xlu0 %v1730, 8
      %v1812 = vpop.permute.xlu0 %1811
      %1813 = vrot.lane.b32.xlu0 %v1731, 8
      %v1814 = vpop.permute.xlu0 %1813
      %1815 = vrot.lane.b32.xlu0 %v1732, 8
      %v1816 = vpop.permute.xlu0 %1815
      %1817 = vrot.lane.b32.xlu0 %v1733, 8
      %v1818 = vpop.permute.xlu0 %1817
      %1819 = vrot.lane.b32.xlu0 %v1734, 8
      %v1820 = vpop.permute.xlu0 %1819
      %1821 = vrot.lane.b32.xlu0 %v1735, 8
      %v1822 = vpop.permute.xlu0 %1821
      %1823 = vrot.lane.b32.xlu0 %v1736, 8
      %v1824 = vpop.permute.xlu0 %1823
      %1825 = vrot.lane.b32.xlu0 %v1737, 8
      %v1826 = vpop.permute.xlu0 %1825
      %1827 = vrot.lane.b32.xlu0 %v1738, 8
      %v1828 = vpop.permute.xlu0 %1827
      %1829 = vrot.lane.b32.xlu0 %v1739, 8
      %v1830 = vpop.permute.xlu0 %1829
      %1831 = vrot.lane.b32.xlu0 %v1740, 8
      %v1832 = vpop.permute.xlu0 %1831
      %1833 = vrot.lane.b32.xlu0 %v1741, 8
      %v1834 = vpop.permute.xlu0 %1833
      %1835 = vrot.lane.b32.xlu0 %v1742, 8
      %v1836 = vpop.permute.xlu0 %1835
      %1837 = vrot.lane.b32.xlu0 %v1743, 8
      %v1838 = vpop.permute.xlu0 %1837
      %1839 = vrot.lane.b32.xlu0 %v1744, 8
      %v1840 = vpop.permute.xlu0 %1839
      %v1873 = vsel %vm372, %v1585, %v1778
      %v1874 = vsel %vm372, %v1586, %v1780
      %v1875 = vsel %vm372, %v1697, %v1782
      %v1876 = vsel %vm372, %v1698, %v1784
      %v1877 = vsel %vm372, %v1587, %v1786
      %v1878 = vsel %vm372, %v1588, %v1788
      %v1879 = vsel %vm372, %v1699, %v1790
      %v1880 = vsel %vm372, %v1700, %v1792
      %v1881 = vsel %vm372, %v1589, %v1794
      %v1882 = vsel %vm372, %v1590, %v1796
      %v1883 = vsel %vm372, %v1701, %v1798
      %v1884 = vsel %vm372, %v1702, %v1800
      %v1885 = vsel %vm372, %v1591, %v1802
      %v1886 = vsel %vm372, %v1592, %v1804
      %v1887 = vsel %vm372, %v1703, %v1806
      %v1888 = vsel %vm372, %v1704, %v1808
      %v1889 = vsel %vm372, %v1593, %v1810
      %v1890 = vsel %vm372, %v1594, %v1812
      %v1891 = vsel %vm372, %v1705, %v1814
      %v1892 = vsel %vm372, %v1706, %v1816
      %v1893 = vsel %vm372, %v1595, %v1818
      %v1894 = vsel %vm372, %v1596, %v1820
      %v1895 = vsel %vm372, %v1707, %v1822
      %v1896 = vsel %vm372, %v1708, %v1824
      %v1897 = vsel %vm372, %v1597, %v1826
      %v1898 = vsel %vm372, %v1598, %v1828
      %v1899 = vsel %vm372, %v1709, %v1830
      %v1900 = vsel %vm372, %v1710, %v1832
      %v1901 = vsel %vm372, %v1599, %v1834
      %v1902 = vsel %vm372, %v1600, %v1836
      %v1903 = vsel %vm372, %v1711, %v1838
      %v1904 = vsel %vm372, %v1712, %v1840
      %s1905 = scalar_lea.vmem [#allocation2], 24
      %1906 = vst.msk [vmem:[%s1905 + $0x1] sm:$0xff] %vm326, %v1873
      %1907 = vst.msk [vmem:[%s1905 + $0x9] sm:$0xff] %vm326, %v1874
      %1908 = vst.msk [vmem:[%s1905 + $0x19] sm:$0xff] %vm326, %v1875
      %1909 = vst.msk [vmem:[%s1905 + $0x21] sm:$0xff] %vm326, %v1876
      %1910 = vst.msk [vmem:[%s1905 + $0x31] sm:$0xff] %vm326, %v1877
      %1911 = vst.msk [vmem:[%s1905 + $0x39] sm:$0xff] %vm326, %v1878
      %1912 = vst.msk [vmem:[%s1905 + $0x49] sm:$0xff] %vm326, %v1879
      %1913 = vst.msk [vmem:[%s1905 + $0x51] sm:$0xff] %vm326, %v1880
      %1914 = vst.msk [vmem:[%s1905 + $0x61] sm:$0xff] %vm326, %v1881
      %1915 = vst.msk [vmem:[%s1905 + $0x69] sm:$0xff] %vm326, %v1882
      %1916 = vst.msk [vmem:[%s1905 + $0x79] sm:$0xff] %vm326, %v1883
      %1917 = vst.msk [vmem:[%s1905 + $0x81] sm:$0xff] %vm326, %v1884
      %1918 = vst.msk [vmem:[%s1905 + $0x91] sm:$0xff] %vm326, %v1885
      %1919 = vst.msk [vmem:[%s1905 + $0x99] sm:$0xff] %vm326, %v1886
      %1920 = vst.msk [vmem:[%s1905 + $0xa9] sm:$0xff] %vm326, %v1887
      %1921 = vst.msk [vmem:[%s1905 + $0xb1] sm:$0xff] %vm326, %v1888
      %1922 = vst.msk [vmem:[%s1905 + $0xc1] sm:$0xff] %vm326, %v1889
      %1923 = vst.msk [vmem:[%s1905 + $0xc9] sm:$0xff] %vm326, %v1890
      %1924 = vst.msk [vmem:[%s1905 + $0xd9] sm:$0xff] %vm326, %v1891
      %1925 = vst.msk [vmem:[%s1905 + $0xe1] sm:$0xff] %vm326, %v1892
      %1926 = vst.msk [vmem:[%s1905 + $0xf1] sm:$0xff] %vm326, %v1893
      %1927 = vst.msk [vmem:[%s1905 + $0xf9] sm:$0xff] %vm326, %v1894
      %1928 = vst.msk [vmem:[%s1905 + $0x109] sm:$0xff] %vm326, %v1895
      %1929 = vst.msk [vmem:[%s1905 + $0x111] sm:$0xff] %vm326, %v1896
      %1930 = vst.msk [vmem:[%s1905 + $0x121] sm:$0xff] %vm326, %v1897
      %1931 = vst.msk [vmem:[%s1905 + $0x129] sm:$0xff] %vm326, %v1898
      %1932 = vst.msk [vmem:[%s1905 + $0x139] sm:$0xff] %vm326, %v1899
      %1933 = vst.msk [vmem:[%s1905 + $0x141] sm:$0xff] %vm326, %v1900
      %1934 = vst.msk [vmem:[%s1905 + $0x151] sm:$0xff] %vm326, %v1901
      %1935 = vst.msk [vmem:[%s1905 + $0x159] sm:$0xff] %vm326, %v1902
      %1936 = vst.msk [vmem:[%s1905 + $0x169] sm:$0xff] %vm326, %v1903
      %1937 = vst.msk [vmem:[%s1905 + $0x171] sm:$0xff] %vm326, %v1904
      %v1938 = vld [vmem:[#allocation2] sm:$0xff]
      %v1939 = vld [vmem:[#allocation2 + $0x8] sm:$0xff]
      %v1940 = vld [vmem:[#allocation2 + $0x18] sm:$0xff]
      %v1941 = vld [vmem:[#allocation2 + $0x20] sm:$0xff]
      %v1942 = vld [vmem:[#allocation2 + $0x30] sm:$0xff]
      %v1943 = vld [vmem:[#allocation2 + $0x38] sm:$0xff]
      %v1944 = vld [vmem:[#allocation2 + $0x48] sm:$0xff]
      %v1945 = vld [vmem:[#allocation2 + $0x50] sm:$0xff]
      %v1946 = vld [vmem:[#allocation2 + $0x60] sm:$0xff]
      %v1947 = vld [vmem:[#allocation2 + $0x68] sm:$0xff]
      %v1948 = vld [vmem:[#allocation2 + $0x78] sm:$0xff]
      %v1949 = vld [vmem:[#allocation2 + $0x80] sm:$0xff]
      %v1950 = vld [vmem:[#allocation2 + $0x90] sm:$0xff]
      %v1951 = vld [vmem:[#allocation2 + $0x98] sm:$0xff]
      %v1952 = vld [vmem:[#allocation2 + $0xa8] sm:$0xff]
      %v1953 = vld [vmem:[#allocation2 + $0xb0] sm:$0xff]
      %v1954 = vld [vmem:[#allocation2 + $0xc0] sm:$0xff]
      %v1955 = vld [vmem:[#allocation2 + $0xc8] sm:$0xff]
      %v1956 = vld [vmem:[#allocation2 + $0xd8] sm:$0xff]
      %v1957 = vld [vmem:[#allocation2 + $0xe0] sm:$0xff]
      %v1958 = vld [vmem:[#allocation2 + $0xf0] sm:$0xff]
      %v1959 = vld [vmem:[#allocation2 + $0xf8] sm:$0xff]
      %v1960 = vld [vmem:[#allocation2 + $0x108] sm:$0xff]
      %v1961 = vld [vmem:[#allocation2 + $0x110] sm:$0xff]
      %v1962 = vld [vmem:[#allocation2 + $0x120] sm:$0xff]
      %v1963 = vld [vmem:[#allocation2 + $0x128] sm:$0xff]
      %v1964 = vld [vmem:[#allocation2 + $0x138] sm:$0xff]
      %v1965 = vld [vmem:[#allocation2 + $0x140] sm:$0xff]
      %v1966 = vld [vmem:[#allocation2 + $0x150] sm:$0xff]
      %v1967 = vld [vmem:[#allocation2 + $0x158] sm:$0xff]
      %v1968 = vld [vmem:[#allocation2 + $0x168] sm:$0xff]
      %v1969 = vld [vmem:[#allocation2 + $0x170] sm:$0xff]
      %v1970 = vld [vmem:[#allocation2 + $0x1] sm:$0xff]
      %v1971 = vld [vmem:[#allocation2 + $0x9] sm:$0xff]
      %v1972 = vld [vmem:[#allocation2 + $0x19] sm:$0xff]
      %v1973 = vld [vmem:[#allocation2 + $0x21] sm:$0xff]
      %v1974 = vld [vmem:[#allocation2 + $0x31] sm:$0xff]
      %v1975 = vld [vmem:[#allocation2 + $0x39] sm:$0xff]
      %v1976 = vld [vmem:[#allocation2 + $0x49] sm:$0xff]
      %v1977 = vld [vmem:[#allocation2 + $0x51] sm:$0xff]
      %v1978 = vld [vmem:[#allocation2 + $0x61] sm:$0xff]
      %v1979 = vld [vmem:[#allocation2 + $0x69] sm:$0xff]
      %v1980 = vld [vmem:[#allocation2 + $0x79] sm:$0xff]
      %v1981 = vld [vmem:[#allocation2 + $0x81] sm:$0xff]
      %v1982 = vld [vmem:[#allocation2 + $0x91] sm:$0xff]
      %v1983 = vld [vmem:[#allocation2 + $0x99] sm:$0xff]
      %v1984 = vld [vmem:[#allocation2 + $0xa9] sm:$0xff]
      %v1985 = vld [vmem:[#allocation2 + $0xb1] sm:$0xff]
      %v1986 = vld [vmem:[#allocation2 + $0xc1] sm:$0xff]
      %v1987 = vld [vmem:[#allocation2 + $0xc9] sm:$0xff]
      %v1988 = vld [vmem:[#allocation2 + $0xd9] sm:$0xff]
      %v1989 = vld [vmem:[#allocation2 + $0xe1] sm:$0xff]
      %v1990 = vld [vmem:[#allocation2 + $0xf1] sm:$0xff]
      %v1991 = vld [vmem:[#allocation2 + $0xf9] sm:$0xff]
      %v1992 = vld [vmem:[#allocation2 + $0x109] sm:$0xff]
      %v1993 = vld [vmem:[#allocation2 + $0x111] sm:$0xff]
      %v1994 = vld [vmem:[#allocation2 + $0x121] sm:$0xff]
      %v1995 = vld [vmem:[#allocation2 + $0x129] sm:$0xff]
      %v1996 = vld [vmem:[#allocation2 + $0x139] sm:$0xff]
      %v1997 = vld [vmem:[#allocation2 + $0x141] sm:$0xff]
      %v1998 = vld [vmem:[#allocation2 + $0x151] sm:$0xff]
      %v1999 = vld [vmem:[#allocation2 + $0x159] sm:$0xff]
      %v2000 = vld [vmem:[#allocation2 + $0x169] sm:$0xff]
      %v2001 = vld [vmem:[#allocation2 + $0x171] sm:$0xff]
      %v2002 = vld [vmem:[#allocation2 + $0x2] sm:$0xff]
      %v2003 = vld [vmem:[#allocation2 + $0xa] sm:$0xff]
      %v2004 = vld [vmem:[#allocation2 + $0x1a] sm:$0xff]
      %v2005 = vld [vmem:[#allocation2 + $0x22] sm:$0xff]
      %v2006 = vld [vmem:[#allocation2 + $0x32] sm:$0xff]
      %v2007 = vld [vmem:[#allocation2 + $0x3a] sm:$0xff]
      %v2008 = vld [vmem:[#allocation2 + $0x4a] sm:$0xff]
      %v2009 = vld [vmem:[#allocation2 + $0x52] sm:$0xff]
      %v2010 = vld [vmem:[#allocation2 + $0x62] sm:$0xff]
      %v2011 = vld [vmem:[#allocation2 + $0x6a] sm:$0xff]
      %v2012 = vld [vmem:[#allocation2 + $0x7a] sm:$0xff]
      %v2013 = vld [vmem:[#allocation2 + $0x82] sm:$0xff]
      %v2014 = vld [vmem:[#allocation2 + $0x92] sm:$0xff]
      %v2015 = vld [vmem:[#allocation2 + $0x9a] sm:$0xff]
      %v2016 = vld [vmem:[#allocation2 + $0xaa] sm:$0xff]
      %v2017 = vld [vmem:[#allocation2 + $0xb2] sm:$0xff]
      %v2018 = vld [vmem:[#allocation2 + $0xc2] sm:$0xff]
      %v2019 = vld [vmem:[#allocation2 + $0xca] sm:$0xff]
      %v2020 = vld [vmem:[#allocation2 + $0xda] sm:$0xff]
      %v2021 = vld [vmem:[#allocation2 + $0xe2] sm:$0xff]
      %v2022 = vld [vmem:[#allocation2 + $0xf2] sm:$0xff]
      %v2023 = vld [vmem:[#allocation2 + $0xfa] sm:$0xff]
      %v2024 = vld [vmem:[#allocation2 + $0x10a] sm:$0xff]
      %v2025 = vld [vmem:[#allocation2 + $0x112] sm:$0xff]
      %v2026 = vld [vmem:[#allocation2 + $0x122] sm:$0xff]
      %v2027 = vld [vmem:[#allocation2 + $0x12a] sm:$0xff]
      %v2028 = vld [vmem:[#allocation2 + $0x13a] sm:$0xff]
      %v2029 = vld [vmem:[#allocation2 + $0x142] sm:$0xff]
      %v2030 = vld [vmem:[#allocation2 + $0x152] sm:$0xff]
      %v2031 = vld [vmem:[#allocation2 + $0x15a] sm:$0xff]
      %v2032 = vld [vmem:[#allocation2 + $0x16a] sm:$0xff]
      %v2033 = vld [vmem:[#allocation2 + $0x172] sm:$0xff]
      %2066 = vrot.lane.b32.xlu0 %v1970, 16
      %v2067 = vpop.permute.xlu0 %2066
      %2068 = vrot.lane.b32.xlu0 %v1971, 16
      %v2069 = vpop.permute.xlu0 %2068
      %2070 = vrot.lane.b32.xlu0 %v1972, 16
      %v2071 = vpop.permute.xlu0 %2070
      %2072 = vrot.lane.b32.xlu0 %v1973, 16
      %v2073 = vpop.permute.xlu0 %2072
      %2074 = vrot.lane.b32.xlu0 %v1974, 16
      %v2075 = vpop.permute.xlu0 %2074
      %2076 = vrot.lane.b32.xlu0 %v1975, 16
      %v2077 = vpop.permute.xlu0 %2076
      %2078 = vrot.lane.b32.xlu0 %v1976, 16
      %v2079 = vpop.permute.xlu0 %2078
      %2080 = vrot.lane.b32.xlu0 %v1977, 16
      %v2081 = vpop.permute.xlu0 %2080
      %2082 = vrot.lane.b32.xlu0 %v1978, 16
      %v2083 = vpop.permute.xlu0 %2082
      %2084 = vrot.lane.b32.xlu0 %v1979, 16
      %v2085 = vpop.permute.xlu0 %2084
      %2086 = vrot.lane.b32.xlu0 %v1980, 16
      %v2087 = vpop.permute.xlu0 %2086
      %2088 = vrot.lane.b32.xlu0 %v1981, 16
      %v2089 = vpop.permute.xlu0 %2088
      %2090 = vrot.lane.b32.xlu0 %v1982, 16
      %v2091 = vpop.permute.xlu0 %2090
      %2092 = vrot.lane.b32.xlu0 %v1983, 16
      %v2093 = vpop.permute.xlu0 %2092
      %2094 = vrot.lane.b32.xlu0 %v1984, 16
      %v2095 = vpop.permute.xlu0 %2094
      %2096 = vrot.lane.b32.xlu0 %v1985, 16
      %v2097 = vpop.permute.xlu0 %2096
      %2098 = vrot.lane.b32.xlu0 %v1986, 16
      %v2099 = vpop.permute.xlu0 %2098
      %2100 = vrot.lane.b32.xlu0 %v1987, 16
      %v2101 = vpop.permute.xlu0 %2100
      %2102 = vrot.lane.b32.xlu0 %v1988, 16
      %v2103 = vpop.permute.xlu0 %2102
      %2104 = vrot.lane.b32.xlu0 %v1989, 16
      %v2105 = vpop.permute.xlu0 %2104
      %2106 = vrot.lane.b32.xlu0 %v1990, 16
      %v2107 = vpop.permute.xlu0 %2106
      %2108 = vrot.lane.b32.xlu0 %v1991, 16
      %v2109 = vpop.permute.xlu0 %2108
      %2110 = vrot.lane.b32.xlu0 %v1992, 16
      %v2111 = vpop.permute.xlu0 %2110
      %2112 = vrot.lane.b32.xlu0 %v1993, 16
      %v2113 = vpop.permute.xlu0 %2112
      %2114 = vrot.lane.b32.xlu0 %v1994, 16
      %v2115 = vpop.permute.xlu0 %2114
      %2116 = vrot.lane.b32.xlu0 %v1995, 16
      %v2117 = vpop.permute.xlu0 %2116
      %2118 = vrot.lane.b32.xlu0 %v1996, 16
      %v2119 = vpop.permute.xlu0 %2118
      %2120 = vrot.lane.b32.xlu0 %v1997, 16
      %v2121 = vpop.permute.xlu0 %2120
      %2122 = vrot.lane.b32.xlu0 %v1998, 16
      %v2123 = vpop.permute.xlu0 %2122
      %2124 = vrot.lane.b32.xlu0 %v1999, 16
      %v2125 = vpop.permute.xlu0 %2124
      %2126 = vrot.lane.b32.xlu0 %v2000, 16
      %v2127 = vpop.permute.xlu0 %2126
      %2128 = vrot.lane.b32.xlu0 %v2001, 16
      %v2129 = vpop.permute.xlu0 %2128
      %2194 = vrot.lane.b32.xlu0 %v2002, 32
      %v2195 = vpop.permute.xlu0 %2194
      %2196 = vrot.lane.b32.xlu0 %v2003, 32
      %v2197 = vpop.permute.xlu0 %2196
      %2198 = vrot.lane.b32.xlu0 %v2004, 32
      %v2199 = vpop.permute.xlu0 %2198
      %2200 = vrot.lane.b32.xlu0 %v2005, 32
      %v2201 = vpop.permute.xlu0 %2200
      %2202 = vrot.lane.b32.xlu0 %v2006, 32
      %v2203 = vpop.permute.xlu0 %2202
      %2204 = vrot.lane.b32.xlu0 %v2007, 32
      %v2205 = vpop.permute.xlu0 %2204
      %2206 = vrot.lane.b32.xlu0 %v2008, 32
      %v2207 = vpop.permute.xlu0 %2206
      %2208 = vrot.lane.b32.xlu0 %v2009, 32
      %v2209 = vpop.permute.xlu0 %2208
      %2210 = vrot.lane.b32.xlu0 %v2010, 32
      %v2211 = vpop.permute.xlu0 %2210
      %2212 = vrot.lane.b32.xlu0 %v2011, 32
      %v2213 = vpop.permute.xlu0 %2212
      %2214 = vrot.lane.b32.xlu0 %v2012, 32
      %v2215 = vpop.permute.xlu0 %2214
      %2216 = vrot.lane.b32.xlu0 %v2013, 32
      %v2217 = vpop.permute.xlu0 %2216
      %2218 = vrot.lane.b32.xlu0 %v2014, 32
      %v2219 = vpop.permute.xlu0 %2218
      %2220 = vrot.lane.b32.xlu0 %v2015, 32
      %v2221 = vpop.permute.xlu0 %2220
      %2222 = vrot.lane.b32.xlu0 %v2016, 32
      %v2223 = vpop.permute.xlu0 %2222
      %2224 = vrot.lane.b32.xlu0 %v2017, 32
      %v2225 = vpop.permute.xlu0 %2224
      %2226 = vrot.lane.b32.xlu0 %v2018, 32
      %v2227 = vpop.permute.xlu0 %2226
      %2228 = vrot.lane.b32.xlu0 %v2019, 32
      %v2229 = vpop.permute.xlu0 %2228
      %2230 = vrot.lane.b32.xlu0 %v2020, 32
      %v2231 = vpop.permute.xlu0 %2230
      %2232 = vrot.lane.b32.xlu0 %v2021, 32
      %v2233 = vpop.permute.xlu0 %2232
      %2234 = vrot.lane.b32.xlu0 %v2022, 32
      %v2235 = vpop.permute.xlu0 %2234
      %2236 = vrot.lane.b32.xlu0 %v2023, 32
      %v2237 = vpop.permute.xlu0 %2236
      %2238 = vrot.lane.b32.xlu0 %v2024, 32
      %v2239 = vpop.permute.xlu0 %2238
      %2240 = vrot.lane.b32.xlu0 %v2025, 32
      %v2241 = vpop.permute.xlu0 %2240
      %2242 = vrot.lane.b32.xlu0 %v2026, 32
      %v2243 = vpop.permute.xlu0 %2242
      %2244 = vrot.lane.b32.xlu0 %v2027, 32
      %v2245 = vpop.permute.xlu0 %2244
      %2246 = vrot.lane.b32.xlu0 %v2028, 32
      %v2247 = vpop.permute.xlu0 %2246
      %2248 = vrot.lane.b32.xlu0 %v2029, 32
      %v2249 = vpop.permute.xlu0 %2248
      %2250 = vrot.lane.b32.xlu0 %v2030, 32
      %v2251 = vpop.permute.xlu0 %2250
      %2252 = vrot.lane.b32.xlu0 %v2031, 32
      %v2253 = vpop.permute.xlu0 %2252
      %2254 = vrot.lane.b32.xlu0 %v2032, 32
      %v2255 = vpop.permute.xlu0 %2254
      %2256 = vrot.lane.b32.xlu0 %v2033, 32
      %v2257 = vpop.permute.xlu0 %2256
      %v2290 = vsel %vm326, %v1938, %v2067
      %v2291 = vsel %vm326, %v1939, %v2069
      %v2292 = vsel %vm326, %v1940, %v2071
      %v2293 = vsel %vm326, %v1941, %v2073
      %v2294 = vsel %vm326, %v1942, %v2075
      %v2295 = vsel %vm326, %v1943, %v2077
      %v2296 = vsel %vm326, %v1944, %v2079
      %v2297 = vsel %vm326, %v1945, %v2081
      %v2298 = vsel %vm326, %v1946, %v2083
      %v2299 = vsel %vm326, %v1947, %v2085
      %v2300 = vsel %vm326, %v1948, %v2087
      %v2301 = vsel %vm326, %v1949, %v2089
      %v2302 = vsel %vm326, %v1950, %v2091
      %v2303 = vsel %vm326, %v1951, %v2093
      %v2304 = vsel %vm326, %v1952, %v2095
      %v2305 = vsel %vm326, %v1953, %v2097
      %v2306 = vsel %vm326, %v1954, %v2099
      %v2307 = vsel %vm326, %v1955, %v2101
      %v2308 = vsel %vm326, %v1956, %v2103
      %v2309 = vsel %vm326, %v1957, %v2105
      %v2310 = vsel %vm326, %v1958, %v2107
      %v2311 = vsel %vm326, %v1959, %v2109
      %v2312 = vsel %vm326, %v1960, %v2111
      %v2313 = vsel %vm326, %v1961, %v2113
      %v2314 = vsel %vm326, %v1962, %v2115
      %v2315 = vsel %vm326, %v1963, %v2117
      %v2316 = vsel %vm326, %v1964, %v2119
      %v2317 = vsel %vm326, %v1965, %v2121
      %v2318 = vsel %vm326, %v1966, %v2123
      %v2319 = vsel %vm326, %v1967, %v2125
      %v2320 = vsel %vm326, %v1968, %v2127
      %v2321 = vsel %vm326, %v1969, %v2129
      %vm2322 = vcmask 261120
      %v2323 = vsel %vm2322, %v2290, %v2195
      %v2324 = vsel %vm2322, %v2291, %v2197
      %v2325 = vsel %vm2322, %v2292, %v2199
      %v2326 = vsel %vm2322, %v2293, %v2201
      %v2327 = vsel %vm2322, %v2294, %v2203
      %v2328 = vsel %vm2322, %v2295, %v2205
      %v2329 = vsel %vm2322, %v2296, %v2207
      %v2330 = vsel %vm2322, %v2297, %v2209
      %v2331 = vsel %vm2322, %v2298, %v2211
      %v2332 = vsel %vm2322, %v2299, %v2213
      %v2333 = vsel %vm2322, %v2300, %v2215
      %v2334 = vsel %vm2322, %v2301, %v2217
      %v2335 = vsel %vm2322, %v2302, %v2219
      %v2336 = vsel %vm2322, %v2303, %v2221
      %v2337 = vsel %vm2322, %v2304, %v2223
      %v2338 = vsel %vm2322, %v2305, %v2225
      %v2339 = vsel %vm2322, %v2306, %v2227
      %v2340 = vsel %vm2322, %v2307, %v2229
      %v2341 = vsel %vm2322, %v2308, %v2231
      %v2342 = vsel %vm2322, %v2309, %v2233
      %v2343 = vsel %vm2322, %v2310, %v2235
      %v2344 = vsel %vm2322, %v2311, %v2237
      %v2345 = vsel %vm2322, %v2312, %v2239
      %v2346 = vsel %vm2322, %v2313, %v2241
      %v2347 = vsel %vm2322, %v2314, %v2243
      %v2348 = vsel %vm2322, %v2315, %v2245
      %v2349 = vsel %vm2322, %v2316, %v2247
      %v2350 = vsel %vm2322, %v2317, %v2249
      %v2351 = vsel %vm2322, %v2318, %v2251
      %v2352 = vsel %vm2322, %v2319, %v2253
      %v2353 = vsel %vm2322, %v2320, %v2255
      %v2354 = vsel %vm2322, %v2321, %v2257
      %v2355 = vld [vmem:[%s4] sm:$0xff]
      %v2356 = vld [vmem:[%s4 + $0x8] sm:$0xff]
      %v2357 = vld [vmem:[%s4 + $0x10] sm:$0xff]
      %v2358 = vld [vmem:[%s4 + $0x18] sm:$0xff]
      %v2359 = vld [vmem:[%s4 + $0x20] sm:$0xff]
      %v2360 = vld [vmem:[%s4 + $0x28] sm:$0xff]
      %v2361 = vld [vmem:[%s1905] sm:$0xff]
      %v2362 = vld [vmem:[%s1905 + $0x8] sm:$0xff]
      %v2363 = vld [vmem:[%s1905 + $0x18] sm:$0xff]
      %v2364 = vld [vmem:[%s1905 + $0x20] sm:$0xff]
      %v2365 = vld [vmem:[%s1905 + $0x30] sm:$0xff]
      %v2366 = vld [vmem:[%s1905 + $0x38] sm:$0xff]
      %v2367 = vld [vmem:[%s1905 + $0x48] sm:$0xff]
      %v2368 = vld [vmem:[%s1905 + $0x50] sm:$0xff]
      %v2369 = vld [vmem:[%s1905 + $0x60] sm:$0xff]
      %v2370 = vld [vmem:[%s1905 + $0x68] sm:$0xff]
      %v2371 = vld [vmem:[%s1905 + $0x78] sm:$0xff]
      %v2372 = vld [vmem:[%s1905 + $0x80] sm:$0xff]
      %v2373 = vld [vmem:[%s1905 + $0x90] sm:$0xff]
      %v2374 = vld [vmem:[%s1905 + $0x98] sm:$0xff]
      %v2375 = vld [vmem:[%s1905 + $0xa8] sm:$0xff]
      %v2376 = vld [vmem:[%s1905 + $0xb0] sm:$0xff]
      %v2377 = vld [vmem:[%s1905 + $0xc0] sm:$0xff]
      %v2378 = vld [vmem:[%s1905 + $0xc8] sm:$0xff]
      %v2379 = vld [vmem:[%s1905 + $0xd8] sm:$0xff]
      %v2380 = vld [vmem:[%s1905 + $0xe0] sm:$0xff]
      %v2381 = vld [vmem:[%s1905 + $0xf0] sm:$0xff]
      %v2382 = vld [vmem:[%s1905 + $0xf8] sm:$0xff]
      %v2383 = vld [vmem:[%s1905 + $0x108] sm:$0xff]
      %v2384 = vld [vmem:[%s1905 + $0x110] sm:$0xff]
      %v2385 = vld [vmem:[%s1905 + $0x120] sm:$0xff]
      %v2386 = vld [vmem:[%s1905 + $0x128] sm:$0xff]
      %v2387 = vld [vmem:[%s1905 + $0x138] sm:$0xff]
      %v2388 = vld [vmem:[%s1905 + $0x140] sm:$0xff]
      %v2389 = vld [vmem:[%s1905 + $0x150] sm:$0xff]
      %v2390 = vld [vmem:[%s1905 + $0x158] sm:$0xff]
      %v2391 = vld [vmem:[%s1905 + $0x168] sm:$0xff]
      %v2392 = vld [vmem:[%s1905 + $0x170] sm:$0xff]
      %v2393 = vld [vmem:[%s1905 + $0x1] sm:$0xff]
      %v2394 = vld [vmem:[%s1905 + $0x9] sm:$0xff]
      %v2395 = vld [vmem:[%s1905 + $0x19] sm:$0xff]
      %v2396 = vld [vmem:[%s1905 + $0x21] sm:$0xff]
      %v2397 = vld [vmem:[%s1905 + $0x31] sm:$0xff]
      %v2398 = vld [vmem:[%s1905 + $0x39] sm:$0xff]
      %v2399 = vld [vmem:[%s1905 + $0x49] sm:$0xff]
      %v2400 = vld [vmem:[%s1905 + $0x51] sm:$0xff]
      %v2401 = vld [vmem:[%s1905 + $0x61] sm:$0xff]
      %v2402 = vld [vmem:[%s1905 + $0x69] sm:$0xff]
      %v2403 = vld [vmem:[%s1905 + $0x79] sm:$0xff]
      %v2404 = vld [vmem:[%s1905 + $0x81] sm:$0xff]
      %v2405 = vld [vmem:[%s1905 + $0x91] sm:$0xff]
      %v2406 = vld [vmem:[%s1905 + $0x99] sm:$0xff]
      %v2407 = vld [vmem:[%s1905 + $0xa9] sm:$0xff]
      %v2408 = vld [vmem:[%s1905 + $0xb1] sm:$0xff]
      %v2409 = vld [vmem:[%s1905 + $0xc1] sm:$0xff]
      %v2410 = vld [vmem:[%s1905 + $0xc9] sm:$0xff]
      %v2411 = vld [vmem:[%s1905 + $0xd9] sm:$0xff]
      %v2412 = vld [vmem:[%s1905 + $0xe1] sm:$0xff]
      %v2413 = vld [vmem:[%s1905 + $0xf1] sm:$0xff]
      %v2414 = vld [vmem:[%s1905 + $0xf9] sm:$0xff]
      %v2415 = vld [vmem:[%s1905 + $0x109] sm:$0xff]
      %v2416 = vld [vmem:[%s1905 + $0x111] sm:$0xff]
      %v2417 = vld [vmem:[%s1905 + $0x121] sm:$0xff]
      %v2418 = vld [vmem:[%s1905 + $0x129] sm:$0xff]
      %v2419 = vld [vmem:[%s1905 + $0x139] sm:$0xff]
      %v2420 = vld [vmem:[%s1905 + $0x141] sm:$0xff]
      %v2421 = vld [vmem:[%s1905 + $0x151] sm:$0xff]
      %v2422 = vld [vmem:[%s1905 + $0x159] sm:$0xff]
      %v2423 = vld [vmem:[%s1905 + $0x169] sm:$0xff]
      %v2424 = vld [vmem:[%s1905 + $0x171] sm:$0xff]
      %v2425 = vld [vmem:[%s1905 + $0x2] sm:$0xff]
      %v2426 = vld [vmem:[%s1905 + $0xa] sm:$0xff]
      %v2427 = vld [vmem:[%s1905 + $0x1a] sm:$0xff]
      %v2428 = vld [vmem:[%s1905 + $0x22] sm:$0xff]
      %v2429 = vld [vmem:[%s1905 + $0x32] sm:$0xff]
      %v2430 = vld [vmem:[%s1905 + $0x3a] sm:$0xff]
      %v2431 = vld [vmem:[%s1905 + $0x4a] sm:$0xff]
      %v2432 = vld [vmem:[%s1905 + $0x52] sm:$0xff]
      %v2433 = vld [vmem:[%s1905 + $0x62] sm:$0xff]
      %v2434 = vld [vmem:[%s1905 + $0x6a] sm:$0xff]
      %v2435 = vld [vmem:[%s1905 + $0x7a] sm:$0xff]
      %v2436 = vld [vmem:[%s1905 + $0x82] sm:$0xff]
      %v2437 = vld [vmem:[%s1905 + $0x92] sm:$0xff]
      %v2438 = vld [vmem:[%s1905 + $0x9a] sm:$0xff]
      %v2439 = vld [vmem:[%s1905 + $0xaa] sm:$0xff]
      %v2440 = vld [vmem:[%s1905 + $0xb2] sm:$0xff]
      %v2441 = vld [vmem:[%s1905 + $0xc2] sm:$0xff]
      %v2442 = vld [vmem:[%s1905 + $0xca] sm:$0xff]
      %v2443 = vld [vmem:[%s1905 + $0xda] sm:$0xff]
      %v2444 = vld [vmem:[%s1905 + $0xe2] sm:$0xff]
      %v2445 = vld [vmem:[%s1905 + $0xf2] sm:$0xff]
      %v2446 = vld [vmem:[%s1905 + $0xfa] sm:$0xff]
      %v2447 = vld [vmem:[%s1905 + $0x10a] sm:$0xff]
      %v2448 = vld [vmem:[%s1905 + $0x112] sm:$0xff]
      %v2449 = vld [vmem:[%s1905 + $0x122] sm:$0xff]
      %v2450 = vld [vmem:[%s1905 + $0x12a] sm:$0xff]
      %v2451 = vld [vmem:[%s1905 + $0x13a] sm:$0xff]
      %v2452 = vld [vmem:[%s1905 + $0x142] sm:$0xff]
      %v2453 = vld [vmem:[%s1905 + $0x152] sm:$0xff]
      %v2454 = vld [vmem:[%s1905 + $0x15a] sm:$0xff]
      %v2455 = vld [vmem:[%s1905 + $0x16a] sm:$0xff]
      %v2456 = vld [vmem:[%s1905 + $0x172] sm:$0xff]
      %2489 = vrot.lane.b32.xlu0 %v2393, 16
      %v2490 = vpop.permute.xlu0 %2489
      %2491 = vrot.lane.b32.xlu0 %v2394, 16
      %v2492 = vpop.permute.xlu0 %2491
      %2493 = vrot.lane.b32.xlu0 %v2395, 16
      %v2494 = vpop.permute.xlu0 %2493
      %2495 = vrot.lane.b32.xlu0 %v2396, 16
      %v2496 = vpop.permute.xlu0 %2495
      %2497 = vrot.lane.b32.xlu0 %v2397, 16
      %v2498 = vpop.permute.xlu0 %2497
      %2499 = vrot.lane.b32.xlu0 %v2398, 16
      %v2500 = vpop.permute.xlu0 %2499
      %2501 = vrot.lane.b32.xlu0 %v2399, 16
      %v2502 = vpop.permute.xlu0 %2501
      %2503 = vrot.lane.b32.xlu0 %v2400, 16
      %v2504 = vpop.permute.xlu0 %2503
      %2505 = vrot.lane.b32.xlu0 %v2401, 16
      %v2506 = vpop.permute.xlu0 %2505
      %2507 = vrot.lane.b32.xlu0 %v2402, 16
      %v2508 = vpop.permute.xlu0 %2507
      %2509 = vrot.lane.b32.xlu0 %v2403, 16
      %v2510 = vpop.permute.xlu0 %2509
      %2511 = vrot.lane.b32.xlu0 %v2404, 16
      %v2512 = vpop.permute.xlu0 %2511
      %2513 = vrot.lane.b32.xlu0 %v2405, 16
      %v2514 = vpop.permute.xlu0 %2513
      %2515 = vrot.lane.b32.xlu0 %v2406, 16
      %v2516 = vpop.permute.xlu0 %2515
      %2517 = vrot.lane.b32.xlu0 %v2407, 16
      %v2518 = vpop.permute.xlu0 %2517
      %2519 = vrot.lane.b32.xlu0 %v2408, 16
      %v2520 = vpop.permute.xlu0 %2519
      %2521 = vrot.lane.b32.xlu0 %v2409, 16
      %v2522 = vpop.permute.xlu0 %2521
      %2523 = vrot.lane.b32.xlu0 %v2410, 16
      %v2524 = vpop.permute.xlu0 %2523
      %2525 = vrot.lane.b32.xlu0 %v2411, 16
      %v2526 = vpop.permute.xlu0 %2525
      %2527 = vrot.lane.b32.xlu0 %v2412, 16
      %v2528 = vpop.permute.xlu0 %2527
      %2529 = vrot.lane.b32.xlu0 %v2413, 16
      %v2530 = vpop.permute.xlu0 %2529
      %2531 = vrot.lane.b32.xlu0 %v2414, 16
      %v2532 = vpop.permute.xlu0 %2531
      %2533 = vrot.lane.b32.xlu0 %v2415, 16
      %v2534 = vpop.permute.xlu0 %2533
      %2535 = vrot.lane.b32.xlu0 %v2416, 16
      %v2536 = vpop.permute.xlu0 %2535
      %2537 = vrot.lane.b32.xlu0 %v2417, 16
      %v2538 = vpop.permute.xlu0 %2537
      %2539 = vrot.lane.b32.xlu0 %v2418, 16
      %v2540 = vpop.permute.xlu0 %2539
      %2541 = vrot.lane.b32.xlu0 %v2419, 16
      %v2542 = vpop.permute.xlu0 %2541
      %2543 = vrot.lane.b32.xlu0 %v2420, 16
      %v2544 = vpop.permute.xlu0 %2543
      %2545 = vrot.lane.b32.xlu0 %v2421, 16
      %v2546 = vpop.permute.xlu0 %2545
      %2547 = vrot.lane.b32.xlu0 %v2422, 16
      %v2548 = vpop.permute.xlu0 %2547
      %2549 = vrot.lane.b32.xlu0 %v2423, 16
      %v2550 = vpop.permute.xlu0 %2549
      %2551 = vrot.lane.b32.xlu0 %v2424, 16
      %v2552 = vpop.permute.xlu0 %2551
      %2617 = vrot.lane.b32.xlu0 %v2425, 32
      %v2618 = vpop.permute.xlu0 %2617
      %2619 = vrot.lane.b32.xlu0 %v2426, 32
      %v2620 = vpop.permute.xlu0 %2619
      %2621 = vrot.lane.b32.xlu0 %v2427, 32
      %v2622 = vpop.permute.xlu0 %2621
      %2623 = vrot.lane.b32.xlu0 %v2428, 32
      %v2624 = vpop.permute.xlu0 %2623
      %2625 = vrot.lane.b32.xlu0 %v2429, 32
      %v2626 = vpop.permute.xlu0 %2625
      %2627 = vrot.lane.b32.xlu0 %v2430, 32
      %v2628 = vpop.permute.xlu0 %2627
      %2629 = vrot.lane.b32.xlu0 %v2431, 32
      %v2630 = vpop.permute.xlu0 %2629
      %2631 = vrot.lane.b32.xlu0 %v2432, 32
      %v2632 = vpop.permute.xlu0 %2631
      %2633 = vrot.lane.b32.xlu0 %v2433, 32
      %v2634 = vpop.permute.xlu0 %2633
      %2635 = vrot.lane.b32.xlu0 %v2434, 32
      %v2636 = vpop.permute.xlu0 %2635
      %2637 = vrot.lane.b32.xlu0 %v2435, 32
      %v2638 = vpop.permute.xlu0 %2637
      %2639 = vrot.lane.b32.xlu0 %v2436, 32
      %v2640 = vpop.permute.xlu0 %2639
      %2641 = vrot.lane.b32.xlu0 %v2437, 32
      %v2642 = vpop.permute.xlu0 %2641
      %2643 = vrot.lane.b32.xlu0 %v2438, 32
      %v2644 = vpop.permute.xlu0 %2643
      %2645 = vrot.lane.b32.xlu0 %v2439, 32
      %v2646 = vpop.permute.xlu0 %2645
      %2647 = vrot.lane.b32.xlu0 %v2440, 32
      %v2648 = vpop.permute.xlu0 %2647
      %2649 = vrot.lane.b32.xlu0 %v2441, 32
      %v2650 = vpop.permute.xlu0 %2649
      %2651 = vrot.lane.b32.xlu0 %v2442, 32
      %v2652 = vpop.permute.xlu0 %2651
      %2653 = vrot.lane.b32.xlu0 %v2443, 32
      %v2654 = vpop.permute.xlu0 %2653
      %2655 = vrot.lane.b32.xlu0 %v2444, 32
      %v2656 = vpop.permute.xlu0 %2655
      %2657 = vrot.lane.b32.xlu0 %v2445, 32
      %v2658 = vpop.permute.xlu0 %2657
      %2659 = vrot.lane.b32.xlu0 %v2446, 32
      %v2660 = vpop.permute.xlu0 %2659
      %2661 = vrot.lane.b32.xlu0 %v2447, 32
      %v2662 = vpop.permute.xlu0 %2661
      %2663 = vrot.lane.b32.xlu0 %v2448, 32
      %v2664 = vpop.permute.xlu0 %2663
      %2665 = vrot.lane.b32.xlu0 %v2449, 32
      %v2666 = vpop.permute.xlu0 %2665
      %2667 = vrot.lane.b32.xlu0 %v2450, 32
      %v2668 = vpop.permute.xlu0 %2667
      %2669 = vrot.lane.b32.xlu0 %v2451, 32
      %v2670 = vpop.permute.xlu0 %2669
      %2671 = vrot.lane.b32.xlu0 %v2452, 32
      %v2672 = vpop.permute.xlu0 %2671
      %2673 = vrot.lane.b32.xlu0 %v2453, 32
      %v2674 = vpop.permute.xlu0 %2673
      %2675 = vrot.lane.b32.xlu0 %v2454, 32
      %v2676 = vpop.permute.xlu0 %2675
      %2677 = vrot.lane.b32.xlu0 %v2455, 32
      %v2678 = vpop.permute.xlu0 %2677
      %2679 = vrot.lane.b32.xlu0 %v2456, 32
      %v2680 = vpop.permute.xlu0 %2679
      %v2713 = vsel %vm326, %v2361, %v2490
      %v2714 = vsel %vm326, %v2362, %v2492
      %v2715 = vsel %vm326, %v2363, %v2494
      %v2716 = vsel %vm326, %v2364, %v2496
      %v2717 = vsel %vm326, %v2365, %v2498
      %v2718 = vsel %vm326, %v2366, %v2500
      %v2719 = vsel %vm326, %v2367, %v2502
      %v2720 = vsel %vm326, %v2368, %v2504
      %v2721 = vsel %vm326, %v2369, %v2506
      %v2722 = vsel %vm326, %v2370, %v2508
      %v2723 = vsel %vm326, %v2371, %v2510
      %v2724 = vsel %vm326, %v2372, %v2512
      %v2725 = vsel %vm326, %v2373, %v2514
      %v2726 = vsel %vm326, %v2374, %v2516
      %v2727 = vsel %vm326, %v2375, %v2518
      %v2728 = vsel %vm326, %v2376, %v2520
      %v2729 = vsel %vm326, %v2377, %v2522
      %v2730 = vsel %vm326, %v2378, %v2524
      %v2731 = vsel %vm326, %v2379, %v2526
      %v2732 = vsel %vm326, %v2380, %v2528
      %v2733 = vsel %vm326, %v2381, %v2530
      %v2734 = vsel %vm326, %v2382, %v2532
      %v2735 = vsel %vm326, %v2383, %v2534
      %v2736 = vsel %vm326, %v2384, %v2536
      %v2737 = vsel %vm326, %v2385, %v2538
      %v2738 = vsel %vm326, %v2386, %v2540
      %v2739 = vsel %vm326, %v2387, %v2542
      %v2740 = vsel %vm326, %v2388, %v2544
      %v2741 = vsel %vm326, %v2389, %v2546
      %v2742 = vsel %vm326, %v2390, %v2548
      %v2743 = vsel %vm326, %v2391, %v2550
      %v2744 = vsel %vm326, %v2392, %v2552
      %v2745 = vsel %vm2322, %v2713, %v2618
      %v2746 = vsel %vm2322, %v2714, %v2620
      %v2747 = vsel %vm2322, %v2715, %v2622
      %v2748 = vsel %vm2322, %v2716, %v2624
      %v2749 = vsel %vm2322, %v2717, %v2626
      %v2750 = vsel %vm2322, %v2718, %v2628
      %v2751 = vsel %vm2322, %v2719, %v2630
      %v2752 = vsel %vm2322, %v2720, %v2632
      %v2753 = vsel %vm2322, %v2721, %v2634
      %v2754 = vsel %vm2322, %v2722, %v2636
      %v2755 = vsel %vm2322, %v2723, %v2638
      %v2756 = vsel %vm2322, %v2724, %v2640
      %v2757 = vsel %vm2322, %v2725, %v2642
      %v2758 = vsel %vm2322, %v2726, %v2644
      %v2759 = vsel %vm2322, %v2727, %v2646
      %v2760 = vsel %vm2322, %v2728, %v2648
      %v2761 = vsel %vm2322, %v2729, %v2650
      %v2762 = vsel %vm2322, %v2730, %v2652
      %v2763 = vsel %vm2322, %v2731, %v2654
      %v2764 = vsel %vm2322, %v2732, %v2656
      %v2765 = vsel %vm2322, %v2733, %v2658
      %v2766 = vsel %vm2322, %v2734, %v2660
      %v2767 = vsel %vm2322, %v2735, %v2662
      %v2768 = vsel %vm2322, %v2736, %v2664
      %v2769 = vsel %vm2322, %v2737, %v2666
      %v2770 = vsel %vm2322, %v2738, %v2668
      %v2771 = vsel %vm2322, %v2739, %v2670
      %v2772 = vsel %vm2322, %v2740, %v2672
      %v2773 = vsel %vm2322, %v2741, %v2674
      %v2774 = vsel %vm2322, %v2742, %v2676
      %v2775 = vsel %vm2322, %v2743, %v2678
      %v2776 = vsel %vm2322, %v2744, %v2680
      %s2777 = scalar_lea.vmem %s4, 48
      %v2778 = vld [vmem:[%s2777] sm:$0xff]
      %v2779 = vld [vmem:[%s2777 + $0x8] sm:$0xff]
      %v2780 = vld [vmem:[%s2777 + $0x10] sm:$0xff]
      %v2781 = vld [vmem:[%s2777 + $0x18] sm:$0xff]
      %v2782 = vld [vmem:[%s2777 + $0x20] sm:$0xff]
      %v2783 = vld [vmem:[%s2777 + $0x28] sm:$0xff]
      %vm2784 = vcmask 392192
      %v2786 = vsel %vm2784, %v2745, 0
      %v2789 = vsel %vm2784, %v2746, 0
      %v2792 = vsel %vm2784, %v2747, 0
      %v2795 = vsel %vm2784, %v2748, 0
      %v2798 = vsel %vm2784, %v2749, 0
      %v2801 = vsel %vm2784, %v2750, 0
      %v2804 = vsel %vm2784, %v2751, 0
      %v2807 = vsel %vm2784, %v2752, 0
      %v2810 = vsel %vm2784, %v2753, 0
      %v2813 = vsel %vm2784, %v2754, 0
      %v2816 = vsel %vm2784, %v2755, 0
      %v2819 = vsel %vm2784, %v2756, 0
      %v2822 = vsel %vm2784, %v2757, 0
      %v2825 = vsel %vm2784, %v2758, 0
      %v2828 = vsel %vm2784, %v2759, 0
      %v2831 = vsel %vm2784, %v2760, 0
      %v2834 = vsel %vm2784, %v2761, 0
      %v2837 = vsel %vm2784, %v2762, 0
      %v2840 = vsel %vm2784, %v2763, 0
      %v2843 = vsel %vm2784, %v2764, 0
      %v2846 = vsel %vm2784, %v2765, 0
      %v2849 = vsel %vm2784, %v2766, 0
      %v2852 = vsel %vm2784, %v2767, 0
      %v2855 = vsel %vm2784, %v2768, 0
      %v2858 = vsel %vm2784, %v2769, 0
      %v2861 = vsel %vm2784, %v2770, 0
      %v2864 = vsel %vm2784, %v2771, 0
      %v2867 = vsel %vm2784, %v2772, 0
      %v2870 = vsel %vm2784, %v2773, 0
      %v2873 = vsel %vm2784, %v2774, 0
      %v2876 = vsel %vm2784, %v2775, 0
      %v2879 = vsel %vm2784, %v2776, 0
      %2881 = vmatprep.subr.mxu0 0.0
      %2882 = vmatpush1.msra.mxu0 0.0
      %2883 = vmatprep.subr.mxu0 0.0
      %2884 = vmatpush1.msra.mxu0 0.0
      %2885 = vmatprep.subr.mxu0 0.0
      %2886 = vmatpush1.msra.mxu0 0.0
      %2887 = vmatprep.subr.mxu0 0.0
      %2888 = vmatpush1.msra.mxu0 0.0
      %2889 = vmatprep.subr.mxu0 0.0
      %2890 = vmatpush1.msra.mxu0 0.0
      %2891 = vmatprep.subr.mxu0 0.0
      %2892 = vmatpush1.msra.mxu0 0.0
      %2893 = vmatprep.subr.mxu0 0.0
      %2894 = vmatpush1.msra.mxu0 0.0
      %2895 = vmatprep.subr.mxu0 0.0
      %2896 = vmatpush1.msra.mxu0 0.0
      %2897 = vmatprep.subr.mxu0 0.0
      %2898 = vmatpush1.msra.mxu0 0.0
      %2899 = vmatprep.subr.mxu0 0.0
      %2900 = vmatpush1.msra.mxu0 0.0
      %2901 = vmatprep.subr.mxu0 0.0
      %2902 = vmatpush1.msra.mxu0 %v2783
      %2903 = vmatprep.subr.mxu0 0.0
      %2904 = vmatpush1.msra.mxu0 %v2782
      %2905 = vmatprep.subr.mxu0 0.0
      %2906 = vmatpush1.msra.mxu0 %v2781
      %2907 = vmatprep.subr.mxu0 0.0
      %2908 = vmatpush1.msra.mxu0 %v2780
      %2909 = vmatprep.subr.mxu0 0.0
      %2910 = vmatpush1.msra.mxu0 %v2779
      %2911 = vmatprep.subr.mxu0 0.0
      %2912 = vmatpush1.msra.mxu0 %v2778
      %2913 = vmatprep.subr.mxu0 0.0
      %2914 = vmatpush2.msra.mxu0 0.0
      %2915 = vmatprep.subr.mxu0 0.0
      %2916 = vmatpush2.msra.mxu0 0.0
      %2917 = vmatprep.subr.mxu0 0.0
      %2918 = vmatpush2.msra.mxu0 0.0
      %2919 = vmatprep.subr.mxu0 0.0
      %2920 = vmatpush2.msra.mxu0 0.0
      %2921 = vmatprep.subr.mxu0 0.0
      %2922 = vmatpush2.msra.mxu0 0.0
      %2923 = vmatprep.subr.mxu0 0.0
      %2924 = vmatpush2.msra.mxu0 0.0
      %2925 = vmatprep.subr.mxu0 0.0
      %2926 = vmatpush2.msra.mxu0 0.0
      %2927 = vmatprep.subr.mxu0 0.0
      %2928 = vmatpush2.msra.mxu0 0.0
      %2929 = vmatprep.subr.mxu0 0.0
      %2930 = vmatpush2.msra.mxu0 0.0
      %2931 = vmatprep.subr.mxu0 0.0
      %2932 = vmatpush2.msra.mxu0 0.0
      %2933 = vmatprep.subr.mxu0 0.0
      %2934 = vmatpush2.msra.mxu0 0.0
      %2935 = vmatprep.subr.mxu0 0.0
      %2936 = vmatpush2.msra.mxu0 0.0
      %2937 = vmatprep.subr.mxu0 0.0
      %2938 = vmatpush2.msra.mxu0 0.0
      %2939 = vmatprep.subr.mxu0 0.0
      %2940 = vmatpush2.msra.mxu0 0.0
      %2941 = vmatprep.subr.mxu0 0.0
      %2942 = vmatpush2.msra.mxu0 0.0
      %2943 = vmatprep.subr.mxu0 0.0
      %2944 = vmatpush2.msra.mxu0 0.0
      %2945 = vmatprep.mubr.f32.mxu0 0.0
      %2946 = vmatmul.mubr.f32.gmra.mxu0 %v2786
      %v2947 = vpop.f32.mrf.mxu0
      %v2948 = vadd.f32 0.0, %v2947
      %v2949 = vpop.f32.mrf.mxu0
      %2950 = vmatprep.mubr.f32.mxu0 0.0
      %2951 = vmatmul.mubr.f32.gmra.mxu0 %v2789
      %v2952 = vpop.f32.mrf.mxu0
      %v2953 = vadd.f32 0.0, %v2952
      %v2954 = vpop.f32.mrf.mxu0
      %2955 = vmatprep.mubr.f32.mxu0 0.0
      %2956 = vmatmul.mubr.f32.gmra.mxu0 %v2792
      %v2957 = vpop.f32.mrf.mxu0
      %v2958 = vadd.f32 0.0, %v2957
      %v2959 = vpop.f32.mrf.mxu0
      %2960 = vmatprep.mubr.f32.mxu0 0.0
      %2961 = vmatmul.mubr.f32.gmra.mxu0 %v2795
      %v2962 = vpop.f32.mrf.mxu0
      %v2963 = vadd.f32 0.0, %v2962
      %v2964 = vpop.f32.mrf.mxu0
      %2965 = vmatprep.mubr.f32.mxu0 0.0
      %2966 = vmatmul.mubr.f32.gmra.mxu0 %v2798
      %v2967 = vpop.f32.mrf.mxu0
      %v2968 = vadd.f32 0.0, %v2967
      %v2969 = vpop.f32.mrf.mxu0
      %2970 = vmatprep.mubr.f32.mxu0 0.0
      %2971 = vmatmul.mubr.f32.gmra.mxu0 %v2801
      %v2972 = vpop.f32.mrf.mxu0
      %v2973 = vadd.f32 0.0, %v2972
      %v2974 = vpop.f32.mrf.mxu0
      %2975 = vmatprep.mubr.f32.mxu0 0.0
      %2976 = vmatmul.mubr.f32.gmra.mxu0 %v2804
      %v2977 = vpop.f32.mrf.mxu0
      %v2978 = vadd.f32 0.0, %v2977
      %v2979 = vpop.f32.mrf.mxu0
      %2980 = vmatprep.mubr.f32.mxu0 0.0
      %2981 = vmatmul.mubr.f32.gmra.mxu0 %v2807
      %v2982 = vpop.f32.mrf.mxu0
      %v2983 = vadd.f32 0.0, %v2982
      %v2984 = vpop.f32.mrf.mxu0
      %2985 = vmatprep.mubr.f32.mxu0 0.0
      %2986 = vmatmul.mubr.f32.gmra.mxu0 %v2810
      %v2987 = vpop.f32.mrf.mxu0
      %v2988 = vadd.f32 0.0, %v2987
      %v2989 = vpop.f32.mrf.mxu0
      %2990 = vmatprep.mubr.f32.mxu0 0.0
      %2991 = vmatmul.mubr.f32.gmra.mxu0 %v2813
      %v2992 = vpop.f32.mrf.mxu0
      %v2993 = vadd.f32 0.0, %v2992
      %v2994 = vpop.f32.mrf.mxu0
      %2995 = vmatprep.mubr.f32.mxu0 0.0
      %2996 = vmatmul.mubr.f32.gmra.mxu0 %v2816
      %v2997 = vpop.f32.mrf.mxu0
      %v2998 = vadd.f32 0.0, %v2997
      %v2999 = vpop.f32.mrf.mxu0
      %3000 = vmatprep.mubr.f32.mxu0 0.0
      %3001 = vmatmul.mubr.f32.gmra.mxu0 %v2819
      %v3002 = vpop.f32.mrf.mxu0
      %v3003 = vadd.f32 0.0, %v3002
      %v3004 = vpop.f32.mrf.mxu0
      %3005 = vmatprep.mubr.f32.mxu0 0.0
      %3006 = vmatmul.mubr.f32.gmra.mxu0 %v2822
      %v3007 = vpop.f32.mrf.mxu0
      %v3008 = vadd.f32 0.0, %v3007
      %v3009 = vpop.f32.mrf.mxu0
      %3010 = vmatprep.mubr.f32.mxu0 0.0
      %3011 = vmatmul.mubr.f32.gmra.mxu0 %v2825
      %v3012 = vpop.f32.mrf.mxu0
      %v3013 = vadd.f32 0.0, %v3012
      %v3014 = vpop.f32.mrf.mxu0
      %3015 = vmatprep.mubr.f32.mxu0 0.0
      %3016 = vmatmul.mubr.f32.gmra.mxu0 %v2828
      %v3017 = vpop.f32.mrf.mxu0
      %v3018 = vadd.f32 0.0, %v3017
      %v3019 = vpop.f32.mrf.mxu0
      %3020 = vmatprep.mubr.f32.mxu0 0.0
      %3021 = vmatmul.mubr.f32.gmra.mxu0 %v2831
      %v3022 = vpop.f32.mrf.mxu0
      %v3023 = vadd.f32 0.0, %v3022
      %v3024 = vpop.f32.mrf.mxu0
      %3025 = vmatprep.mubr.f32.mxu0 0.0
      %3026 = vmatmul.mubr.f32.gmra.mxu0 %v2834
      %v3027 = vpop.f32.mrf.mxu0
      %v3028 = vadd.f32 0.0, %v3027
      %v3029 = vpop.f32.mrf.mxu0
      %3030 = vmatprep.mubr.f32.mxu0 0.0
      %3031 = vmatmul.mubr.f32.gmra.mxu0 %v2837
      %v3032 = vpop.f32.mrf.mxu0
      %v3033 = vadd.f32 0.0, %v3032
      %v3034 = vpop.f32.mrf.mxu0
      %3035 = vmatprep.mubr.f32.mxu0 0.0
      %3036 = vmatmul.mubr.f32.gmra.mxu0 %v2840
      %v3037 = vpop.f32.mrf.mxu0
      %v3038 = vadd.f32 0.0, %v3037
      %v3039 = vpop.f32.mrf.mxu0
      %3040 = vmatprep.mubr.f32.mxu0 0.0
      %3041 = vmatmul.mubr.f32.gmra.mxu0 %v2843
      %v3042 = vpop.f32.mrf.mxu0
      %v3043 = vadd.f32 0.0, %v3042
      %v3044 = vpop.f32.mrf.mxu0
      %3045 = vmatprep.mubr.f32.mxu0 0.0
      %3046 = vmatmul.mubr.f32.gmra.mxu0 %v2846
      %v3047 = vpop.f32.mrf.mxu0
      %v3048 = vadd.f32 0.0, %v3047
      %v3049 = vpop.f32.mrf.mxu0
      %3050 = vmatprep.mubr.f32.mxu0 0.0
      %3051 = vmatmul.mubr.f32.gmra.mxu0 %v2849
      %v3052 = vpop.f32.mrf.mxu0
      %v3053 = vadd.f32 0.0, %v3052
      %v3054 = vpop.f32.mrf.mxu0
      %3055 = vmatprep.mubr.f32.mxu0 0.0
      %3056 = vmatmul.mubr.f32.gmra.mxu0 %v2852
      %v3057 = vpop.f32.mrf.mxu0
      %v3058 = vadd.f32 0.0, %v3057
      %v3059 = vpop.f32.mrf.mxu0
      %3060 = vmatprep.mubr.f32.mxu0 0.0
      %3061 = vmatmul.mubr.f32.gmra.mxu0 %v2855
      %v3062 = vpop.f32.mrf.mxu0
      %v3063 = vadd.f32 0.0, %v3062
      %v3064 = vpop.f32.mrf.mxu0
      %3065 = vmatprep.mubr.f32.mxu0 0.0
      %3066 = vmatmul.mubr.f32.gmra.mxu0 %v2858
      %v3067 = vpop.f32.mrf.mxu0
      %v3068 = vadd.f32 0.0, %v3067
      %v3069 = vpop.f32.mrf.mxu0
      %3070 = vmatprep.mubr.f32.mxu0 0.0
      %3071 = vmatmul.mubr.f32.gmra.mxu0 %v2861
      %v3072 = vpop.f32.mrf.mxu0
      %v3073 = vadd.f32 0.0, %v3072
      %v3074 = vpop.f32.mrf.mxu0
      %3075 = vmatprep.mubr.f32.mxu0 0.0
      %3076 = vmatmul.mubr.f32.gmra.mxu0 %v2864
      %v3077 = vpop.f32.mrf.mxu0
      %v3078 = vadd.f32 0.0, %v3077
      %v3079 = vpop.f32.mrf.mxu0
      %3080 = vmatprep.mubr.f32.mxu0 0.0
      %3081 = vmatmul.mubr.f32.gmra.mxu0 %v2867
      %v3082 = vpop.f32.mrf.mxu0
      %v3083 = vadd.f32 0.0, %v3082
      %v3084 = vpop.f32.mrf.mxu0
      %3085 = vmatprep.mubr.f32.mxu0 0.0
      %3086 = vmatmul.mubr.f32.gmra.mxu0 %v2870
      %v3087 = vpop.f32.mrf.mxu0
      %v3088 = vadd.f32 0.0, %v3087
      %v3089 = vpop.f32.mrf.mxu0
      %3090 = vmatprep.mubr.f32.mxu0 0.0
      %3091 = vmatmul.mubr.f32.gmra.mxu0 %v2873
      %v3092 = vpop.f32.mrf.mxu0
      %v3093 = vadd.f32 0.0, %v3092
      %v3094 = vpop.f32.mrf.mxu0
      %3095 = vmatprep.mubr.f32.mxu0 0.0
      %3096 = vmatmul.mubr.f32.gmra.mxu0 %v2876
      %v3097 = vpop.f32.mrf.mxu0
      %v3098 = vadd.f32 0.0, %v3097
      %v3099 = vpop.f32.mrf.mxu0
      %3100 = vmatprep.mubr.f32.mxu0 0.0
      %3101 = vmatmul.mubr.f32.gmra.mxu0 %v2879
      %v3102 = vpop.f32.mrf.mxu0
      %v3103 = vadd.f32 0.0, %v3102
      %v3104 = vpop.f32.mrf.mxu0
      %3105 = vdwg.mxu0
      %v3107 = vsel %vm2784, %v2323, 0
      %v3110 = vsel %vm2784, %v2324, 0
      %v3113 = vsel %vm2784, %v2325, 0
      %v3116 = vsel %vm2784, %v2326, 0
      %v3119 = vsel %vm2784, %v2327, 0
      %v3122 = vsel %vm2784, %v2328, 0
      %v3125 = vsel %vm2784, %v2329, 0
      %v3128 = vsel %vm2784, %v2330, 0
      %v3131 = vsel %vm2784, %v2331, 0
      %v3134 = vsel %vm2784, %v2332, 0
      %v3137 = vsel %vm2784, %v2333, 0
      %v3140 = vsel %vm2784, %v2334, 0
      %v3143 = vsel %vm2784, %v2335, 0
      %v3146 = vsel %vm2784, %v2336, 0
      %v3149 = vsel %vm2784, %v2337, 0
      %v3152 = vsel %vm2784, %v2338, 0
      %v3155 = vsel %vm2784, %v2339, 0
      %v3158 = vsel %vm2784, %v2340, 0
      %v3161 = vsel %vm2784, %v2341, 0
      %v3164 = vsel %vm2784, %v2342, 0
      %v3167 = vsel %vm2784, %v2343, 0
      %v3170 = vsel %vm2784, %v2344, 0
      %v3173 = vsel %vm2784, %v2345, 0
      %v3176 = vsel %vm2784, %v2346, 0
      %v3179 = vsel %vm2784, %v2347, 0
      %v3182 = vsel %vm2784, %v2348, 0
      %v3185 = vsel %vm2784, %v2349, 0
      %v3188 = vsel %vm2784, %v2350, 0
      %v3191 = vsel %vm2784, %v2351, 0
      %v3194 = vsel %vm2784, %v2352, 0
      %v3197 = vsel %vm2784, %v2353, 0
      %v3200 = vsel %vm2784, %v2354, 0
      %3202 = vmatprep.subr.mxu0 0.0
      %3203 = vmatpush1.msra.mxu0 0.0
      %3204 = vmatprep.subr.mxu0 0.0
      %3205 = vmatpush1.msra.mxu0 0.0
      %3206 = vmatprep.subr.mxu0 0.0
      %3207 = vmatpush1.msra.mxu0 0.0
      %3208 = vmatprep.subr.mxu0 0.0
      %3209 = vmatpush1.msra.mxu0 0.0
      %3210 = vmatprep.subr.mxu0 0.0
      %3211 = vmatpush1.msra.mxu0 0.0
      %3212 = vmatprep.subr.mxu0 0.0
      %3213 = vmatpush1.msra.mxu0 0.0
      %3214 = vmatprep.subr.mxu0 0.0
      %3215 = vmatpush1.msra.mxu0 0.0
      %3216 = vmatprep.subr.mxu0 0.0
      %3217 = vmatpush1.msra.mxu0 0.0
      %3218 = vmatprep.subr.mxu0 0.0
      %3219 = vmatpush1.msra.mxu0 0.0
      %3220 = vmatprep.subr.mxu0 0.0
      %3221 = vmatpush1.msra.mxu0 0.0
      %3222 = vmatprep.subr.mxu0 0.0
      %3223 = vmatpush1.msra.mxu0 %v2360
      %3224 = vmatprep.subr.mxu0 0.0
      %3225 = vmatpush1.msra.mxu0 %v2359
      %3226 = vmatprep.subr.mxu0 0.0
      %3227 = vmatpush1.msra.mxu0 %v2358
      %3228 = vmatprep.subr.mxu0 0.0
      %3229 = vmatpush1.msra.mxu0 %v2357
      %3230 = vmatprep.subr.mxu0 0.0
      %3231 = vmatpush1.msra.mxu0 %v2356
      %3232 = vmatprep.subr.mxu0 0.0
      %3233 = vmatpush1.msra.mxu0 %v2355
      %3234 = vmatprep.subr.mxu0 0.0
      %3235 = vmatpush2.msra.mxu0 0.0
      %3236 = vmatprep.subr.mxu0 0.0
      %3237 = vmatpush2.msra.mxu0 0.0
      %3238 = vmatprep.subr.mxu0 0.0
      %3239 = vmatpush2.msra.mxu0 0.0
      %3240 = vmatprep.subr.mxu0 0.0
      %3241 = vmatpush2.msra.mxu0 0.0
      %3242 = vmatprep.subr.mxu0 0.0
      %3243 = vmatpush2.msra.mxu0 0.0
      %3244 = vmatprep.subr.mxu0 0.0
      %3245 = vmatpush2.msra.mxu0 0.0
      %3246 = vmatprep.subr.mxu0 0.0
      %3247 = vmatpush2.msra.mxu0 0.0
      %3248 = vmatprep.subr.mxu0 0.0
      %3249 = vmatpush2.msra.mxu0 0.0
      %3250 = vmatprep.subr.mxu0 0.0
      %3251 = vmatpush2.msra.mxu0 0.0
      %3252 = vmatprep.subr.mxu0 0.0
      %3253 = vmatpush2.msra.mxu0 0.0
      %3254 = vmatprep.subr.mxu0 0.0
      %3255 = vmatpush2.msra.mxu0 0.0
      %3256 = vmatprep.subr.mxu0 0.0
      %3257 = vmatpush2.msra.mxu0 0.0
      %3258 = vmatprep.subr.mxu0 0.0
      %3259 = vmatpush2.msra.mxu0 0.0
      %3260 = vmatprep.subr.mxu0 0.0
      %3261 = vmatpush2.msra.mxu0 0.0
      %3262 = vmatprep.subr.mxu0 0.0
      %3263 = vmatpush2.msra.mxu0 0.0
      %3264 = vmatprep.subr.mxu0 0.0
      %3265 = vmatpush2.msra.mxu0 0.0
      %3266 = vmatprep.mubr.f32.mxu0 0.0
      %3267 = vmatmul.mubr.f32.gmra.mxu0 %v3107
      %v3268 = vpop.f32.mrf.mxu0
      %v3269 = vadd.f32 %v2948, %v3268
      %v3270 = vpop.f32.mrf.mxu0
      %3271 = vmatprep.mubr.f32.mxu0 0.0
      %3272 = vmatmul.mubr.f32.gmra.mxu0 %v3110
      %v3273 = vpop.f32.mrf.mxu0
      %v3274 = vadd.f32 %v2953, %v3273
      %v3275 = vpop.f32.mrf.mxu0
      %3276 = vmatprep.mubr.f32.mxu0 0.0
      %3277 = vmatmul.mubr.f32.gmra.mxu0 %v3113
      %v3278 = vpop.f32.mrf.mxu0
      %v3279 = vadd.f32 %v2958, %v3278
      %v3280 = vpop.f32.mrf.mxu0
      %3281 = vmatprep.mubr.f32.mxu0 0.0
      %3282 = vmatmul.mubr.f32.gmra.mxu0 %v3116
      %v3283 = vpop.f32.mrf.mxu0
      %v3284 = vadd.f32 %v2963, %v3283
      %v3285 = vpop.f32.mrf.mxu0
      %3286 = vmatprep.mubr.f32.mxu0 0.0
      %3287 = vmatmul.mubr.f32.gmra.mxu0 %v3119
      %v3288 = vpop.f32.mrf.mxu0
      %v3289 = vadd.f32 %v2968, %v3288
      %v3290 = vpop.f32.mrf.mxu0
      %3291 = vmatprep.mubr.f32.mxu0 0.0
      %3292 = vmatmul.mubr.f32.gmra.mxu0 %v3122
      %v3293 = vpop.f32.mrf.mxu0
      %v3294 = vadd.f32 %v2973, %v3293
      %v3295 = vpop.f32.mrf.mxu0
      %3296 = vmatprep.mubr.f32.mxu0 0.0
      %3297 = vmatmul.mubr.f32.gmra.mxu0 %v3125
      %v3298 = vpop.f32.mrf.mxu0
      %v3299 = vadd.f32 %v2978, %v3298
      %v3300 = vpop.f32.mrf.mxu0
      %3301 = vmatprep.mubr.f32.mxu0 0.0
      %3302 = vmatmul.mubr.f32.gmra.mxu0 %v3128
      %v3303 = vpop.f32.mrf.mxu0
      %v3304 = vadd.f32 %v2983, %v3303
      %v3305 = vpop.f32.mrf.mxu0
      %3306 = vmatprep.mubr.f32.mxu0 0.0
      %3307 = vmatmul.mubr.f32.gmra.mxu0 %v3131
      %v3308 = vpop.f32.mrf.mxu0
      %v3309 = vadd.f32 %v2988, %v3308
      %v3310 = vpop.f32.mrf.mxu0
      %3311 = vmatprep.mubr.f32.mxu0 0.0
      %3312 = vmatmul.mubr.f32.gmra.mxu0 %v3134
      %v3313 = vpop.f32.mrf.mxu0
      %v3314 = vadd.f32 %v2993, %v3313
      %v3315 = vpop.f32.mrf.mxu0
      %3316 = vmatprep.mubr.f32.mxu0 0.0
      %3317 = vmatmul.mubr.f32.gmra.mxu0 %v3137
      %v3318 = vpop.f32.mrf.mxu0
      %v3319 = vadd.f32 %v2998, %v3318
      %v3320 = vpop.f32.mrf.mxu0
      %3321 = vmatprep.mubr.f32.mxu0 0.0
      %3322 = vmatmul.mubr.f32.gmra.mxu0 %v3140
      %v3323 = vpop.f32.mrf.mxu0
      %v3324 = vadd.f32 %v3003, %v3323
      %v3325 = vpop.f32.mrf.mxu0
      %3326 = vmatprep.mubr.f32.mxu0 0.0
      %3327 = vmatmul.mubr.f32.gmra.mxu0 %v3143
      %v3328 = vpop.f32.mrf.mxu0
      %v3329 = vadd.f32 %v3008, %v3328
      %v3330 = vpop.f32.mrf.mxu0
      %3331 = vmatprep.mubr.f32.mxu0 0.0
      %3332 = vmatmul.mubr.f32.gmra.mxu0 %v3146
      %v3333 = vpop.f32.mrf.mxu0
      %v3334 = vadd.f32 %v3013, %v3333
      %v3335 = vpop.f32.mrf.mxu0
      %3336 = vmatprep.mubr.f32.mxu0 0.0
      %3337 = vmatmul.mubr.f32.gmra.mxu0 %v3149
      %v3338 = vpop.f32.mrf.mxu0
      %v3339 = vadd.f32 %v3018, %v3338
      %v3340 = vpop.f32.mrf.mxu0
      %3341 = vmatprep.mubr.f32.mxu0 0.0
      %3342 = vmatmul.mubr.f32.gmra.mxu0 %v3152
      %v3343 = vpop.f32.mrf.mxu0
      %v3344 = vadd.f32 %v3023, %v3343
      %v3345 = vpop.f32.mrf.mxu0
      %3346 = vmatprep.mubr.f32.mxu0 0.0
      %3347 = vmatmul.mubr.f32.gmra.mxu0 %v3155
      %v3348 = vpop.f32.mrf.mxu0
      %v3349 = vadd.f32 %v3028, %v3348
      %v3350 = vpop.f32.mrf.mxu0
      %3351 = vmatprep.mubr.f32.mxu0 0.0
      %3352 = vmatmul.mubr.f32.gmra.mxu0 %v3158
      %v3353 = vpop.f32.mrf.mxu0
      %v3354 = vadd.f32 %v3033, %v3353
      %v3355 = vpop.f32.mrf.mxu0
      %3356 = vmatprep.mubr.f32.mxu0 0.0
      %3357 = vmatmul.mubr.f32.gmra.mxu0 %v3161
      %v3358 = vpop.f32.mrf.mxu0
      %v3359 = vadd.f32 %v3038, %v3358
      %v3360 = vpop.f32.mrf.mxu0
      %3361 = vmatprep.mubr.f32.mxu0 0.0
      %3362 = vmatmul.mubr.f32.gmra.mxu0 %v3164
      %v3363 = vpop.f32.mrf.mxu0
      %v3364 = vadd.f32 %v3043, %v3363
      %v3365 = vpop.f32.mrf.mxu0
      %3366 = vmatprep.mubr.f32.mxu0 0.0
      %3367 = vmatmul.mubr.f32.gmra.mxu0 %v3167
      %v3368 = vpop.f32.mrf.mxu0
      %v3369 = vadd.f32 %v3048, %v3368
      %v3370 = vpop.f32.mrf.mxu0
      %3371 = vmatprep.mubr.f32.mxu0 0.0
      %3372 = vmatmul.mubr.f32.gmra.mxu0 %v3170
      %v3373 = vpop.f32.mrf.mxu0
      %v3374 = vadd.f32 %v3053, %v3373
      %v3375 = vpop.f32.mrf.mxu0
      %3376 = vmatprep.mubr.f32.mxu0 0.0
      %3377 = vmatmul.mubr.f32.gmra.mxu0 %v3173
      %v3378 = vpop.f32.mrf.mxu0
      %v3379 = vadd.f32 %v3058, %v3378
      %v3380 = vpop.f32.mrf.mxu0
      %3381 = vmatprep.mubr.f32.mxu0 0.0
      %3382 = vmatmul.mubr.f32.gmra.mxu0 %v3176
      %v3383 = vpop.f32.mrf.mxu0
      %v3384 = vadd.f32 %v3063, %v3383
      %v3385 = vpop.f32.mrf.mxu0
      %3386 = vmatprep.mubr.f32.mxu0 0.0
      %3387 = vmatmul.mubr.f32.gmra.mxu0 %v3179
      %v3388 = vpop.f32.mrf.mxu0
      %v3389 = vadd.f32 %v3068, %v3388
      %v3390 = vpop.f32.mrf.mxu0
      %3391 = vmatprep.mubr.f32.mxu0 0.0
      %3392 = vmatmul.mubr.f32.gmra.mxu0 %v3182
      %v3393 = vpop.f32.mrf.mxu0
      %v3394 = vadd.f32 %v3073, %v3393
      %v3395 = vpop.f32.mrf.mxu0
      %3396 = vmatprep.mubr.f32.mxu0 0.0
      %3397 = vmatmul.mubr.f32.gmra.mxu0 %v3185
      %v3398 = vpop.f32.mrf.mxu0
      %v3399 = vadd.f32 %v3078, %v3398
      %v3400 = vpop.f32.mrf.mxu0
      %3401 = vmatprep.mubr.f32.mxu0 0.0
      %3402 = vmatmul.mubr.f32.gmra.mxu0 %v3188
      %v3403 = vpop.f32.mrf.mxu0
      %v3404 = vadd.f32 %v3083, %v3403
      %v3405 = vpop.f32.mrf.mxu0
      %3406 = vmatprep.mubr.f32.mxu0 0.0
      %3407 = vmatmul.mubr.f32.gmra.mxu0 %v3191
      %v3408 = vpop.f32.mrf.mxu0
      %v3409 = vadd.f32 %v3088, %v3408
      %v3410 = vpop.f32.mrf.mxu0
      %3411 = vmatprep.mubr.f32.mxu0 0.0
      %3412 = vmatmul.mubr.f32.gmra.mxu0 %v3194
      %v3413 = vpop.f32.mrf.mxu0
      %v3414 = vadd.f32 %v3093, %v3413
      %v3415 = vpop.f32.mrf.mxu0
      %3416 = vmatprep.mubr.f32.mxu0 0.0
      %3417 = vmatmul.mubr.f32.gmra.mxu0 %v3197
      %v3418 = vpop.f32.mrf.mxu0
      %v3419 = vadd.f32 %v3098, %v3418
      %v3420 = vpop.f32.mrf.mxu0
      %3421 = vmatprep.mubr.f32.mxu0 0.0
      %3422 = vmatmul.mubr.f32.gmra.mxu0 %v3200
      %v3423 = vpop.f32.mrf.mxu0
      %v3424 = vadd.f32 %v3103, %v3423
      %v3425 = vpop.f32.mrf.mxu0
      %3426 = vdwg.mxu0
      %s3427 = scalar_lea.vmem [#allocation2], 48
      %v3428 = vld [vmem:[%s3427] sm:$0xff]
      %v3429 = vld [vmem:[%s3427 + $0x8] sm:$0xff]
      %v3430 = vld [vmem:[%s3427 + $0x18] sm:$0xff]
      %v3431 = vld [vmem:[%s3427 + $0x20] sm:$0xff]
      %v3432 = vld [vmem:[%s3427 + $0x30] sm:$0xff]
      %v3433 = vld [vmem:[%s3427 + $0x38] sm:$0xff]
      %v3434 = vld [vmem:[%s3427 + $0x48] sm:$0xff]
      %v3435 = vld [vmem:[%s3427 + $0x50] sm:$0xff]
      %v3436 = vld [vmem:[%s3427 + $0x60] sm:$0xff]
      %v3437 = vld [vmem:[%s3427 + $0x68] sm:$0xff]
      %v3438 = vld [vmem:[%s3427 + $0x78] sm:$0xff]
      %v3439 = vld [vmem:[%s3427 + $0x80] sm:$0xff]
      %v3440 = vld [vmem:[%s3427 + $0x90] sm:$0xff]
      %v3441 = vld [vmem:[%s3427 + $0x98] sm:$0xff]
      %v3442 = vld [vmem:[%s3427 + $0xa8] sm:$0xff]
      %v3443 = vld [vmem:[%s3427 + $0xb0] sm:$0xff]
      %v3444 = vld [vmem:[%s3427 + $0xc0] sm:$0xff]
      %v3445 = vld [vmem:[%s3427 + $0xc8] sm:$0xff]
      %v3446 = vld [vmem:[%s3427 + $0xd8] sm:$0xff]
      %v3447 = vld [vmem:[%s3427 + $0xe0] sm:$0xff]
      %v3448 = vld [vmem:[%s3427 + $0xf0] sm:$0xff]
      %v3449 = vld [vmem:[%s3427 + $0xf8] sm:$0xff]
      %v3450 = vld [vmem:[%s3427 + $0x108] sm:$0xff]
      %v3451 = vld [vmem:[%s3427 + $0x110] sm:$0xff]
      %v3452 = vld [vmem:[%s3427 + $0x120] sm:$0xff]
      %v3453 = vld [vmem:[%s3427 + $0x128] sm:$0xff]
      %v3454 = vld [vmem:[%s3427 + $0x138] sm:$0xff]
      %v3455 = vld [vmem:[%s3427 + $0x140] sm:$0xff]
      %v3456 = vld [vmem:[%s3427 + $0x150] sm:$0xff]
      %v3457 = vld [vmem:[%s3427 + $0x158] sm:$0xff]
      %v3458 = vld [vmem:[%s3427 + $0x168] sm:$0xff]
      %v3459 = vld [vmem:[%s3427 + $0x170] sm:$0xff]
      %v3460 = vld [vmem:[%s3427 + $0x1] sm:$0xff]
      %v3461 = vld [vmem:[%s3427 + $0x9] sm:$0xff]
      %v3462 = vld [vmem:[%s3427 + $0x19] sm:$0xff]
      %v3463 = vld [vmem:[%s3427 + $0x21] sm:$0xff]
      %v3464 = vld [vmem:[%s3427 + $0x31] sm:$0xff]
      %v3465 = vld [vmem:[%s3427 + $0x39] sm:$0xff]
      %v3466 = vld [vmem:[%s3427 + $0x49] sm:$0xff]
      %v3467 = vld [vmem:[%s3427 + $0x51] sm:$0xff]
      %v3468 = vld [vmem:[%s3427 + $0x61] sm:$0xff]
      %v3469 = vld [vmem:[%s3427 + $0x69] sm:$0xff]
      %v3470 = vld [vmem:[%s3427 + $0x79] sm:$0xff]
      %v3471 = vld [vmem:[%s3427 + $0x81] sm:$0xff]
      %v3472 = vld [vmem:[%s3427 + $0x91] sm:$0xff]
      %v3473 = vld [vmem:[%s3427 + $0x99] sm:$0xff]
      %v3474 = vld [vmem:[%s3427 + $0xa9] sm:$0xff]
      %v3475 = vld [vmem:[%s3427 + $0xb1] sm:$0xff]
      %v3476 = vld [vmem:[%s3427 + $0xc1] sm:$0xff]
      %v3477 = vld [vmem:[%s3427 + $0xc9] sm:$0xff]
      %v3478 = vld [vmem:[%s3427 + $0xd9] sm:$0xff]
      %v3479 = vld [vmem:[%s3427 + $0xe1] sm:$0xff]
      %v3480 = vld [vmem:[%s3427 + $0xf1] sm:$0xff]
      %v3481 = vld [vmem:[%s3427 + $0xf9] sm:$0xff]
      %v3482 = vld [vmem:[%s3427 + $0x109] sm:$0xff]
      %v3483 = vld [vmem:[%s3427 + $0x111] sm:$0xff]
      %v3484 = vld [vmem:[%s3427 + $0x121] sm:$0xff]
      %v3485 = vld [vmem:[%s3427 + $0x129] sm:$0xff]
      %v3486 = vld [vmem:[%s3427 + $0x139] sm:$0xff]
      %v3487 = vld [vmem:[%s3427 + $0x141] sm:$0xff]
      %v3488 = vld [vmem:[%s3427 + $0x151] sm:$0xff]
      %v3489 = vld [vmem:[%s3427 + $0x159] sm:$0xff]
      %v3490 = vld [vmem:[%s3427 + $0x169] sm:$0xff]
      %v3491 = vld [vmem:[%s3427 + $0x171] sm:$0xff]
      %v3492 = vld [vmem:[%s3427 + $0x2] sm:$0xff]
      %v3493 = vld [vmem:[%s3427 + $0xa] sm:$0xff]
      %v3494 = vld [vmem:[%s3427 + $0x1a] sm:$0xff]
      %v3495 = vld [vmem:[%s3427 + $0x22] sm:$0xff]
      %v3496 = vld [vmem:[%s3427 + $0x32] sm:$0xff]
      %v3497 = vld [vmem:[%s3427 + $0x3a] sm:$0xff]
      %v3498 = vld [vmem:[%s3427 + $0x4a] sm:$0xff]
      %v3499 = vld [vmem:[%s3427 + $0x52] sm:$0xff]
      %v3500 = vld [vmem:[%s3427 + $0x62] sm:$0xff]
      %v3501 = vld [vmem:[%s3427 + $0x6a] sm:$0xff]
      %v3502 = vld [vmem:[%s3427 + $0x7a] sm:$0xff]
      %v3503 = vld [vmem:[%s3427 + $0x82] sm:$0xff]
      %v3504 = vld [vmem:[%s3427 + $0x92] sm:$0xff]
      %v3505 = vld [vmem:[%s3427 + $0x9a] sm:$0xff]
      %v3506 = vld [vmem:[%s3427 + $0xaa] sm:$0xff]
      %v3507 = vld [vmem:[%s3427 + $0xb2] sm:$0xff]
      %v3508 = vld [vmem:[%s3427 + $0xc2] sm:$0xff]
      %v3509 = vld [vmem:[%s3427 + $0xca] sm:$0xff]
      %v3510 = vld [vmem:[%s3427 + $0xda] sm:$0xff]
      %v3511 = vld [vmem:[%s3427 + $0xe2] sm:$0xff]
      %v3512 = vld [vmem:[%s3427 + $0xf2] sm:$0xff]
      %v3513 = vld [vmem:[%s3427 + $0xfa] sm:$0xff]
      %v3514 = vld [vmem:[%s3427 + $0x10a] sm:$0xff]
      %v3515 = vld [vmem:[%s3427 + $0x112] sm:$0xff]
      %v3516 = vld [vmem:[%s3427 + $0x122] sm:$0xff]
      %v3517 = vld [vmem:[%s3427 + $0x12a] sm:$0xff]
      %v3518 = vld [vmem:[%s3427 + $0x13a] sm:$0xff]
      %v3519 = vld [vmem:[%s3427 + $0x142] sm:$0xff]
      %v3520 = vld [vmem:[%s3427 + $0x152] sm:$0xff]
      %v3521 = vld [vmem:[%s3427 + $0x15a] sm:$0xff]
      %v3522 = vld [vmem:[%s3427 + $0x16a] sm:$0xff]
      %v3523 = vld [vmem:[%s3427 + $0x172] sm:$0xff]
      %3556 = vrot.lane.b32.xlu0 %v3460, 16
      %v3557 = vpop.permute.xlu0 %3556
      %3558 = vrot.lane.b32.xlu0 %v3461, 16
      %v3559 = vpop.permute.xlu0 %3558
      %3560 = vrot.lane.b32.xlu0 %v3462, 16
      %v3561 = vpop.permute.xlu0 %3560
      %3562 = vrot.lane.b32.xlu0 %v3463, 16
      %v3563 = vpop.permute.xlu0 %3562
      %3564 = vrot.lane.b32.xlu0 %v3464, 16
      %v3565 = vpop.permute.xlu0 %3564
      %3566 = vrot.lane.b32.xlu0 %v3465, 16
      %v3567 = vpop.permute.xlu0 %3566
      %3568 = vrot.lane.b32.xlu0 %v3466, 16
      %v3569 = vpop.permute.xlu0 %3568
      %3570 = vrot.lane.b32.xlu0 %v3467, 16
      %v3571 = vpop.permute.xlu0 %3570
      %3572 = vrot.lane.b32.xlu0 %v3468, 16
      %v3573 = vpop.permute.xlu0 %3572
      %3574 = vrot.lane.b32.xlu0 %v3469, 16
      %v3575 = vpop.permute.xlu0 %3574
      %3576 = vrot.lane.b32.xlu0 %v3470, 16
      %v3577 = vpop.permute.xlu0 %3576
      %3578 = vrot.lane.b32.xlu0 %v3471, 16
      %v3579 = vpop.permute.xlu0 %3578
      %3580 = vrot.lane.b32.xlu0 %v3472, 16
      %v3581 = vpop.permute.xlu0 %3580
      %3582 = vrot.lane.b32.xlu0 %v3473, 16
      %v3583 = vpop.permute.xlu0 %3582
      %3584 = vrot.lane.b32.xlu0 %v3474, 16
      %v3585 = vpop.permute.xlu0 %3584
      %3586 = vrot.lane.b32.xlu0 %v3475, 16
      %v3587 = vpop.permute.xlu0 %3586
      %3588 = vrot.lane.b32.xlu0 %v3476, 16
      %v3589 = vpop.permute.xlu0 %3588
      %3590 = vrot.lane.b32.xlu0 %v3477, 16
      %v3591 = vpop.permute.xlu0 %3590
      %3592 = vrot.lane.b32.xlu0 %v3478, 16
      %v3593 = vpop.permute.xlu0 %3592
      %3594 = vrot.lane.b32.xlu0 %v3479, 16
      %v3595 = vpop.permute.xlu0 %3594
      %3596 = vrot.lane.b32.xlu0 %v3480, 16
      %v3597 = vpop.permute.xlu0 %3596
      %3598 = vrot.lane.b32.xlu0 %v3481, 16
      %v3599 = vpop.permute.xlu0 %3598
      %3600 = vrot.lane.b32.xlu0 %v3482, 16
      %v3601 = vpop.permute.xlu0 %3600
      %3602 = vrot.lane.b32.xlu0 %v3483, 16
      %v3603 = vpop.permute.xlu0 %3602
      %3604 = vrot.lane.b32.xlu0 %v3484, 16
      %v3605 = vpop.permute.xlu0 %3604
      %3606 = vrot.lane.b32.xlu0 %v3485, 16
      %v3607 = vpop.permute.xlu0 %3606
      %3608 = vrot.lane.b32.xlu0 %v3486, 16
      %v3609 = vpop.permute.xlu0 %3608
      %3610 = vrot.lane.b32.xlu0 %v3487, 16
      %v3611 = vpop.permute.xlu0 %3610
      %3612 = vrot.lane.b32.xlu0 %v3488, 16
      %v3613 = vpop.permute.xlu0 %3612
      %3614 = vrot.lane.b32.xlu0 %v3489, 16
      %v3615 = vpop.permute.xlu0 %3614
      %3616 = vrot.lane.b32.xlu0 %v3490, 16
      %v3617 = vpop.permute.xlu0 %3616
      %3618 = vrot.lane.b32.xlu0 %v3491, 16
      %v3619 = vpop.permute.xlu0 %3618
      %3684 = vrot.lane.b32.xlu0 %v3492, 32
      %v3685 = vpop.permute.xlu0 %3684
      %3686 = vrot.lane.b32.xlu0 %v3493, 32
      %v3687 = vpop.permute.xlu0 %3686
      %3688 = vrot.lane.b32.xlu0 %v3494, 32
      %v3689 = vpop.permute.xlu0 %3688
      %3690 = vrot.lane.b32.xlu0 %v3495, 32
      %v3691 = vpop.permute.xlu0 %3690
      %3692 = vrot.lane.b32.xlu0 %v3496, 32
      %v3693 = vpop.permute.xlu0 %3692
      %3694 = vrot.lane.b32.xlu0 %v3497, 32
      %v3695 = vpop.permute.xlu0 %3694
      %3696 = vrot.lane.b32.xlu0 %v3498, 32
      %v3697 = vpop.permute.xlu0 %3696
      %3698 = vrot.lane.b32.xlu0 %v3499, 32
      %v3699 = vpop.permute.xlu0 %3698
      %3700 = vrot.lane.b32.xlu0 %v3500, 32
      %v3701 = vpop.permute.xlu0 %3700
      %3702 = vrot.lane.b32.xlu0 %v3501, 32
      %v3703 = vpop.permute.xlu0 %3702
      %3704 = vrot.lane.b32.xlu0 %v3502, 32
      %v3705 = vpop.permute.xlu0 %3704
      %3706 = vrot.lane.b32.xlu0 %v3503, 32
      %v3707 = vpop.permute.xlu0 %3706
      %3708 = vrot.lane.b32.xlu0 %v3504, 32
      %v3709 = vpop.permute.xlu0 %3708
      %3710 = vrot.lane.b32.xlu0 %v3505, 32
      %v3711 = vpop.permute.xlu0 %3710
      %3712 = vrot.lane.b32.xlu0 %v3506, 32
      %v3713 = vpop.permute.xlu0 %3712
      %3714 = vrot.lane.b32.xlu0 %v3507, 32
      %v3715 = vpop.permute.xlu0 %3714
      %3716 = vrot.lane.b32.xlu0 %v3508, 32
      %v3717 = vpop.permute.xlu0 %3716
      %3718 = vrot.lane.b32.xlu0 %v3509, 32
      %v3719 = vpop.permute.xlu0 %3718
      %3720 = vrot.lane.b32.xlu0 %v3510, 32
      %v3721 = vpop.permute.xlu0 %3720
      %3722 = vrot.lane.b32.xlu0 %v3511, 32
      %v3723 = vpop.permute.xlu0 %3722
      %3724 = vrot.lane.b32.xlu0 %v3512, 32
      %v3725 = vpop.permute.xlu0 %3724
      %3726 = vrot.lane.b32.xlu0 %v3513, 32
      %v3727 = vpop.permute.xlu0 %3726
      %3728 = vrot.lane.b32.xlu0 %v3514, 32
      %v3729 = vpop.permute.xlu0 %3728
      %3730 = vrot.lane.b32.xlu0 %v3515, 32
      %v3731 = vpop.permute.xlu0 %3730
      %3732 = vrot.lane.b32.xlu0 %v3516, 32
      %v3733 = vpop.permute.xlu0 %3732
      %3734 = vrot.lane.b32.xlu0 %v3517, 32
      %v3735 = vpop.permute.xlu0 %3734
      %3736 = vrot.lane.b32.xlu0 %v3518, 32
      %v3737 = vpop.permute.xlu0 %3736
      %3738 = vrot.lane.b32.xlu0 %v3519, 32
      %v3739 = vpop.permute.xlu0 %3738
      %3740 = vrot.lane.b32.xlu0 %v3520, 32
      %v3741 = vpop.permute.xlu0 %3740
      %3742 = vrot.lane.b32.xlu0 %v3521, 32
      %v3743 = vpop.permute.xlu0 %3742
      %3744 = vrot.lane.b32.xlu0 %v3522, 32
      %v3745 = vpop.permute.xlu0 %3744
      %3746 = vrot.lane.b32.xlu0 %v3523, 32
      %v3747 = vpop.permute.xlu0 %3746
      %v3780 = vsel %vm326, %v3428, %v3557
      %v3781 = vsel %vm326, %v3429, %v3559
      %v3782 = vsel %vm326, %v3430, %v3561
      %v3783 = vsel %vm326, %v3431, %v3563
      %v3784 = vsel %vm326, %v3432, %v3565
      %v3785 = vsel %vm326, %v3433, %v3567
      %v3786 = vsel %vm326, %v3434, %v3569
      %v3787 = vsel %vm326, %v3435, %v3571
      %v3788 = vsel %vm326, %v3436, %v3573
      %v3789 = vsel %vm326, %v3437, %v3575
      %v3790 = vsel %vm326, %v3438, %v3577
      %v3791 = vsel %vm326, %v3439, %v3579
      %v3792 = vsel %vm326, %v3440, %v3581
      %v3793 = vsel %vm326, %v3441, %v3583
      %v3794 = vsel %vm326, %v3442, %v3585
      %v3795 = vsel %vm326, %v3443, %v3587
      %v3796 = vsel %vm326, %v3444, %v3589
      %v3797 = vsel %vm326, %v3445, %v3591
      %v3798 = vsel %vm326, %v3446, %v3593
      %v3799 = vsel %vm326, %v3447, %v3595
      %v3800 = vsel %vm326, %v3448, %v3597
      %v3801 = vsel %vm326, %v3449, %v3599
      %v3802 = vsel %vm326, %v3450, %v3601
      %v3803 = vsel %vm326, %v3451, %v3603
      %v3804 = vsel %vm326, %v3452, %v3605
      %v3805 = vsel %vm326, %v3453, %v3607
      %v3806 = vsel %vm326, %v3454, %v3609
      %v3807 = vsel %vm326, %v3455, %v3611
      %v3808 = vsel %vm326, %v3456, %v3613
      %v3809 = vsel %vm326, %v3457, %v3615
      %v3810 = vsel %vm326, %v3458, %v3617
      %v3811 = vsel %vm326, %v3459, %v3619
      %v3812 = vsel %vm2322, %v3780, %v3685
      %v3813 = vsel %vm2322, %v3781, %v3687
      %v3814 = vsel %vm2322, %v3782, %v3689
      %v3815 = vsel %vm2322, %v3783, %v3691
      %v3816 = vsel %vm2322, %v3784, %v3693
      %v3817 = vsel %vm2322, %v3785, %v3695
      %v3818 = vsel %vm2322, %v3786, %v3697
      %v3819 = vsel %vm2322, %v3787, %v3699
      %v3820 = vsel %vm2322, %v3788, %v3701
      %v3821 = vsel %vm2322, %v3789, %v3703
      %v3822 = vsel %vm2322, %v3790, %v3705
      %v3823 = vsel %vm2322, %v3791, %v3707
      %v3824 = vsel %vm2322, %v3792, %v3709
      %v3825 = vsel %vm2322, %v3793, %v3711
      %v3826 = vsel %vm2322, %v3794, %v3713
      %v3827 = vsel %vm2322, %v3795, %v3715
      %v3828 = vsel %vm2322, %v3796, %v3717
      %v3829 = vsel %vm2322, %v3797, %v3719
      %v3830 = vsel %vm2322, %v3798, %v3721
      %v3831 = vsel %vm2322, %v3799, %v3723
      %v3832 = vsel %vm2322, %v3800, %v3725
      %v3833 = vsel %vm2322, %v3801, %v3727
      %v3834 = vsel %vm2322, %v3802, %v3729
      %v3835 = vsel %vm2322, %v3803, %v3731
      %v3836 = vsel %vm2322, %v3804, %v3733
      %v3837 = vsel %vm2322, %v3805, %v3735
      %v3838 = vsel %vm2322, %v3806, %v3737
      %v3839 = vsel %vm2322, %v3807, %v3739
      %v3840 = vsel %vm2322, %v3808, %v3741
      %v3841 = vsel %vm2322, %v3809, %v3743
      %v3842 = vsel %vm2322, %v3810, %v3745
      %v3843 = vsel %vm2322, %v3811, %v3747
      %s3844 = scalar_lea.vmem %s4, 96
      %v3845 = vld [vmem:[%s3844] sm:$0xff]
      %v3846 = vld [vmem:[%s3844 + $0x8] sm:$0xff]
      %v3847 = vld [vmem:[%s3844 + $0x10] sm:$0xff]
      %v3848 = vld [vmem:[%s3844 + $0x18] sm:$0xff]
      %v3849 = vld [vmem:[%s3844 + $0x20] sm:$0xff]
      %v3850 = vld [vmem:[%s3844 + $0x28] sm:$0xff]
      %v3852 = vsel %vm2784, %v3812, 0
      %v3855 = vsel %vm2784, %v3813, 0
      %v3858 = vsel %vm2784, %v3814, 0
      %v3861 = vsel %vm2784, %v3815, 0
      %v3864 = vsel %vm2784, %v3816, 0
      %v3867 = vsel %vm2784, %v3817, 0
      %v3870 = vsel %vm2784, %v3818, 0
      %v3873 = vsel %vm2784, %v3819, 0
      %v3876 = vsel %vm2784, %v3820, 0
      %v3879 = vsel %vm2784, %v3821, 0
      %v3882 = vsel %vm2784, %v3822, 0
      %v3885 = vsel %vm2784, %v3823, 0
      %v3888 = vsel %vm2784, %v3824, 0
      %v3891 = vsel %vm2784, %v3825, 0
      %v3894 = vsel %vm2784, %v3826, 0
      %v3897 = vsel %vm2784, %v3827, 0
      %v3900 = vsel %vm2784, %v3828, 0
      %v3903 = vsel %vm2784, %v3829, 0
      %v3906 = vsel %vm2784, %v3830, 0
      %v3909 = vsel %vm2784, %v3831, 0
      %v3912 = vsel %vm2784, %v3832, 0
      %v3915 = vsel %vm2784, %v3833, 0
      %v3918 = vsel %vm2784, %v3834, 0
      %v3921 = vsel %vm2784, %v3835, 0
      %v3924 = vsel %vm2784, %v3836, 0
      %v3927 = vsel %vm2784, %v3837, 0
      %v3930 = vsel %vm2784, %v3838, 0
      %v3933 = vsel %vm2784, %v3839, 0
      %v3936 = vsel %vm2784, %v3840, 0
      %v3939 = vsel %vm2784, %v3841, 0
      %v3942 = vsel %vm2784, %v3842, 0
      %v3945 = vsel %vm2784, %v3843, 0
      %3947 = vmatprep.subr.mxu0 0.0
      %3948 = vmatpush1.msra.mxu0 0.0
      %3949 = vmatprep.subr.mxu0 0.0
      %3950 = vmatpush1.msra.mxu0 0.0
      %3951 = vmatprep.subr.mxu0 0.0
      %3952 = vmatpush1.msra.mxu0 0.0
      %3953 = vmatprep.subr.mxu0 0.0
      %3954 = vmatpush1.msra.mxu0 0.0
      %3955 = vmatprep.subr.mxu0 0.0
      %3956 = vmatpush1.msra.mxu0 0.0
      %3957 = vmatprep.subr.mxu0 0.0
      %3958 = vmatpush1.msra.mxu0 0.0
      %3959 = vmatprep.subr.mxu0 0.0
      %3960 = vmatpush1.msra.mxu0 0.0
      %3961 = vmatprep.subr.mxu0 0.0
      %3962 = vmatpush1.msra.mxu0 0.0
      %3963 = vmatprep.subr.mxu0 0.0
      %3964 = vmatpush1.msra.mxu0 0.0
      %3965 = vmatprep.subr.mxu0 0.0
      %3966 = vmatpush1.msra.mxu0 0.0
      %3967 = vmatprep.subr.mxu0 0.0
      %3968 = vmatpush1.msra.mxu0 %v3850
      %3969 = vmatprep.subr.mxu0 0.0
      %3970 = vmatpush1.msra.mxu0 %v3849
      %3971 = vmatprep.subr.mxu0 0.0
      %3972 = vmatpush1.msra.mxu0 %v3848
      %3973 = vmatprep.subr.mxu0 0.0
      %3974 = vmatpush1.msra.mxu0 %v3847
      %3975 = vmatprep.subr.mxu0 0.0
      %3976 = vmatpush1.msra.mxu0 %v3846
      %3977 = vmatprep.subr.mxu0 0.0
      %3978 = vmatpush1.msra.mxu0 %v3845
      %3979 = vmatprep.subr.mxu0 0.0
      %3980 = vmatpush2.msra.mxu0 0.0
      %3981 = vmatprep.subr.mxu0 0.0
      %3982 = vmatpush2.msra.mxu0 0.0
      %3983 = vmatprep.subr.mxu0 0.0
      %3984 = vmatpush2.msra.mxu0 0.0
      %3985 = vmatprep.subr.mxu0 0.0
      %3986 = vmatpush2.msra.mxu0 0.0
      %3987 = vmatprep.subr.mxu0 0.0
      %3988 = vmatpush2.msra.mxu0 0.0
      %3989 = vmatprep.subr.mxu0 0.0
      %3990 = vmatpush2.msra.mxu0 0.0
      %3991 = vmatprep.subr.mxu0 0.0
      %3992 = vmatpush2.msra.mxu0 0.0
      %3993 = vmatprep.subr.mxu0 0.0
      %3994 = vmatpush2.msra.mxu0 0.0
      %3995 = vmatprep.subr.mxu0 0.0
      %3996 = vmatpush2.msra.mxu0 0.0
      %3997 = vmatprep.subr.mxu0 0.0
      %3998 = vmatpush2.msra.mxu0 0.0
      %3999 = vmatprep.subr.mxu0 0.0
      %4000 = vmatpush2.msra.mxu0 0.0
      %4001 = vmatprep.subr.mxu0 0.0
      %4002 = vmatpush2.msra.mxu0 0.0
      %4003 = vmatprep.subr.mxu0 0.0
      %4004 = vmatpush2.msra.mxu0 0.0
      %4005 = vmatprep.subr.mxu0 0.0
      %4006 = vmatpush2.msra.mxu0 0.0
      %4007 = vmatprep.subr.mxu0 0.0
      %4008 = vmatpush2.msra.mxu0 0.0
      %4009 = vmatprep.subr.mxu0 0.0
      %4010 = vmatpush2.msra.mxu0 0.0
      %4011 = vmatprep.mubr.f32.mxu0 0.0
      %4012 = vmatmul.mubr.f32.gmra.mxu0 %v3852
      %v4013 = vpop.f32.mrf.mxu0
      %v4014 = vadd.f32 0.0, %v4013
      %v4015 = vpop.f32.mrf.mxu0
      %4016 = vmatprep.mubr.f32.mxu0 0.0
      %4017 = vmatmul.mubr.f32.gmra.mxu0 %v3855
      %v4018 = vpop.f32.mrf.mxu0
      %v4019 = vadd.f32 0.0, %v4018
      %v4020 = vpop.f32.mrf.mxu0
      %4021 = vmatprep.mubr.f32.mxu0 0.0
      %4022 = vmatmul.mubr.f32.gmra.mxu0 %v3858
      %v4023 = vpop.f32.mrf.mxu0
      %v4024 = vadd.f32 0.0, %v4023
      %v4025 = vpop.f32.mrf.mxu0
      %4026 = vmatprep.mubr.f32.mxu0 0.0
      %4027 = vmatmul.mubr.f32.gmra.mxu0 %v3861
      %v4028 = vpop.f32.mrf.mxu0
      %v4029 = vadd.f32 0.0, %v4028
      %v4030 = vpop.f32.mrf.mxu0
      %4031 = vmatprep.mubr.f32.mxu0 0.0
      %4032 = vmatmul.mubr.f32.gmra.mxu0 %v3864
      %v4033 = vpop.f32.mrf.mxu0
      %v4034 = vadd.f32 0.0, %v4033
      %v4035 = vpop.f32.mrf.mxu0
      %4036 = vmatprep.mubr.f32.mxu0 0.0
      %4037 = vmatmul.mubr.f32.gmra.mxu0 %v3867
      %v4038 = vpop.f32.mrf.mxu0
      %v4039 = vadd.f32 0.0, %v4038
      %v4040 = vpop.f32.mrf.mxu0
      %4041 = vmatprep.mubr.f32.mxu0 0.0
      %4042 = vmatmul.mubr.f32.gmra.mxu0 %v3870
      %v4043 = vpop.f32.mrf.mxu0
      %v4044 = vadd.f32 0.0, %v4043
      %v4045 = vpop.f32.mrf.mxu0
      %4046 = vmatprep.mubr.f32.mxu0 0.0
      %4047 = vmatmul.mubr.f32.gmra.mxu0 %v3873
      %v4048 = vpop.f32.mrf.mxu0
      %v4049 = vadd.f32 0.0, %v4048
      %v4050 = vpop.f32.mrf.mxu0
      %4051 = vmatprep.mubr.f32.mxu0 0.0
      %4052 = vmatmul.mubr.f32.gmra.mxu0 %v3876
      %v4053 = vpop.f32.mrf.mxu0
      %v4054 = vadd.f32 0.0, %v4053
      %v4055 = vpop.f32.mrf.mxu0
      %4056 = vmatprep.mubr.f32.mxu0 0.0
      %4057 = vmatmul.mubr.f32.gmra.mxu0 %v3879
      %v4058 = vpop.f32.mrf.mxu0
      %v4059 = vadd.f32 0.0, %v4058
      %v4060 = vpop.f32.mrf.mxu0
      %4061 = vmatprep.mubr.f32.mxu0 0.0
      %4062 = vmatmul.mubr.f32.gmra.mxu0 %v3882
      %v4063 = vpop.f32.mrf.mxu0
      %v4064 = vadd.f32 0.0, %v4063
      %v4065 = vpop.f32.mrf.mxu0
      %4066 = vmatprep.mubr.f32.mxu0 0.0
      %4067 = vmatmul.mubr.f32.gmra.mxu0 %v3885
      %v4068 = vpop.f32.mrf.mxu0
      %v4069 = vadd.f32 0.0, %v4068
      %v4070 = vpop.f32.mrf.mxu0
      %4071 = vmatprep.mubr.f32.mxu0 0.0
      %4072 = vmatmul.mubr.f32.gmra.mxu0 %v3888
      %v4073 = vpop.f32.mrf.mxu0
      %v4074 = vadd.f32 0.0, %v4073
      %v4075 = vpop.f32.mrf.mxu0
      %4076 = vmatprep.mubr.f32.mxu0 0.0
      %4077 = vmatmul.mubr.f32.gmra.mxu0 %v3891
      %v4078 = vpop.f32.mrf.mxu0
      %v4079 = vadd.f32 0.0, %v4078
      %v4080 = vpop.f32.mrf.mxu0
      %4081 = vmatprep.mubr.f32.mxu0 0.0
      %4082 = vmatmul.mubr.f32.gmra.mxu0 %v3894
      %v4083 = vpop.f32.mrf.mxu0
      %v4084 = vadd.f32 0.0, %v4083
      %v4085 = vpop.f32.mrf.mxu0
      %4086 = vmatprep.mubr.f32.mxu0 0.0
      %4087 = vmatmul.mubr.f32.gmra.mxu0 %v3897
      %v4088 = vpop.f32.mrf.mxu0
      %v4089 = vadd.f32 0.0, %v4088
      %v4090 = vpop.f32.mrf.mxu0
      %4091 = vmatprep.mubr.f32.mxu0 0.0
      %4092 = vmatmul.mubr.f32.gmra.mxu0 %v3900
      %v4093 = vpop.f32.mrf.mxu0
      %v4094 = vadd.f32 0.0, %v4093
      %v4095 = vpop.f32.mrf.mxu0
      %4096 = vmatprep.mubr.f32.mxu0 0.0
      %4097 = vmatmul.mubr.f32.gmra.mxu0 %v3903
      %v4098 = vpop.f32.mrf.mxu0
      %v4099 = vadd.f32 0.0, %v4098
      %v4100 = vpop.f32.mrf.mxu0
      %4101 = vmatprep.mubr.f32.mxu0 0.0
      %4102 = vmatmul.mubr.f32.gmra.mxu0 %v3906
      %v4103 = vpop.f32.mrf.mxu0
      %v4104 = vadd.f32 0.0, %v4103
      %v4105 = vpop.f32.mrf.mxu0
      %4106 = vmatprep.mubr.f32.mxu0 0.0
      %4107 = vmatmul.mubr.f32.gmra.mxu0 %v3909
      %v4108 = vpop.f32.mrf.mxu0
      %v4109 = vadd.f32 0.0, %v4108
      %v4110 = vpop.f32.mrf.mxu0
      %4111 = vmatprep.mubr.f32.mxu0 0.0
      %4112 = vmatmul.mubr.f32.gmra.mxu0 %v3912
      %v4113 = vpop.f32.mrf.mxu0
      %v4114 = vadd.f32 0.0, %v4113
      %v4115 = vpop.f32.mrf.mxu0
      %4116 = vmatprep.mubr.f32.mxu0 0.0
      %4117 = vmatmul.mubr.f32.gmra.mxu0 %v3915
      %v4118 = vpop.f32.mrf.mxu0
      %v4119 = vadd.f32 0.0, %v4118
      %v4120 = vpop.f32.mrf.mxu0
      %4121 = vmatprep.mubr.f32.mxu0 0.0
      %4122 = vmatmul.mubr.f32.gmra.mxu0 %v3918
      %v4123 = vpop.f32.mrf.mxu0
      %v4124 = vadd.f32 0.0, %v4123
      %v4125 = vpop.f32.mrf.mxu0
      %4126 = vmatprep.mubr.f32.mxu0 0.0
      %4127 = vmatmul.mubr.f32.gmra.mxu0 %v3921
      %v4128 = vpop.f32.mrf.mxu0
      %v4129 = vadd.f32 0.0, %v4128
      %v4130 = vpop.f32.mrf.mxu0
      %4131 = vmatprep.mubr.f32.mxu0 0.0
      %4132 = vmatmul.mubr.f32.gmra.mxu0 %v3924
      %v4133 = vpop.f32.mrf.mxu0
      %v4134 = vadd.f32 0.0, %v4133
      %v4135 = vpop.f32.mrf.mxu0
      %4136 = vmatprep.mubr.f32.mxu0 0.0
      %4137 = vmatmul.mubr.f32.gmra.mxu0 %v3927
      %v4138 = vpop.f32.mrf.mxu0
      %v4139 = vadd.f32 0.0, %v4138
      %v4140 = vpop.f32.mrf.mxu0
      %4141 = vmatprep.mubr.f32.mxu0 0.0
      %4142 = vmatmul.mubr.f32.gmra.mxu0 %v3930
      %v4143 = vpop.f32.mrf.mxu0
      %v4144 = vadd.f32 0.0, %v4143
      %v4145 = vpop.f32.mrf.mxu0
      %4146 = vmatprep.mubr.f32.mxu0 0.0
      %4147 = vmatmul.mubr.f32.gmra.mxu0 %v3933
      %v4148 = vpop.f32.mrf.mxu0
      %v4149 = vadd.f32 0.0, %v4148
      %v4150 = vpop.f32.mrf.mxu0
      %4151 = vmatprep.mubr.f32.mxu0 0.0
      %4152 = vmatmul.mubr.f32.gmra.mxu0 %v3936
      %v4153 = vpop.f32.mrf.mxu0
      %v4154 = vadd.f32 0.0, %v4153
      %v4155 = vpop.f32.mrf.mxu0
      %4156 = vmatprep.mubr.f32.mxu0 0.0
      %4157 = vmatmul.mubr.f32.gmra.mxu0 %v3939
      %v4158 = vpop.f32.mrf.mxu0
      %v4159 = vadd.f32 0.0, %v4158
      %v4160 = vpop.f32.mrf.mxu0
      %4161 = vmatprep.mubr.f32.mxu0 0.0
      %4162 = vmatmul.mubr.f32.gmra.mxu0 %v3942
      %v4163 = vpop.f32.mrf.mxu0
      %v4164 = vadd.f32 0.0, %v4163
      %v4165 = vpop.f32.mrf.mxu0
      %4166 = vmatprep.mubr.f32.mxu0 0.0
      %4167 = vmatmul.mubr.f32.gmra.mxu0 %v3945
      %v4168 = vpop.f32.mrf.mxu0
      %v4169 = vadd.f32 0.0, %v4168
      %v4170 = vpop.f32.mrf.mxu0
      %4171 = vdwg.mxu0
      %v4172 = vadd.f32 %v3269, %v4014
      %v4173 = vadd.f32 %v3274, %v4019
      %v4174 = vadd.f32 %v3279, %v4024
      %v4175 = vadd.f32 %v3284, %v4029
      %v4176 = vadd.f32 %v3289, %v4034
      %v4177 = vadd.f32 %v3294, %v4039
      %v4178 = vadd.f32 %v3299, %v4044
      %v4179 = vadd.f32 %v3304, %v4049
      %v4180 = vadd.f32 %v3309, %v4054
      %v4181 = vadd.f32 %v3314, %v4059
      %v4182 = vadd.f32 %v3319, %v4064
      %v4183 = vadd.f32 %v3324, %v4069
      %v4184 = vadd.f32 %v3329, %v4074
      %v4185 = vadd.f32 %v3334, %v4079
      %v4186 = vadd.f32 %v3339, %v4084
      %v4187 = vadd.f32 %v3344, %v4089
      %v4188 = vadd.f32 %v3349, %v4094
      %v4189 = vadd.f32 %v3354, %v4099
      %v4190 = vadd.f32 %v3359, %v4104
      %v4191 = vadd.f32 %v3364, %v4109
      %v4192 = vadd.f32 %v3369, %v4114
      %v4193 = vadd.f32 %v3374, %v4119
      %v4194 = vadd.f32 %v3379, %v4124
      %v4195 = vadd.f32 %v3384, %v4129
      %v4196 = vadd.f32 %v3389, %v4134
      %v4197 = vadd.f32 %v3394, %v4139
      %v4198 = vadd.f32 %v3399, %v4144
      %v4199 = vadd.f32 %v3404, %v4149
      %v4200 = vadd.f32 %v3409, %v4154
      %v4201 = vadd.f32 %v3414, %v4159
      %v4202 = vadd.f32 %v3419, %v4164
      %v4203 = vadd.f32 %v3424, %v4169
      %v4204 = vld [vmem:[%s5] sm:$0x1]
      %v4206 = vlaneseq
      %v4207 = vshrl.u32 %v4206, 7
      %v4208 = vsub.s32 0, %v4207
      %v4209 = vrot.slane %v4204, %v4208
      %v4211 = vadd.f32 %v4172, %v4209
      %v4212 = vadd.f32 %v4173, %v4209
      %v4213 = vadd.f32 %v4174, %v4209
      %v4214 = vadd.f32 %v4175, %v4209
      %v4215 = vadd.f32 %v4176, %v4209
      %v4216 = vadd.f32 %v4177, %v4209
      %v4217 = vadd.f32 %v4178, %v4209
      %v4218 = vadd.f32 %v4179, %v4209
      %v4219 = vadd.f32 %v4180, %v4209
      %v4220 = vadd.f32 %v4181, %v4209
      %v4221 = vadd.f32 %v4182, %v4209
      %v4222 = vadd.f32 %v4183, %v4209
      %v4223 = vadd.f32 %v4184, %v4209
      %v4224 = vadd.f32 %v4185, %v4209
      %v4225 = vadd.f32 %v4186, %v4209
      %v4226 = vadd.f32 %v4187, %v4209
      %v4227 = vadd.f32 %v4188, %v4209
      %v4228 = vadd.f32 %v4189, %v4209
      %v4229 = vadd.f32 %v4190, %v4209
      %v4230 = vadd.f32 %v4191, %v4209
      %v4231 = vadd.f32 %v4192, %v4209
      %v4232 = vadd.f32 %v4193, %v4209
      %v4233 = vadd.f32 %v4194, %v4209
      %v4234 = vadd.f32 %v4195, %v4209
      %v4235 = vadd.f32 %v4196, %v4209
      %v4236 = vadd.f32 %v4197, %v4209
      %v4237 = vadd.f32 %v4198, %v4209
      %v4238 = vadd.f32 %v4199, %v4209
      %v4239 = vadd.f32 %v4200, %v4209
      %v4240 = vadd.f32 %v4201, %v4209
      %v4241 = vadd.f32 %v4202, %v4209
      %v4242 = vadd.f32 %v4203, %v4209
      %v4243 = vmax.f32 %v4211, 0.0
      %v4244 = vmax.f32 %v4212, 0.0
      %v4245 = vmax.f32 %v4213, 0.0
      %v4246 = vmax.f32 %v4214, 0.0
      %v4247 = vmax.f32 %v4215, 0.0
      %v4248 = vmax.f32 %v4216, 0.0
      %v4249 = vmax.f32 %v4217, 0.0
      %v4250 = vmax.f32 %v4218, 0.0
      %v4251 = vmax.f32 %v4219, 0.0
      %v4252 = vmax.f32 %v4220, 0.0
      %v4253 = vmax.f32 %v4221, 0.0
      %v4254 = vmax.f32 %v4222, 0.0
      %v4255 = vmax.f32 %v4223, 0.0
      %v4256 = vmax.f32 %v4224, 0.0
      %v4257 = vmax.f32 %v4225, 0.0
      %v4258 = vmax.f32 %v4226, 0.0
      %v4259 = vmax.f32 %v4227, 0.0
      %v4260 = vmax.f32 %v4228, 0.0
      %v4261 = vmax.f32 %v4229, 0.0
      %v4262 = vmax.f32 %v4230, 0.0
      %v4263 = vmax.f32 %v4231, 0.0
      %v4264 = vmax.f32 %v4232, 0.0
      %v4265 = vmax.f32 %v4233, 0.0
      %v4266 = vmax.f32 %v4234, 0.0
      %v4267 = vmax.f32 %v4235, 0.0
      %v4268 = vmax.f32 %v4236, 0.0
      %v4269 = vmax.f32 %v4237, 0.0
      %v4270 = vmax.f32 %v4238, 0.0
      %v4271 = vmax.f32 %v4239, 0.0
      %v4272 = vmax.f32 %v4240, 0.0
      %v4273 = vmax.f32 %v4241, 0.0
      %v4274 = vmax.f32 %v4242, 0.0
      %s4275 = scalar_lea.vmem [#allocation3], 24
      %4276 = vst.msk [vmem:[%s4275 + $0x1] sm:$0xff] %vm372, %v4243
      %4277 = vst.msk [vmem:[%s4275 + $0x9] sm:$0xff] %vm372, %v4244
      %4278 = vst.msk [vmem:[%s4275 + $0x19] sm:$0xff] %vm372, %v4245
      %4279 = vst.msk [vmem:[%s4275 + $0x21] sm:$0xff] %vm372, %v4246
      %4280 = vst.msk [vmem:[%s4275 + $0x31] sm:$0xff] %vm372, %v4247
      %4281 = vst.msk [vmem:[%s4275 + $0x39] sm:$0xff] %vm372, %v4248
      %4282 = vst.msk [vmem:[%s4275 + $0x49] sm:$0xff] %vm372, %v4249
      %4283 = vst.msk [vmem:[%s4275 + $0x51] sm:$0xff] %vm372, %v4250
      %4284 = vst.msk [vmem:[%s4275 + $0x61] sm:$0xff] %vm372, %v4251
      %4285 = vst.msk [vmem:[%s4275 + $0x69] sm:$0xff] %vm372, %v4252
      %4286 = vst.msk [vmem:[%s4275 + $0x79] sm:$0xff] %vm372, %v4253
      %4287 = vst.msk [vmem:[%s4275 + $0x81] sm:$0xff] %vm372, %v4254
      %4288 = vst.msk [vmem:[%s4275 + $0x91] sm:$0xff] %vm372, %v4255
      %4289 = vst.msk [vmem:[%s4275 + $0x99] sm:$0xff] %vm372, %v4256
      %4290 = vst.msk [vmem:[%s4275 + $0xa9] sm:$0xff] %vm372, %v4257
      %4291 = vst.msk [vmem:[%s4275 + $0xb1] sm:$0xff] %vm372, %v4258
      %4292 = vst.msk [vmem:[%s4275 + $0xc1] sm:$0xff] %vm372, %v4259
      %4293 = vst.msk [vmem:[%s4275 + $0xc9] sm:$0xff] %vm372, %v4260
      %4294 = vst.msk [vmem:[%s4275 + $0xd9] sm:$0xff] %vm372, %v4261
      %4295 = vst.msk [vmem:[%s4275 + $0xe1] sm:$0xff] %vm372, %v4262
      %4296 = vst.msk [vmem:[%s4275 + $0xf1] sm:$0xff] %vm372, %v4263
      %4297 = vst.msk [vmem:[%s4275 + $0xf9] sm:$0xff] %vm372, %v4264
      %4298 = vst.msk [vmem:[%s4275 + $0x109] sm:$0xff] %vm372, %v4265
      %4299 = vst.msk [vmem:[%s4275 + $0x111] sm:$0xff] %vm372, %v4266
      %4300 = vst.msk [vmem:[%s4275 + $0x121] sm:$0xff] %vm372, %v4267
      %4301 = vst.msk [vmem:[%s4275 + $0x129] sm:$0xff] %vm372, %v4268
      %4302 = vst.msk [vmem:[%s4275 + $0x139] sm:$0xff] %vm372, %v4269
      %4303 = vst.msk [vmem:[%s4275 + $0x141] sm:$0xff] %vm372, %v4270
      %4304 = vst.msk [vmem:[%s4275 + $0x151] sm:$0xff] %vm372, %v4271
      %4305 = vst.msk [vmem:[%s4275 + $0x159] sm:$0xff] %vm372, %v4272
      %4306 = vst.msk [vmem:[%s4275 + $0x169] sm:$0xff] %vm372, %v4273
      %4307 = vst.msk [vmem:[%s4275 + $0x171] sm:$0xff] %vm372, %v4274
      %v4308 = vld [vmem:[#allocation3] sm:$0xff]
      %v4309 = vld [vmem:[#allocation3 + $0x8] sm:$0xff]
      %v4310 = vld [vmem:[#allocation3 + $0x18] sm:$0xff]
      %v4311 = vld [vmem:[#allocation3 + $0x20] sm:$0xff]
      %v4312 = vld [vmem:[#allocation3 + $0x30] sm:$0xff]
      %v4313 = vld [vmem:[#allocation3 + $0x38] sm:$0xff]
      %v4314 = vld [vmem:[#allocation3 + $0x48] sm:$0xff]
      %v4315 = vld [vmem:[#allocation3 + $0x50] sm:$0xff]
      %v4316 = vld [vmem:[#allocation3 + $0x60] sm:$0xff]
      %v4317 = vld [vmem:[#allocation3 + $0x68] sm:$0xff]
      %v4318 = vld [vmem:[#allocation3 + $0x78] sm:$0xff]
      %v4319 = vld [vmem:[#allocation3 + $0x80] sm:$0xff]
      %v4320 = vld [vmem:[#allocation3 + $0x90] sm:$0xff]
      %v4321 = vld [vmem:[#allocation3 + $0x98] sm:$0xff]
      %v4322 = vld [vmem:[#allocation3 + $0xa8] sm:$0xff]
      %v4323 = vld [vmem:[#allocation3 + $0xb0] sm:$0xff]
      %v4324 = vld [vmem:[#allocation3 + $0xc0] sm:$0xff]
      %v4325 = vld [vmem:[#allocation3 + $0xc8] sm:$0xff]
      %v4326 = vld [vmem:[#allocation3 + $0xd8] sm:$0xff]
      %v4327 = vld [vmem:[#allocation3 + $0xe0] sm:$0xff]
      %v4328 = vld [vmem:[#allocation3 + $0xf0] sm:$0xff]
      %v4329 = vld [vmem:[#allocation3 + $0xf8] sm:$0xff]
      %v4330 = vld [vmem:[#allocation3 + $0x108] sm:$0xff]
      %v4331 = vld [vmem:[#allocation3 + $0x110] sm:$0xff]
      %v4332 = vld [vmem:[#allocation3 + $0x120] sm:$0xff]
      %v4333 = vld [vmem:[#allocation3 + $0x128] sm:$0xff]
      %v4334 = vld [vmem:[#allocation3 + $0x138] sm:$0xff]
      %v4335 = vld [vmem:[#allocation3 + $0x140] sm:$0xff]
      %v4336 = vld [vmem:[#allocation3 + $0x150] sm:$0xff]
      %v4337 = vld [vmem:[#allocation3 + $0x158] sm:$0xff]
      %v4338 = vld [vmem:[#allocation3 + $0x168] sm:$0xff]
      %v4339 = vld [vmem:[#allocation3 + $0x170] sm:$0xff]
      %v4340 = vld [vmem:[#allocation3 + $0x1] sm:$0xff]
      %v4341 = vld [vmem:[#allocation3 + $0x9] sm:$0xff]
      %v4342 = vld [vmem:[#allocation3 + $0x19] sm:$0xff]
      %v4343 = vld [vmem:[#allocation3 + $0x21] sm:$0xff]
      %v4344 = vld [vmem:[#allocation3 + $0x31] sm:$0xff]
      %v4345 = vld [vmem:[#allocation3 + $0x39] sm:$0xff]
      %v4346 = vld [vmem:[#allocation3 + $0x49] sm:$0xff]
      %v4347 = vld [vmem:[#allocation3 + $0x51] sm:$0xff]
      %v4348 = vld [vmem:[#allocation3 + $0x61] sm:$0xff]
      %v4349 = vld [vmem:[#allocation3 + $0x69] sm:$0xff]
      %v4350 = vld [vmem:[#allocation3 + $0x79] sm:$0xff]
      %v4351 = vld [vmem:[#allocation3 + $0x81] sm:$0xff]
      %v4352 = vld [vmem:[#allocation3 + $0x91] sm:$0xff]
      %v4353 = vld [vmem:[#allocation3 + $0x99] sm:$0xff]
      %v4354 = vld [vmem:[#allocation3 + $0xa9] sm:$0xff]
      %v4355 = vld [vmem:[#allocation3 + $0xb1] sm:$0xff]
      %v4356 = vld [vmem:[#allocation3 + $0xc1] sm:$0xff]
      %v4357 = vld [vmem:[#allocation3 + $0xc9] sm:$0xff]
      %v4358 = vld [vmem:[#allocation3 + $0xd9] sm:$0xff]
      %v4359 = vld [vmem:[#allocation3 + $0xe1] sm:$0xff]
      %v4360 = vld [vmem:[#allocation3 + $0xf1] sm:$0xff]
      %v4361 = vld [vmem:[#allocation3 + $0xf9] sm:$0xff]
      %v4362 = vld [vmem:[#allocation3 + $0x109] sm:$0xff]
      %v4363 = vld [vmem:[#allocation3 + $0x111] sm:$0xff]
      %v4364 = vld [vmem:[#allocation3 + $0x121] sm:$0xff]
      %v4365 = vld [vmem:[#allocation3 + $0x129] sm:$0xff]
      %v4366 = vld [vmem:[#allocation3 + $0x139] sm:$0xff]
      %v4367 = vld [vmem:[#allocation3 + $0x141] sm:$0xff]
      %v4368 = vld [vmem:[#allocation3 + $0x151] sm:$0xff]
      %v4369 = vld [vmem:[#allocation3 + $0x159] sm:$0xff]
      %v4370 = vld [vmem:[#allocation3 + $0x169] sm:$0xff]
      %v4371 = vld [vmem:[#allocation3 + $0x171] sm:$0xff]
      %v4372 = vld [vmem:[#allocation3 + $0x2] sm:$0xff]
      %v4373 = vld [vmem:[#allocation3 + $0xa] sm:$0xff]
      %v4374 = vld [vmem:[#allocation3 + $0x1a] sm:$0xff]
      %v4375 = vld [vmem:[#allocation3 + $0x22] sm:$0xff]
      %v4376 = vld [vmem:[#allocation3 + $0x32] sm:$0xff]
      %v4377 = vld [vmem:[#allocation3 + $0x3a] sm:$0xff]
      %v4378 = vld [vmem:[#allocation3 + $0x4a] sm:$0xff]
      %v4379 = vld [vmem:[#allocation3 + $0x52] sm:$0xff]
      %v4380 = vld [vmem:[#allocation3 + $0x62] sm:$0xff]
      %v4381 = vld [vmem:[#allocation3 + $0x6a] sm:$0xff]
      %v4382 = vld [vmem:[#allocation3 + $0x7a] sm:$0xff]
      %v4383 = vld [vmem:[#allocation3 + $0x82] sm:$0xff]
      %v4384 = vld [vmem:[#allocation3 + $0x92] sm:$0xff]
      %v4385 = vld [vmem:[#allocation3 + $0x9a] sm:$0xff]
      %v4386 = vld [vmem:[#allocation3 + $0xaa] sm:$0xff]
      %v4387 = vld [vmem:[#allocation3 + $0xb2] sm:$0xff]
      %v4388 = vld [vmem:[#allocation3 + $0xc2] sm:$0xff]
      %v4389 = vld [vmem:[#allocation3 + $0xca] sm:$0xff]
      %v4390 = vld [vmem:[#allocation3 + $0xda] sm:$0xff]
      %v4391 = vld [vmem:[#allocation3 + $0xe2] sm:$0xff]
      %v4392 = vld [vmem:[#allocation3 + $0xf2] sm:$0xff]
      %v4393 = vld [vmem:[#allocation3 + $0xfa] sm:$0xff]
      %v4394 = vld [vmem:[#allocation3 + $0x10a] sm:$0xff]
      %v4395 = vld [vmem:[#allocation3 + $0x112] sm:$0xff]
      %v4396 = vld [vmem:[#allocation3 + $0x122] sm:$0xff]
      %v4397 = vld [vmem:[#allocation3 + $0x12a] sm:$0xff]
      %v4398 = vld [vmem:[#allocation3 + $0x13a] sm:$0xff]
      %v4399 = vld [vmem:[#allocation3 + $0x142] sm:$0xff]
      %v4400 = vld [vmem:[#allocation3 + $0x152] sm:$0xff]
      %v4401 = vld [vmem:[#allocation3 + $0x15a] sm:$0xff]
      %v4402 = vld [vmem:[#allocation3 + $0x16a] sm:$0xff]
      %v4403 = vld [vmem:[#allocation3 + $0x172] sm:$0xff]
      %4436 = vrot.lane.b32.xlu0 %v4340, 8
      %v4437 = vpop.permute.xlu0 %4436
      %4438 = vrot.lane.b32.xlu0 %v4341, 8
      %v4439 = vpop.permute.xlu0 %4438
      %4440 = vrot.lane.b32.xlu0 %v4342, 8
      %v4441 = vpop.permute.xlu0 %4440
      %4442 = vrot.lane.b32.xlu0 %v4343, 8
      %v4443 = vpop.permute.xlu0 %4442
      %4444 = vrot.lane.b32.xlu0 %v4344, 8
      %v4445 = vpop.permute.xlu0 %4444
      %4446 = vrot.lane.b32.xlu0 %v4345, 8
      %v4447 = vpop.permute.xlu0 %4446
      %4448 = vrot.lane.b32.xlu0 %v4346, 8
      %v4449 = vpop.permute.xlu0 %4448
      %4450 = vrot.lane.b32.xlu0 %v4347, 8
      %v4451 = vpop.permute.xlu0 %4450
      %4452 = vrot.lane.b32.xlu0 %v4348, 8
      %v4453 = vpop.permute.xlu0 %4452
      %4454 = vrot.lane.b32.xlu0 %v4349, 8
      %v4455 = vpop.permute.xlu0 %4454
      %4456 = vrot.lane.b32.xlu0 %v4350, 8
      %v4457 = vpop.permute.xlu0 %4456
      %4458 = vrot.lane.b32.xlu0 %v4351, 8
      %v4459 = vpop.permute.xlu0 %4458
      %4460 = vrot.lane.b32.xlu0 %v4352, 8
      %v4461 = vpop.permute.xlu0 %4460
      %4462 = vrot.lane.b32.xlu0 %v4353, 8
      %v4463 = vpop.permute.xlu0 %4462
      %4464 = vrot.lane.b32.xlu0 %v4354, 8
      %v4465 = vpop.permute.xlu0 %4464
      %4466 = vrot.lane.b32.xlu0 %v4355, 8
      %v4467 = vpop.permute.xlu0 %4466
      %4468 = vrot.lane.b32.xlu0 %v4356, 8
      %v4469 = vpop.permute.xlu0 %4468
      %4470 = vrot.lane.b32.xlu0 %v4357, 8
      %v4471 = vpop.permute.xlu0 %4470
      %4472 = vrot.lane.b32.xlu0 %v4358, 8
      %v4473 = vpop.permute.xlu0 %4472
      %4474 = vrot.lane.b32.xlu0 %v4359, 8
      %v4475 = vpop.permute.xlu0 %4474
      %4476 = vrot.lane.b32.xlu0 %v4360, 8
      %v4477 = vpop.permute.xlu0 %4476
      %4478 = vrot.lane.b32.xlu0 %v4361, 8
      %v4479 = vpop.permute.xlu0 %4478
      %4480 = vrot.lane.b32.xlu0 %v4362, 8
      %v4481 = vpop.permute.xlu0 %4480
      %4482 = vrot.lane.b32.xlu0 %v4363, 8
      %v4483 = vpop.permute.xlu0 %4482
      %4484 = vrot.lane.b32.xlu0 %v4364, 8
      %v4485 = vpop.permute.xlu0 %4484
      %4486 = vrot.lane.b32.xlu0 %v4365, 8
      %v4487 = vpop.permute.xlu0 %4486
      %4488 = vrot.lane.b32.xlu0 %v4366, 8
      %v4489 = vpop.permute.xlu0 %4488
      %4490 = vrot.lane.b32.xlu0 %v4367, 8
      %v4491 = vpop.permute.xlu0 %4490
      %4492 = vrot.lane.b32.xlu0 %v4368, 8
      %v4493 = vpop.permute.xlu0 %4492
      %4494 = vrot.lane.b32.xlu0 %v4369, 8
      %v4495 = vpop.permute.xlu0 %4494
      %4496 = vrot.lane.b32.xlu0 %v4370, 8
      %v4497 = vpop.permute.xlu0 %4496
      %4498 = vrot.lane.b32.xlu0 %v4371, 8
      %v4499 = vpop.permute.xlu0 %4498
      %4564 = vrot.lane.b32.xlu0 %v4372, 16
      %v4565 = vpop.permute.xlu0 %4564
      %4566 = vrot.lane.b32.xlu0 %v4373, 16
      %v4567 = vpop.permute.xlu0 %4566
      %4568 = vrot.lane.b32.xlu0 %v4374, 16
      %v4569 = vpop.permute.xlu0 %4568
      %4570 = vrot.lane.b32.xlu0 %v4375, 16
      %v4571 = vpop.permute.xlu0 %4570
      %4572 = vrot.lane.b32.xlu0 %v4376, 16
      %v4573 = vpop.permute.xlu0 %4572
      %4574 = vrot.lane.b32.xlu0 %v4377, 16
      %v4575 = vpop.permute.xlu0 %4574
      %4576 = vrot.lane.b32.xlu0 %v4378, 16
      %v4577 = vpop.permute.xlu0 %4576
      %4578 = vrot.lane.b32.xlu0 %v4379, 16
      %v4579 = vpop.permute.xlu0 %4578
      %4580 = vrot.lane.b32.xlu0 %v4380, 16
      %v4581 = vpop.permute.xlu0 %4580
      %4582 = vrot.lane.b32.xlu0 %v4381, 16
      %v4583 = vpop.permute.xlu0 %4582
      %4584 = vrot.lane.b32.xlu0 %v4382, 16
      %v4585 = vpop.permute.xlu0 %4584
      %4586 = vrot.lane.b32.xlu0 %v4383, 16
      %v4587 = vpop.permute.xlu0 %4586
      %4588 = vrot.lane.b32.xlu0 %v4384, 16
      %v4589 = vpop.permute.xlu0 %4588
      %4590 = vrot.lane.b32.xlu0 %v4385, 16
      %v4591 = vpop.permute.xlu0 %4590
      %4592 = vrot.lane.b32.xlu0 %v4386, 16
      %v4593 = vpop.permute.xlu0 %4592
      %4594 = vrot.lane.b32.xlu0 %v4387, 16
      %v4595 = vpop.permute.xlu0 %4594
      %4596 = vrot.lane.b32.xlu0 %v4388, 16
      %v4597 = vpop.permute.xlu0 %4596
      %4598 = vrot.lane.b32.xlu0 %v4389, 16
      %v4599 = vpop.permute.xlu0 %4598
      %4600 = vrot.lane.b32.xlu0 %v4390, 16
      %v4601 = vpop.permute.xlu0 %4600
      %4602 = vrot.lane.b32.xlu0 %v4391, 16
      %v4603 = vpop.permute.xlu0 %4602
      %4604 = vrot.lane.b32.xlu0 %v4392, 16
      %v4605 = vpop.permute.xlu0 %4604
      %4606 = vrot.lane.b32.xlu0 %v4393, 16
      %v4607 = vpop.permute.xlu0 %4606
      %4608 = vrot.lane.b32.xlu0 %v4394, 16
      %v4609 = vpop.permute.xlu0 %4608
      %4610 = vrot.lane.b32.xlu0 %v4395, 16
      %v4611 = vpop.permute.xlu0 %4610
      %4612 = vrot.lane.b32.xlu0 %v4396, 16
      %v4613 = vpop.permute.xlu0 %4612
      %4614 = vrot.lane.b32.xlu0 %v4397, 16
      %v4615 = vpop.permute.xlu0 %4614
      %4616 = vrot.lane.b32.xlu0 %v4398, 16
      %v4617 = vpop.permute.xlu0 %4616
      %4618 = vrot.lane.b32.xlu0 %v4399, 16
      %v4619 = vpop.permute.xlu0 %4618
      %4620 = vrot.lane.b32.xlu0 %v4400, 16
      %v4621 = vpop.permute.xlu0 %4620
      %4622 = vrot.lane.b32.xlu0 %v4401, 16
      %v4623 = vpop.permute.xlu0 %4622
      %4624 = vrot.lane.b32.xlu0 %v4402, 16
      %v4625 = vpop.permute.xlu0 %4624
      %4626 = vrot.lane.b32.xlu0 %v4403, 16
      %v4627 = vpop.permute.xlu0 %4626
      %v4660 = vsel %vm372, %v4308, %v4437
      %v4661 = vsel %vm372, %v4309, %v4439
      %v4662 = vsel %vm372, %v4310, %v4441
      %v4663 = vsel %vm372, %v4311, %v4443
      %v4664 = vsel %vm372, %v4312, %v4445
      %v4665 = vsel %vm372, %v4313, %v4447
      %v4666 = vsel %vm372, %v4314, %v4449
      %v4667 = vsel %vm372, %v4315, %v4451
      %v4668 = vsel %vm372, %v4316, %v4453
      %v4669 = vsel %vm372, %v4317, %v4455
      %v4670 = vsel %vm372, %v4318, %v4457
      %v4671 = vsel %vm372, %v4319, %v4459
      %v4672 = vsel %vm372, %v4320, %v4461
      %v4673 = vsel %vm372, %v4321, %v4463
      %v4674 = vsel %vm372, %v4322, %v4465
      %v4675 = vsel %vm372, %v4323, %v4467
      %v4676 = vsel %vm372, %v4324, %v4469
      %v4677 = vsel %vm372, %v4325, %v4471
      %v4678 = vsel %vm372, %v4326, %v4473
      %v4679 = vsel %vm372, %v4327, %v4475
      %v4680 = vsel %vm372, %v4328, %v4477
      %v4681 = vsel %vm372, %v4329, %v4479
      %v4682 = vsel %vm372, %v4330, %v4481
      %v4683 = vsel %vm372, %v4331, %v4483
      %v4684 = vsel %vm372, %v4332, %v4485
      %v4685 = vsel %vm372, %v4333, %v4487
      %v4686 = vsel %vm372, %v4334, %v4489
      %v4687 = vsel %vm372, %v4335, %v4491
      %v4688 = vsel %vm372, %v4336, %v4493
      %v4689 = vsel %vm372, %v4337, %v4495
      %v4690 = vsel %vm372, %v4338, %v4497
      %v4691 = vsel %vm372, %v4339, %v4499
      %v4692 = vsel %vm326, %v4660, %v4565
      %v4693 = vsel %vm326, %v4661, %v4567
      %v4694 = vsel %vm326, %v4662, %v4569
      %v4695 = vsel %vm326, %v4663, %v4571
      %v4696 = vsel %vm326, %v4664, %v4573
      %v4697 = vsel %vm326, %v4665, %v4575
      %v4698 = vsel %vm326, %v4666, %v4577
      %v4699 = vsel %vm326, %v4667, %v4579
      %v4700 = vsel %vm326, %v4668, %v4581
      %v4701 = vsel %vm326, %v4669, %v4583
      %v4702 = vsel %vm326, %v4670, %v4585
      %v4703 = vsel %vm326, %v4671, %v4587
      %v4704 = vsel %vm326, %v4672, %v4589
      %v4705 = vsel %vm326, %v4673, %v4591
      %v4706 = vsel %vm326, %v4674, %v4593
      %v4707 = vsel %vm326, %v4675, %v4595
      %v4708 = vsel %vm326, %v4676, %v4597
      %v4709 = vsel %vm326, %v4677, %v4599
      %v4710 = vsel %vm326, %v4678, %v4601
      %v4711 = vsel %vm326, %v4679, %v4603
      %v4712 = vsel %vm326, %v4680, %v4605
      %v4713 = vsel %vm326, %v4681, %v4607
      %v4714 = vsel %vm326, %v4682, %v4609
      %v4715 = vsel %vm326, %v4683, %v4611
      %v4716 = vsel %vm326, %v4684, %v4613
      %v4717 = vsel %vm326, %v4685, %v4615
      %v4718 = vsel %vm326, %v4686, %v4617
      %v4719 = vsel %vm326, %v4687, %v4619
      %v4720 = vsel %vm326, %v4688, %v4621
      %v4721 = vsel %vm326, %v4689, %v4623
      %v4722 = vsel %vm326, %v4690, %v4625
      %v4723 = vsel %vm326, %v4691, %v4627
      %v4724 = vld [vmem:[%s6] sm:$0xff]
      %v4725 = vld [vmem:[%s6 + $0x8] sm:$0xff]
      %v4726 = vld [vmem:[%s6 + $0x10] sm:$0xff]
      %v4727 = vld [vmem:[%s4275] sm:$0xff]
      %v4728 = vld [vmem:[%s4275 + $0x8] sm:$0xff]
      %v4729 = vld [vmem:[%s4275 + $0x18] sm:$0xff]
      %v4730 = vld [vmem:[%s4275 + $0x20] sm:$0xff]
      %v4731 = vld [vmem:[%s4275 + $0x30] sm:$0xff]
      %v4732 = vld [vmem:[%s4275 + $0x38] sm:$0xff]
      %v4733 = vld [vmem:[%s4275 + $0x48] sm:$0xff]
      %v4734 = vld [vmem:[%s4275 + $0x50] sm:$0xff]
      %v4735 = vld [vmem:[%s4275 + $0x60] sm:$0xff]
      %v4736 = vld [vmem:[%s4275 + $0x68] sm:$0xff]
      %v4737 = vld [vmem:[%s4275 + $0x78] sm:$0xff]
      %v4738 = vld [vmem:[%s4275 + $0x80] sm:$0xff]
      %v4739 = vld [vmem:[%s4275 + $0x90] sm:$0xff]
      %v4740 = vld [vmem:[%s4275 + $0x98] sm:$0xff]
      %v4741 = vld [vmem:[%s4275 + $0xa8] sm:$0xff]
      %v4742 = vld [vmem:[%s4275 + $0xb0] sm:$0xff]
      %v4743 = vld [vmem:[%s4275 + $0xc0] sm:$0xff]
      %v4744 = vld [vmem:[%s4275 + $0xc8] sm:$0xff]
      %v4745 = vld [vmem:[%s4275 + $0xd8] sm:$0xff]
      %v4746 = vld [vmem:[%s4275 + $0xe0] sm:$0xff]
      %v4747 = vld [vmem:[%s4275 + $0xf0] sm:$0xff]
      %v4748 = vld [vmem:[%s4275 + $0xf8] sm:$0xff]
      %v4749 = vld [vmem:[%s4275 + $0x108] sm:$0xff]
      %v4750 = vld [vmem:[%s4275 + $0x110] sm:$0xff]
      %v4751 = vld [vmem:[%s4275 + $0x120] sm:$0xff]
      %v4752 = vld [vmem:[%s4275 + $0x128] sm:$0xff]
      %v4753 = vld [vmem:[%s4275 + $0x138] sm:$0xff]
      %v4754 = vld [vmem:[%s4275 + $0x140] sm:$0xff]
      %v4755 = vld [vmem:[%s4275 + $0x150] sm:$0xff]
      %v4756 = vld [vmem:[%s4275 + $0x158] sm:$0xff]
      %v4757 = vld [vmem:[%s4275 + $0x168] sm:$0xff]
      %v4758 = vld [vmem:[%s4275 + $0x170] sm:$0xff]
      %v4759 = vld [vmem:[%s4275 + $0x1] sm:$0xff]
      %v4760 = vld [vmem:[%s4275 + $0x9] sm:$0xff]
      %v4761 = vld [vmem:[%s4275 + $0x19] sm:$0xff]
      %v4762 = vld [vmem:[%s4275 + $0x21] sm:$0xff]
      %v4763 = vld [vmem:[%s4275 + $0x31] sm:$0xff]
      %v4764 = vld [vmem:[%s4275 + $0x39] sm:$0xff]
      %v4765 = vld [vmem:[%s4275 + $0x49] sm:$0xff]
      %v4766 = vld [vmem:[%s4275 + $0x51] sm:$0xff]
      %v4767 = vld [vmem:[%s4275 + $0x61] sm:$0xff]
      %v4768 = vld [vmem:[%s4275 + $0x69] sm:$0xff]
      %v4769 = vld [vmem:[%s4275 + $0x79] sm:$0xff]
      %v4770 = vld [vmem:[%s4275 + $0x81] sm:$0xff]
      %v4771 = vld [vmem:[%s4275 + $0x91] sm:$0xff]
      %v4772 = vld [vmem:[%s4275 + $0x99] sm:$0xff]
      %v4773 = vld [vmem:[%s4275 + $0xa9] sm:$0xff]
      %v4774 = vld [vmem:[%s4275 + $0xb1] sm:$0xff]
      %v4775 = vld [vmem:[%s4275 + $0xc1] sm:$0xff]
      %v4776 = vld [vmem:[%s4275 + $0xc9] sm:$0xff]
      %v4777 = vld [vmem:[%s4275 + $0xd9] sm:$0xff]
      %v4778 = vld [vmem:[%s4275 + $0xe1] sm:$0xff]
      %v4779 = vld [vmem:[%s4275 + $0xf1] sm:$0xff]
      %v4780 = vld [vmem:[%s4275 + $0xf9] sm:$0xff]
      %v4781 = vld [vmem:[%s4275 + $0x109] sm:$0xff]
      %v4782 = vld [vmem:[%s4275 + $0x111] sm:$0xff]
      %v4783 = vld [vmem:[%s4275 + $0x121] sm:$0xff]
      %v4784 = vld [vmem:[%s4275 + $0x129] sm:$0xff]
      %v4785 = vld [vmem:[%s4275 + $0x139] sm:$0xff]
      %v4786 = vld [vmem:[%s4275 + $0x141] sm:$0xff]
      %v4787 = vld [vmem:[%s4275 + $0x151] sm:$0xff]
      %v4788 = vld [vmem:[%s4275 + $0x159] sm:$0xff]
      %v4789 = vld [vmem:[%s4275 + $0x169] sm:$0xff]
      %v4790 = vld [vmem:[%s4275 + $0x171] sm:$0xff]
      %v4791 = vld [vmem:[%s4275 + $0x2] sm:$0xff]
      %v4792 = vld [vmem:[%s4275 + $0xa] sm:$0xff]
      %v4793 = vld [vmem:[%s4275 + $0x1a] sm:$0xff]
      %v4794 = vld [vmem:[%s4275 + $0x22] sm:$0xff]
      %v4795 = vld [vmem:[%s4275 + $0x32] sm:$0xff]
      %v4796 = vld [vmem:[%s4275 + $0x3a] sm:$0xff]
      %v4797 = vld [vmem:[%s4275 + $0x4a] sm:$0xff]
      %v4798 = vld [vmem:[%s4275 + $0x52] sm:$0xff]
      %v4799 = vld [vmem:[%s4275 + $0x62] sm:$0xff]
      %v4800 = vld [vmem:[%s4275 + $0x6a] sm:$0xff]
      %v4801 = vld [vmem:[%s4275 + $0x7a] sm:$0xff]
      %v4802 = vld [vmem:[%s4275 + $0x82] sm:$0xff]
      %v4803 = vld [vmem:[%s4275 + $0x92] sm:$0xff]
      %v4804 = vld [vmem:[%s4275 + $0x9a] sm:$0xff]
      %v4805 = vld [vmem:[%s4275 + $0xaa] sm:$0xff]
      %v4806 = vld [vmem:[%s4275 + $0xb2] sm:$0xff]
      %v4807 = vld [vmem:[%s4275 + $0xc2] sm:$0xff]
      %v4808 = vld [vmem:[%s4275 + $0xca] sm:$0xff]
      %v4809 = vld [vmem:[%s4275 + $0xda] sm:$0xff]
      %v4810 = vld [vmem:[%s4275 + $0xe2] sm:$0xff]
      %v4811 = vld [vmem:[%s4275 + $0xf2] sm:$0xff]
      %v4812 = vld [vmem:[%s4275 + $0xfa] sm:$0xff]
      %v4813 = vld [vmem:[%s4275 + $0x10a] sm:$0xff]
      %v4814 = vld [vmem:[%s4275 + $0x112] sm:$0xff]
      %v4815 = vld [vmem:[%s4275 + $0x122] sm:$0xff]
      %v4816 = vld [vmem:[%s4275 + $0x12a] sm:$0xff]
      %v4817 = vld [vmem:[%s4275 + $0x13a] sm:$0xff]
      %v4818 = vld [vmem:[%s4275 + $0x142] sm:$0xff]
      %v4819 = vld [vmem:[%s4275 + $0x152] sm:$0xff]
      %v4820 = vld [vmem:[%s4275 + $0x15a] sm:$0xff]
      %v4821 = vld [vmem:[%s4275 + $0x16a] sm:$0xff]
      %v4822 = vld [vmem:[%s4275 + $0x172] sm:$0xff]
      %4855 = vrot.lane.b32.xlu0 %v4759, 8
      %v4856 = vpop.permute.xlu0 %4855
      %4857 = vrot.lane.b32.xlu0 %v4760, 8
      %v4858 = vpop.permute.xlu0 %4857
      %4859 = vrot.lane.b32.xlu0 %v4761, 8
      %v4860 = vpop.permute.xlu0 %4859
      %4861 = vrot.lane.b32.xlu0 %v4762, 8
      %v4862 = vpop.permute.xlu0 %4861
      %4863 = vrot.lane.b32.xlu0 %v4763, 8
      %v4864 = vpop.permute.xlu0 %4863
      %4865 = vrot.lane.b32.xlu0 %v4764, 8
      %v4866 = vpop.permute.xlu0 %4865
      %4867 = vrot.lane.b32.xlu0 %v4765, 8
      %v4868 = vpop.permute.xlu0 %4867
      %4869 = vrot.lane.b32.xlu0 %v4766, 8
      %v4870 = vpop.permute.xlu0 %4869
      %4871 = vrot.lane.b32.xlu0 %v4767, 8
      %v4872 = vpop.permute.xlu0 %4871
      %4873 = vrot.lane.b32.xlu0 %v4768, 8
      %v4874 = vpop.permute.xlu0 %4873
      %4875 = vrot.lane.b32.xlu0 %v4769, 8
      %v4876 = vpop.permute.xlu0 %4875
      %4877 = vrot.lane.b32.xlu0 %v4770, 8
      %v4878 = vpop.permute.xlu0 %4877
      %4879 = vrot.lane.b32.xlu0 %v4771, 8
      %v4880 = vpop.permute.xlu0 %4879
      %4881 = vrot.lane.b32.xlu0 %v4772, 8
      %v4882 = vpop.permute.xlu0 %4881
      %4883 = vrot.lane.b32.xlu0 %v4773, 8
      %v4884 = vpop.permute.xlu0 %4883
      %4885 = vrot.lane.b32.xlu0 %v4774, 8
      %v4886 = vpop.permute.xlu0 %4885
      %4887 = vrot.lane.b32.xlu0 %v4775, 8
      %v4888 = vpop.permute.xlu0 %4887
      %4889 = vrot.lane.b32.xlu0 %v4776, 8
      %v4890 = vpop.permute.xlu0 %4889
      %4891 = vrot.lane.b32.xlu0 %v4777, 8
      %v4892 = vpop.permute.xlu0 %4891
      %4893 = vrot.lane.b32.xlu0 %v4778, 8
      %v4894 = vpop.permute.xlu0 %4893
      %4895 = vrot.lane.b32.xlu0 %v4779, 8
      %v4896 = vpop.permute.xlu0 %4895
      %4897 = vrot.lane.b32.xlu0 %v4780, 8
      %v4898 = vpop.permute.xlu0 %4897
      %4899 = vrot.lane.b32.xlu0 %v4781, 8
      %v4900 = vpop.permute.xlu0 %4899
      %4901 = vrot.lane.b32.xlu0 %v4782, 8
      %v4902 = vpop.permute.xlu0 %4901
      %4903 = vrot.lane.b32.xlu0 %v4783, 8
      %v4904 = vpop.permute.xlu0 %4903
      %4905 = vrot.lane.b32.xlu0 %v4784, 8
      %v4906 = vpop.permute.xlu0 %4905
      %4907 = vrot.lane.b32.xlu0 %v4785, 8
      %v4908 = vpop.permute.xlu0 %4907
      %4909 = vrot.lane.b32.xlu0 %v4786, 8
      %v4910 = vpop.permute.xlu0 %4909
      %4911 = vrot.lane.b32.xlu0 %v4787, 8
      %v4912 = vpop.permute.xlu0 %4911
      %4913 = vrot.lane.b32.xlu0 %v4788, 8
      %v4914 = vpop.permute.xlu0 %4913
      %4915 = vrot.lane.b32.xlu0 %v4789, 8
      %v4916 = vpop.permute.xlu0 %4915
      %4917 = vrot.lane.b32.xlu0 %v4790, 8
      %v4918 = vpop.permute.xlu0 %4917
      %4983 = vrot.lane.b32.xlu0 %v4791, 16
      %v4984 = vpop.permute.xlu0 %4983
      %4985 = vrot.lane.b32.xlu0 %v4792, 16
      %v4986 = vpop.permute.xlu0 %4985
      %4987 = vrot.lane.b32.xlu0 %v4793, 16
      %v4988 = vpop.permute.xlu0 %4987
      %4989 = vrot.lane.b32.xlu0 %v4794, 16
      %v4990 = vpop.permute.xlu0 %4989
      %4991 = vrot.lane.b32.xlu0 %v4795, 16
      %v4992 = vpop.permute.xlu0 %4991
      %4993 = vrot.lane.b32.xlu0 %v4796, 16
      %v4994 = vpop.permute.xlu0 %4993
      %4995 = vrot.lane.b32.xlu0 %v4797, 16
      %v4996 = vpop.permute.xlu0 %4995
      %4997 = vrot.lane.b32.xlu0 %v4798, 16
      %v4998 = vpop.permute.xlu0 %4997
      %4999 = vrot.lane.b32.xlu0 %v4799, 16
      %v5000 = vpop.permute.xlu0 %4999
      %5001 = vrot.lane.b32.xlu0 %v4800, 16
      %v5002 = vpop.permute.xlu0 %5001
      %5003 = vrot.lane.b32.xlu0 %v4801, 16
      %v5004 = vpop.permute.xlu0 %5003
      %5005 = vrot.lane.b32.xlu0 %v4802, 16
      %v5006 = vpop.permute.xlu0 %5005
      %5007 = vrot.lane.b32.xlu0 %v4803, 16
      %v5008 = vpop.permute.xlu0 %5007
      %5009 = vrot.lane.b32.xlu0 %v4804, 16
      %v5010 = vpop.permute.xlu0 %5009
      %5011 = vrot.lane.b32.xlu0 %v4805, 16
      %v5012 = vpop.permute.xlu0 %5011
      %5013 = vrot.lane.b32.xlu0 %v4806, 16
      %v5014 = vpop.permute.xlu0 %5013
      %5015 = vrot.lane.b32.xlu0 %v4807, 16
      %v5016 = vpop.permute.xlu0 %5015
      %5017 = vrot.lane.b32.xlu0 %v4808, 16
      %v5018 = vpop.permute.xlu0 %5017
      %5019 = vrot.lane.b32.xlu0 %v4809, 16
      %v5020 = vpop.permute.xlu0 %5019
      %5021 = vrot.lane.b32.xlu0 %v4810, 16
      %v5022 = vpop.permute.xlu0 %5021
      %5023 = vrot.lane.b32.xlu0 %v4811, 16
      %v5024 = vpop.permute.xlu0 %5023
      %5025 = vrot.lane.b32.xlu0 %v4812, 16
      %v5026 = vpop.permute.xlu0 %5025
      %5027 = vrot.lane.b32.xlu0 %v4813, 16
      %v5028 = vpop.permute.xlu0 %5027
      %5029 = vrot.lane.b32.xlu0 %v4814, 16
      %v5030 = vpop.permute.xlu0 %5029
      %5031 = vrot.lane.b32.xlu0 %v4815, 16
      %v5032 = vpop.permute.xlu0 %5031
      %5033 = vrot.lane.b32.xlu0 %v4816, 16
      %v5034 = vpop.permute.xlu0 %5033
      %5035 = vrot.lane.b32.xlu0 %v4817, 16
      %v5036 = vpop.permute.xlu0 %5035
      %5037 = vrot.lane.b32.xlu0 %v4818, 16
      %v5038 = vpop.permute.xlu0 %5037
      %5039 = vrot.lane.b32.xlu0 %v4819, 16
      %v5040 = vpop.permute.xlu0 %5039
      %5041 = vrot.lane.b32.xlu0 %v4820, 16
      %v5042 = vpop.permute.xlu0 %5041
      %5043 = vrot.lane.b32.xlu0 %v4821, 16
      %v5044 = vpop.permute.xlu0 %5043
      %5045 = vrot.lane.b32.xlu0 %v4822, 16
      %v5046 = vpop.permute.xlu0 %5045
      %v5079 = vsel %vm372, %v4727, %v4856
      %v5080 = vsel %vm372, %v4728, %v4858
      %v5081 = vsel %vm372, %v4729, %v4860
      %v5082 = vsel %vm372, %v4730, %v4862
      %v5083 = vsel %vm372, %v4731, %v4864
      %v5084 = vsel %vm372, %v4732, %v4866
      %v5085 = vsel %vm372, %v4733, %v4868
      %v5086 = vsel %vm372, %v4734, %v4870
      %v5087 = vsel %vm372, %v4735, %v4872
      %v5088 = vsel %vm372, %v4736, %v4874
      %v5089 = vsel %vm372, %v4737, %v4876
      %v5090 = vsel %vm372, %v4738, %v4878
      %v5091 = vsel %vm372, %v4739, %v4880
      %v5092 = vsel %vm372, %v4740, %v4882
      %v5093 = vsel %vm372, %v4741, %v4884
      %v5094 = vsel %vm372, %v4742, %v4886
      %v5095 = vsel %vm372, %v4743, %v4888
      %v5096 = vsel %vm372, %v4744, %v4890
      %v5097 = vsel %vm372, %v4745, %v4892
      %v5098 = vsel %vm372, %v4746, %v4894
      %v5099 = vsel %vm372, %v4747, %v4896
      %v5100 = vsel %vm372, %v4748, %v4898
      %v5101 = vsel %vm372, %v4749, %v4900
      %v5102 = vsel %vm372, %v4750, %v4902
      %v5103 = vsel %vm372, %v4751, %v4904
      %v5104 = vsel %vm372, %v4752, %v4906
      %v5105 = vsel %vm372, %v4753, %v4908
      %v5106 = vsel %vm372, %v4754, %v4910
      %v5107 = vsel %vm372, %v4755, %v4912
      %v5108 = vsel %vm372, %v4756, %v4914
      %v5109 = vsel %vm372, %v4757, %v4916
      %v5110 = vsel %vm372, %v4758, %v4918
      %v5111 = vsel %vm326, %v5079, %v4984
      %v5112 = vsel %vm326, %v5080, %v4986
      %v5113 = vsel %vm326, %v5081, %v4988
      %v5114 = vsel %vm326, %v5082, %v4990
      %v5115 = vsel %vm326, %v5083, %v4992
      %v5116 = vsel %vm326, %v5084, %v4994
      %v5117 = vsel %vm326, %v5085, %v4996
      %v5118 = vsel %vm326, %v5086, %v4998
      %v5119 = vsel %vm326, %v5087, %v5000
      %v5120 = vsel %vm326, %v5088, %v5002
      %v5121 = vsel %vm326, %v5089, %v5004
      %v5122 = vsel %vm326, %v5090, %v5006
      %v5123 = vsel %vm326, %v5091, %v5008
      %v5124 = vsel %vm326, %v5092, %v5010
      %v5125 = vsel %vm326, %v5093, %v5012
      %v5126 = vsel %vm326, %v5094, %v5014
      %v5127 = vsel %vm326, %v5095, %v5016
      %v5128 = vsel %vm326, %v5096, %v5018
      %v5129 = vsel %vm326, %v5097, %v5020
      %v5130 = vsel %vm326, %v5098, %v5022
      %v5131 = vsel %vm326, %v5099, %v5024
      %v5132 = vsel %vm326, %v5100, %v5026
      %v5133 = vsel %vm326, %v5101, %v5028
      %v5134 = vsel %vm326, %v5102, %v5030
      %v5135 = vsel %vm326, %v5103, %v5032
      %v5136 = vsel %vm326, %v5104, %v5034
      %v5137 = vsel %vm326, %v5105, %v5036
      %v5138 = vsel %vm326, %v5106, %v5038
      %v5139 = vsel %vm326, %v5107, %v5040
      %v5140 = vsel %vm326, %v5108, %v5042
      %v5141 = vsel %vm326, %v5109, %v5044
      %v5142 = vsel %vm326, %v5110, %v5046
      %s5143 = scalar_lea.vmem %s6, 24
      %v5144 = vld [vmem:[%s5143] sm:$0xff]
      %v5145 = vld [vmem:[%s5143 + $0x8] sm:$0xff]
      %v5146 = vld [vmem:[%s5143 + $0x10] sm:$0xff]
      %vm5147 = vcmask 195584
      %v5149 = vsel %vm5147, %v5111, 0
      %v5152 = vsel %vm5147, %v5112, 0
      %v5155 = vsel %vm5147, %v5113, 0
      %v5158 = vsel %vm5147, %v5114, 0
      %v5161 = vsel %vm5147, %v5115, 0
      %v5164 = vsel %vm5147, %v5116, 0
      %v5167 = vsel %vm5147, %v5117, 0
      %v5170 = vsel %vm5147, %v5118, 0
      %v5173 = vsel %vm5147, %v5119, 0
      %v5176 = vsel %vm5147, %v5120, 0
      %v5179 = vsel %vm5147, %v5121, 0
      %v5182 = vsel %vm5147, %v5122, 0
      %v5185 = vsel %vm5147, %v5123, 0
      %v5188 = vsel %vm5147, %v5124, 0
      %v5191 = vsel %vm5147, %v5125, 0
      %v5194 = vsel %vm5147, %v5126, 0
      %v5197 = vsel %vm5147, %v5127, 0
      %v5200 = vsel %vm5147, %v5128, 0
      %v5203 = vsel %vm5147, %v5129, 0
      %v5206 = vsel %vm5147, %v5130, 0
      %v5209 = vsel %vm5147, %v5131, 0
      %v5212 = vsel %vm5147, %v5132, 0
      %v5215 = vsel %vm5147, %v5133, 0
      %v5218 = vsel %vm5147, %v5134, 0
      %v5221 = vsel %vm5147, %v5135, 0
      %v5224 = vsel %vm5147, %v5136, 0
      %v5227 = vsel %vm5147, %v5137, 0
      %v5230 = vsel %vm5147, %v5138, 0
      %v5233 = vsel %vm5147, %v5139, 0
      %v5236 = vsel %vm5147, %v5140, 0
      %v5239 = vsel %vm5147, %v5141, 0
      %v5242 = vsel %vm5147, %v5142, 0
      %5244 = vmatprep.subr.mxu0 0.0
      %5245 = vmatpush1.msra.mxu0 0.0
      %5246 = vmatprep.subr.mxu0 0.0
      %5247 = vmatpush1.msra.mxu0 0.0
      %5248 = vmatprep.subr.mxu0 0.0
      %5249 = vmatpush1.msra.mxu0 0.0
      %5250 = vmatprep.subr.mxu0 0.0
      %5251 = vmatpush1.msra.mxu0 0.0
      %5252 = vmatprep.subr.mxu0 0.0
      %5253 = vmatpush1.msra.mxu0 0.0
      %5254 = vmatprep.subr.mxu0 0.0
      %5255 = vmatpush1.msra.mxu0 0.0
      %5256 = vmatprep.subr.mxu0 0.0
      %5257 = vmatpush1.msra.mxu0 0.0
      %5258 = vmatprep.subr.mxu0 0.0
      %5259 = vmatpush1.msra.mxu0 0.0
      %5260 = vmatprep.subr.mxu0 0.0
      %5261 = vmatpush1.msra.mxu0 0.0
      %5262 = vmatprep.subr.mxu0 0.0
      %5263 = vmatpush1.msra.mxu0 0.0
      %5264 = vmatprep.subr.mxu0 0.0
      %5265 = vmatpush1.msra.mxu0 0.0
      %5266 = vmatprep.subr.mxu0 0.0
      %5267 = vmatpush1.msra.mxu0 0.0
      %5268 = vmatprep.subr.mxu0 0.0
      %5269 = vmatpush1.msra.mxu0 0.0
      %5270 = vmatprep.subr.mxu0 0.0
      %5271 = vmatpush1.msra.mxu0 %v5146
      %5272 = vmatprep.subr.mxu0 0.0
      %5273 = vmatpush1.msra.mxu0 %v5145
      %5274 = vmatprep.subr.mxu0 0.0
      %5275 = vmatpush1.msra.mxu0 %v5144
      %5276 = vmatprep.subr.mxu0 0.0
      %5277 = vmatpush2.msra.mxu0 0.0
      %5278 = vmatprep.subr.mxu0 0.0
      %5279 = vmatpush2.msra.mxu0 0.0
      %5280 = vmatprep.subr.mxu0 0.0
      %5281 = vmatpush2.msra.mxu0 0.0
      %5282 = vmatprep.subr.mxu0 0.0
      %5283 = vmatpush2.msra.mxu0 0.0
      %5284 = vmatprep.subr.mxu0 0.0
      %5285 = vmatpush2.msra.mxu0 0.0
      %5286 = vmatprep.subr.mxu0 0.0
      %5287 = vmatpush2.msra.mxu0 0.0
      %5288 = vmatprep.subr.mxu0 0.0
      %5289 = vmatpush2.msra.mxu0 0.0
      %5290 = vmatprep.subr.mxu0 0.0
      %5291 = vmatpush2.msra.mxu0 0.0
      %5292 = vmatprep.subr.mxu0 0.0
      %5293 = vmatpush2.msra.mxu0 0.0
      %5294 = vmatprep.subr.mxu0 0.0
      %5295 = vmatpush2.msra.mxu0 0.0
      %5296 = vmatprep.subr.mxu0 0.0
      %5297 = vmatpush2.msra.mxu0 0.0
      %5298 = vmatprep.subr.mxu0 0.0
      %5299 = vmatpush2.msra.mxu0 0.0
      %5300 = vmatprep.subr.mxu0 0.0
      %5301 = vmatpush2.msra.mxu0 0.0
      %5302 = vmatprep.subr.mxu0 0.0
      %5303 = vmatpush2.msra.mxu0 0.0
      %5304 = vmatprep.subr.mxu0 0.0
      %5305 = vmatpush2.msra.mxu0 0.0
      %5306 = vmatprep.subr.mxu0 0.0
      %5307 = vmatpush2.msra.mxu0 0.0
      %5308 = vmatprep.mubr.f32.mxu0 0.0
      %5309 = vmatmul.mubr.f32.gmra.mxu0 %v5149
      %v5310 = vpop.f32.mrf.mxu0
      %v5311 = vadd.f32 0.0, %v5310
      %v5312 = vpop.f32.mrf.mxu0
      %5313 = vmatprep.mubr.f32.mxu0 0.0
      %5314 = vmatmul.mubr.f32.gmra.mxu0 %v5152
      %v5315 = vpop.f32.mrf.mxu0
      %v5316 = vadd.f32 0.0, %v5315
      %v5317 = vpop.f32.mrf.mxu0
      %5318 = vmatprep.mubr.f32.mxu0 0.0
      %5319 = vmatmul.mubr.f32.gmra.mxu0 %v5155
      %v5320 = vpop.f32.mrf.mxu0
      %v5321 = vadd.f32 0.0, %v5320
      %v5322 = vpop.f32.mrf.mxu0
      %5323 = vmatprep.mubr.f32.mxu0 0.0
      %5324 = vmatmul.mubr.f32.gmra.mxu0 %v5158
      %v5325 = vpop.f32.mrf.mxu0
      %v5326 = vadd.f32 0.0, %v5325
      %v5327 = vpop.f32.mrf.mxu0
      %5328 = vmatprep.mubr.f32.mxu0 0.0
      %5329 = vmatmul.mubr.f32.gmra.mxu0 %v5161
      %v5330 = vpop.f32.mrf.mxu0
      %v5331 = vadd.f32 0.0, %v5330
      %v5332 = vpop.f32.mrf.mxu0
      %5333 = vmatprep.mubr.f32.mxu0 0.0
      %5334 = vmatmul.mubr.f32.gmra.mxu0 %v5164
      %v5335 = vpop.f32.mrf.mxu0
      %v5336 = vadd.f32 0.0, %v5335
      %v5337 = vpop.f32.mrf.mxu0
      %5338 = vmatprep.mubr.f32.mxu0 0.0
      %5339 = vmatmul.mubr.f32.gmra.mxu0 %v5167
      %v5340 = vpop.f32.mrf.mxu0
      %v5341 = vadd.f32 0.0, %v5340
      %v5342 = vpop.f32.mrf.mxu0
      %5343 = vmatprep.mubr.f32.mxu0 0.0
      %5344 = vmatmul.mubr.f32.gmra.mxu0 %v5170
      %v5345 = vpop.f32.mrf.mxu0
      %v5346 = vadd.f32 0.0, %v5345
      %v5347 = vpop.f32.mrf.mxu0
      %5348 = vmatprep.mubr.f32.mxu0 0.0
      %5349 = vmatmul.mubr.f32.gmra.mxu0 %v5173
      %v5350 = vpop.f32.mrf.mxu0
      %v5351 = vadd.f32 0.0, %v5350
      %v5352 = vpop.f32.mrf.mxu0
      %5353 = vmatprep.mubr.f32.mxu0 0.0
      %5354 = vmatmul.mubr.f32.gmra.mxu0 %v5176
      %v5355 = vpop.f32.mrf.mxu0
      %v5356 = vadd.f32 0.0, %v5355
      %v5357 = vpop.f32.mrf.mxu0
      %5358 = vmatprep.mubr.f32.mxu0 0.0
      %5359 = vmatmul.mubr.f32.gmra.mxu0 %v5179
      %v5360 = vpop.f32.mrf.mxu0
      %v5361 = vadd.f32 0.0, %v5360
      %v5362 = vpop.f32.mrf.mxu0
      %5363 = vmatprep.mubr.f32.mxu0 0.0
      %5364 = vmatmul.mubr.f32.gmra.mxu0 %v5182
      %v5365 = vpop.f32.mrf.mxu0
      %v5366 = vadd.f32 0.0, %v5365
      %v5367 = vpop.f32.mrf.mxu0
      %5368 = vmatprep.mubr.f32.mxu0 0.0
      %5369 = vmatmul.mubr.f32.gmra.mxu0 %v5185
      %v5370 = vpop.f32.mrf.mxu0
      %v5371 = vadd.f32 0.0, %v5370
      %v5372 = vpop.f32.mrf.mxu0
      %5373 = vmatprep.mubr.f32.mxu0 0.0
      %5374 = vmatmul.mubr.f32.gmra.mxu0 %v5188
      %v5375 = vpop.f32.mrf.mxu0
      %v5376 = vadd.f32 0.0, %v5375
      %v5377 = vpop.f32.mrf.mxu0
      %5378 = vmatprep.mubr.f32.mxu0 0.0
      %5379 = vmatmul.mubr.f32.gmra.mxu0 %v5191
      %v5380 = vpop.f32.mrf.mxu0
      %v5381 = vadd.f32 0.0, %v5380
      %v5382 = vpop.f32.mrf.mxu0
      %5383 = vmatprep.mubr.f32.mxu0 0.0
      %5384 = vmatmul.mubr.f32.gmra.mxu0 %v5194
      %v5385 = vpop.f32.mrf.mxu0
      %v5386 = vadd.f32 0.0, %v5385
      %v5387 = vpop.f32.mrf.mxu0
      %5388 = vmatprep.mubr.f32.mxu0 0.0
      %5389 = vmatmul.mubr.f32.gmra.mxu0 %v5197
      %v5390 = vpop.f32.mrf.mxu0
      %v5391 = vadd.f32 0.0, %v5390
      %v5392 = vpop.f32.mrf.mxu0
      %5393 = vmatprep.mubr.f32.mxu0 0.0
      %5394 = vmatmul.mubr.f32.gmra.mxu0 %v5200
      %v5395 = vpop.f32.mrf.mxu0
      %v5396 = vadd.f32 0.0, %v5395
      %v5397 = vpop.f32.mrf.mxu0
      %5398 = vmatprep.mubr.f32.mxu0 0.0
      %5399 = vmatmul.mubr.f32.gmra.mxu0 %v5203
      %v5400 = vpop.f32.mrf.mxu0
      %v5401 = vadd.f32 0.0, %v5400
      %v5402 = vpop.f32.mrf.mxu0
      %5403 = vmatprep.mubr.f32.mxu0 0.0
      %5404 = vmatmul.mubr.f32.gmra.mxu0 %v5206
      %v5405 = vpop.f32.mrf.mxu0
      %v5406 = vadd.f32 0.0, %v5405
      %v5407 = vpop.f32.mrf.mxu0
      %5408 = vmatprep.mubr.f32.mxu0 0.0
      %5409 = vmatmul.mubr.f32.gmra.mxu0 %v5209
      %v5410 = vpop.f32.mrf.mxu0
      %v5411 = vadd.f32 0.0, %v5410
      %v5412 = vpop.f32.mrf.mxu0
      %5413 = vmatprep.mubr.f32.mxu0 0.0
      %5414 = vmatmul.mubr.f32.gmra.mxu0 %v5212
      %v5415 = vpop.f32.mrf.mxu0
      %v5416 = vadd.f32 0.0, %v5415
      %v5417 = vpop.f32.mrf.mxu0
      %5418 = vmatprep.mubr.f32.mxu0 0.0
      %5419 = vmatmul.mubr.f32.gmra.mxu0 %v5215
      %v5420 = vpop.f32.mrf.mxu0
      %v5421 = vadd.f32 0.0, %v5420
      %v5422 = vpop.f32.mrf.mxu0
      %5423 = vmatprep.mubr.f32.mxu0 0.0
      %5424 = vmatmul.mubr.f32.gmra.mxu0 %v5218
      %v5425 = vpop.f32.mrf.mxu0
      %v5426 = vadd.f32 0.0, %v5425
      %v5427 = vpop.f32.mrf.mxu0
      %5428 = vmatprep.mubr.f32.mxu0 0.0
      %5429 = vmatmul.mubr.f32.gmra.mxu0 %v5221
      %v5430 = vpop.f32.mrf.mxu0
      %v5431 = vadd.f32 0.0, %v5430
      %v5432 = vpop.f32.mrf.mxu0
      %5433 = vmatprep.mubr.f32.mxu0 0.0
      %5434 = vmatmul.mubr.f32.gmra.mxu0 %v5224
      %v5435 = vpop.f32.mrf.mxu0
      %v5436 = vadd.f32 0.0, %v5435
      %v5437 = vpop.f32.mrf.mxu0
      %5438 = vmatprep.mubr.f32.mxu0 0.0
      %5439 = vmatmul.mubr.f32.gmra.mxu0 %v5227
      %v5440 = vpop.f32.mrf.mxu0
      %v5441 = vadd.f32 0.0, %v5440
      %v5442 = vpop.f32.mrf.mxu0
      %5443 = vmatprep.mubr.f32.mxu0 0.0
      %5444 = vmatmul.mubr.f32.gmra.mxu0 %v5230
      %v5445 = vpop.f32.mrf.mxu0
      %v5446 = vadd.f32 0.0, %v5445
      %v5447 = vpop.f32.mrf.mxu0
      %5448 = vmatprep.mubr.f32.mxu0 0.0
      %5449 = vmatmul.mubr.f32.gmra.mxu0 %v5233
      %v5450 = vpop.f32.mrf.mxu0
      %v5451 = vadd.f32 0.0, %v5450
      %v5452 = vpop.f32.mrf.mxu0
      %5453 = vmatprep.mubr.f32.mxu0 0.0
      %5454 = vmatmul.mubr.f32.gmra.mxu0 %v5236
      %v5455 = vpop.f32.mrf.mxu0
      %v5456 = vadd.f32 0.0, %v5455
      %v5457 = vpop.f32.mrf.mxu0
      %5458 = vmatprep.mubr.f32.mxu0 0.0
      %5459 = vmatmul.mubr.f32.gmra.mxu0 %v5239
      %v5460 = vpop.f32.mrf.mxu0
      %v5461 = vadd.f32 0.0, %v5460
      %v5462 = vpop.f32.mrf.mxu0
      %5463 = vmatprep.mubr.f32.mxu0 0.0
      %5464 = vmatmul.mubr.f32.gmra.mxu0 %v5242
      %v5465 = vpop.f32.mrf.mxu0
      %v5466 = vadd.f32 0.0, %v5465
      %v5467 = vpop.f32.mrf.mxu0
      %5468 = vdwg.mxu0
      %v5470 = vsel %vm5147, %v4692, 0
      %v5473 = vsel %vm5147, %v4693, 0
      %v5476 = vsel %vm5147, %v4694, 0
      %v5479 = vsel %vm5147, %v4695, 0
      %v5482 = vsel %vm5147, %v4696, 0
      %v5485 = vsel %vm5147, %v4697, 0
      %v5488 = vsel %vm5147, %v4698, 0
      %v5491 = vsel %vm5147, %v4699, 0
      %v5494 = vsel %vm5147, %v4700, 0
      %v5497 = vsel %vm5147, %v4701, 0
      %v5500 = vsel %vm5147, %v4702, 0
      %v5503 = vsel %vm5147, %v4703, 0
      %v5506 = vsel %vm5147, %v4704, 0
      %v5509 = vsel %vm5147, %v4705, 0
      %v5512 = vsel %vm5147, %v4706, 0
      %v5515 = vsel %vm5147, %v4707, 0
      %v5518 = vsel %vm5147, %v4708, 0
      %v5521 = vsel %vm5147, %v4709, 0
      %v5524 = vsel %vm5147, %v4710, 0
      %v5527 = vsel %vm5147, %v4711, 0
      %v5530 = vsel %vm5147, %v4712, 0
      %v5533 = vsel %vm5147, %v4713, 0
      %v5536 = vsel %vm5147, %v4714, 0
      %v5539 = vsel %vm5147, %v4715, 0
      %v5542 = vsel %vm5147, %v4716, 0
      %v5545 = vsel %vm5147, %v4717, 0
      %v5548 = vsel %vm5147, %v4718, 0
      %v5551 = vsel %vm5147, %v4719, 0
      %v5554 = vsel %vm5147, %v4720, 0
      %v5557 = vsel %vm5147, %v4721, 0
      %v5560 = vsel %vm5147, %v4722, 0
      %v5563 = vsel %vm5147, %v4723, 0
      %5565 = vmatprep.subr.mxu0 0.0
      %5566 = vmatpush1.msra.mxu0 0.0
      %5567 = vmatprep.subr.mxu0 0.0
      %5568 = vmatpush1.msra.mxu0 0.0
      %5569 = vmatprep.subr.mxu0 0.0
      %5570 = vmatpush1.msra.mxu0 0.0
      %5571 = vmatprep.subr.mxu0 0.0
      %5572 = vmatpush1.msra.mxu0 0.0
      %5573 = vmatprep.subr.mxu0 0.0
      %5574 = vmatpush1.msra.mxu0 0.0
      %5575 = vmatprep.subr.mxu0 0.0
      %5576 = vmatpush1.msra.mxu0 0.0
      %5577 = vmatprep.subr.mxu0 0.0
      %5578 = vmatpush1.msra.mxu0 0.0
      %5579 = vmatprep.subr.mxu0 0.0
      %5580 = vmatpush1.msra.mxu0 0.0
      %5581 = vmatprep.subr.mxu0 0.0
      %5582 = vmatpush1.msra.mxu0 0.0
      %5583 = vmatprep.subr.mxu0 0.0
      %5584 = vmatpush1.msra.mxu0 0.0
      %5585 = vmatprep.subr.mxu0 0.0
      %5586 = vmatpush1.msra.mxu0 0.0
      %5587 = vmatprep.subr.mxu0 0.0
      %5588 = vmatpush1.msra.mxu0 0.0
      %5589 = vmatprep.subr.mxu0 0.0
      %5590 = vmatpush1.msra.mxu0 0.0
      %5591 = vmatprep.subr.mxu0 0.0
      %5592 = vmatpush1.msra.mxu0 %v4726
      %5593 = vmatprep.subr.mxu0 0.0
      %5594 = vmatpush1.msra.mxu0 %v4725
      %5595 = vmatprep.subr.mxu0 0.0
      %5596 = vmatpush1.msra.mxu0 %v4724
      %5597 = vmatprep.subr.mxu0 0.0
      %5598 = vmatpush2.msra.mxu0 0.0
      %5599 = vmatprep.subr.mxu0 0.0
      %5600 = vmatpush2.msra.mxu0 0.0
      %5601 = vmatprep.subr.mxu0 0.0
      %5602 = vmatpush2.msra.mxu0 0.0
      %5603 = vmatprep.subr.mxu0 0.0
      %5604 = vmatpush2.msra.mxu0 0.0
      %5605 = vmatprep.subr.mxu0 0.0
      %5606 = vmatpush2.msra.mxu0 0.0
      %5607 = vmatprep.subr.mxu0 0.0
      %5608 = vmatpush2.msra.mxu0 0.0
      %5609 = vmatprep.subr.mxu0 0.0
      %5610 = vmatpush2.msra.mxu0 0.0
      %5611 = vmatprep.subr.mxu0 0.0
      %5612 = vmatpush2.msra.mxu0 0.0
      %5613 = vmatprep.subr.mxu0 0.0
      %5614 = vmatpush2.msra.mxu0 0.0
      %5615 = vmatprep.subr.mxu0 0.0
      %5616 = vmatpush2.msra.mxu0 0.0
      %5617 = vmatprep.subr.mxu0 0.0
      %5618 = vmatpush2.msra.mxu0 0.0
      %5619 = vmatprep.subr.mxu0 0.0
      %5620 = vmatpush2.msra.mxu0 0.0
      %5621 = vmatprep.subr.mxu0 0.0
      %5622 = vmatpush2.msra.mxu0 0.0
      %5623 = vmatprep.subr.mxu0 0.0
      %5624 = vmatpush2.msra.mxu0 0.0
      %5625 = vmatprep.subr.mxu0 0.0
      %5626 = vmatpush2.msra.mxu0 0.0
      %5627 = vmatprep.subr.mxu0 0.0
      %5628 = vmatpush2.msra.mxu0 0.0
      %5629 = vmatprep.mubr.f32.mxu0 0.0
      %5630 = vmatmul.mubr.f32.gmra.mxu0 %v5470
      %v5631 = vpop.f32.mrf.mxu0
      %v5632 = vadd.f32 %v5311, %v5631
      %v5633 = vpop.f32.mrf.mxu0
      %5634 = vmatprep.mubr.f32.mxu0 0.0
      %5635 = vmatmul.mubr.f32.gmra.mxu0 %v5473
      %v5636 = vpop.f32.mrf.mxu0
      %v5637 = vadd.f32 %v5316, %v5636
      %v5638 = vpop.f32.mrf.mxu0
      %5639 = vmatprep.mubr.f32.mxu0 0.0
      %5640 = vmatmul.mubr.f32.gmra.mxu0 %v5476
      %v5641 = vpop.f32.mrf.mxu0
      %v5642 = vadd.f32 %v5321, %v5641
      %v5643 = vpop.f32.mrf.mxu0
      %5644 = vmatprep.mubr.f32.mxu0 0.0
      %5645 = vmatmul.mubr.f32.gmra.mxu0 %v5479
      %v5646 = vpop.f32.mrf.mxu0
      %v5647 = vadd.f32 %v5326, %v5646
      %v5648 = vpop.f32.mrf.mxu0
      %5649 = vmatprep.mubr.f32.mxu0 0.0
      %5650 = vmatmul.mubr.f32.gmra.mxu0 %v5482
      %v5651 = vpop.f32.mrf.mxu0
      %v5652 = vadd.f32 %v5331, %v5651
      %v5653 = vpop.f32.mrf.mxu0
      %5654 = vmatprep.mubr.f32.mxu0 0.0
      %5655 = vmatmul.mubr.f32.gmra.mxu0 %v5485
      %v5656 = vpop.f32.mrf.mxu0
      %v5657 = vadd.f32 %v5336, %v5656
      %v5658 = vpop.f32.mrf.mxu0
      %5659 = vmatprep.mubr.f32.mxu0 0.0
      %5660 = vmatmul.mubr.f32.gmra.mxu0 %v5488
      %v5661 = vpop.f32.mrf.mxu0
      %v5662 = vadd.f32 %v5341, %v5661
      %v5663 = vpop.f32.mrf.mxu0
      %5664 = vmatprep.mubr.f32.mxu0 0.0
      %5665 = vmatmul.mubr.f32.gmra.mxu0 %v5491
      %v5666 = vpop.f32.mrf.mxu0
      %v5667 = vadd.f32 %v5346, %v5666
      %v5668 = vpop.f32.mrf.mxu0
      %5669 = vmatprep.mubr.f32.mxu0 0.0
      %5670 = vmatmul.mubr.f32.gmra.mxu0 %v5494
      %v5671 = vpop.f32.mrf.mxu0
      %v5672 = vadd.f32 %v5351, %v5671
      %v5673 = vpop.f32.mrf.mxu0
      %5674 = vmatprep.mubr.f32.mxu0 0.0
      %5675 = vmatmul.mubr.f32.gmra.mxu0 %v5497
      %v5676 = vpop.f32.mrf.mxu0
      %v5677 = vadd.f32 %v5356, %v5676
      %v5678 = vpop.f32.mrf.mxu0
      %5679 = vmatprep.mubr.f32.mxu0 0.0
      %5680 = vmatmul.mubr.f32.gmra.mxu0 %v5500
      %v5681 = vpop.f32.mrf.mxu0
      %v5682 = vadd.f32 %v5361, %v5681
      %v5683 = vpop.f32.mrf.mxu0
      %5684 = vmatprep.mubr.f32.mxu0 0.0
      %5685 = vmatmul.mubr.f32.gmra.mxu0 %v5503
      %v5686 = vpop.f32.mrf.mxu0
      %v5687 = vadd.f32 %v5366, %v5686
      %v5688 = vpop.f32.mrf.mxu0
      %5689 = vmatprep.mubr.f32.mxu0 0.0
      %5690 = vmatmul.mubr.f32.gmra.mxu0 %v5506
      %v5691 = vpop.f32.mrf.mxu0
      %v5692 = vadd.f32 %v5371, %v5691
      %v5693 = vpop.f32.mrf.mxu0
      %5694 = vmatprep.mubr.f32.mxu0 0.0
      %5695 = vmatmul.mubr.f32.gmra.mxu0 %v5509
      %v5696 = vpop.f32.mrf.mxu0
      %v5697 = vadd.f32 %v5376, %v5696
      %v5698 = vpop.f32.mrf.mxu0
      %5699 = vmatprep.mubr.f32.mxu0 0.0
      %5700 = vmatmul.mubr.f32.gmra.mxu0 %v5512
      %v5701 = vpop.f32.mrf.mxu0
      %v5702 = vadd.f32 %v5381, %v5701
      %v5703 = vpop.f32.mrf.mxu0
      %5704 = vmatprep.mubr.f32.mxu0 0.0
      %5705 = vmatmul.mubr.f32.gmra.mxu0 %v5515
      %v5706 = vpop.f32.mrf.mxu0
      %v5707 = vadd.f32 %v5386, %v5706
      %v5708 = vpop.f32.mrf.mxu0
      %5709 = vmatprep.mubr.f32.mxu0 0.0
      %5710 = vmatmul.mubr.f32.gmra.mxu0 %v5518
      %v5711 = vpop.f32.mrf.mxu0
      %v5712 = vadd.f32 %v5391, %v5711
      %v5713 = vpop.f32.mrf.mxu0
      %5714 = vmatprep.mubr.f32.mxu0 0.0
      %5715 = vmatmul.mubr.f32.gmra.mxu0 %v5521
      %v5716 = vpop.f32.mrf.mxu0
      %v5717 = vadd.f32 %v5396, %v5716
      %v5718 = vpop.f32.mrf.mxu0
      %5719 = vmatprep.mubr.f32.mxu0 0.0
      %5720 = vmatmul.mubr.f32.gmra.mxu0 %v5524
      %v5721 = vpop.f32.mrf.mxu0
      %v5722 = vadd.f32 %v5401, %v5721
      %v5723 = vpop.f32.mrf.mxu0
      %5724 = vmatprep.mubr.f32.mxu0 0.0
      %5725 = vmatmul.mubr.f32.gmra.mxu0 %v5527
      %v5726 = vpop.f32.mrf.mxu0
      %v5727 = vadd.f32 %v5406, %v5726
      %v5728 = vpop.f32.mrf.mxu0
      %5729 = vmatprep.mubr.f32.mxu0 0.0
      %5730 = vmatmul.mubr.f32.gmra.mxu0 %v5530
      %v5731 = vpop.f32.mrf.mxu0
      %v5732 = vadd.f32 %v5411, %v5731
      %v5733 = vpop.f32.mrf.mxu0
      %5734 = vmatprep.mubr.f32.mxu0 0.0
      %5735 = vmatmul.mubr.f32.gmra.mxu0 %v5533
      %v5736 = vpop.f32.mrf.mxu0
      %v5737 = vadd.f32 %v5416, %v5736
      %v5738 = vpop.f32.mrf.mxu0
      %5739 = vmatprep.mubr.f32.mxu0 0.0
      %5740 = vmatmul.mubr.f32.gmra.mxu0 %v5536
      %v5741 = vpop.f32.mrf.mxu0
      %v5742 = vadd.f32 %v5421, %v5741
      %v5743 = vpop.f32.mrf.mxu0
      %5744 = vmatprep.mubr.f32.mxu0 0.0
      %5745 = vmatmul.mubr.f32.gmra.mxu0 %v5539
      %v5746 = vpop.f32.mrf.mxu0
      %v5747 = vadd.f32 %v5426, %v5746
      %v5748 = vpop.f32.mrf.mxu0
      %5749 = vmatprep.mubr.f32.mxu0 0.0
      %5750 = vmatmul.mubr.f32.gmra.mxu0 %v5542
      %v5751 = vpop.f32.mrf.mxu0
      %v5752 = vadd.f32 %v5431, %v5751
      %v5753 = vpop.f32.mrf.mxu0
      %5754 = vmatprep.mubr.f32.mxu0 0.0
      %5755 = vmatmul.mubr.f32.gmra.mxu0 %v5545
      %v5756 = vpop.f32.mrf.mxu0
      %v5757 = vadd.f32 %v5436, %v5756
      %v5758 = vpop.f32.mrf.mxu0
      %5759 = vmatprep.mubr.f32.mxu0 0.0
      %5760 = vmatmul.mubr.f32.gmra.mxu0 %v5548
      %v5761 = vpop.f32.mrf.mxu0
      %v5762 = vadd.f32 %v5441, %v5761
      %v5763 = vpop.f32.mrf.mxu0
      %5764 = vmatprep.mubr.f32.mxu0 0.0
      %5765 = vmatmul.mubr.f32.gmra.mxu0 %v5551
      %v5766 = vpop.f32.mrf.mxu0
      %v5767 = vadd.f32 %v5446, %v5766
      %v5768 = vpop.f32.mrf.mxu0
      %5769 = vmatprep.mubr.f32.mxu0 0.0
      %5770 = vmatmul.mubr.f32.gmra.mxu0 %v5554
      %v5771 = vpop.f32.mrf.mxu0
      %v5772 = vadd.f32 %v5451, %v5771
      %v5773 = vpop.f32.mrf.mxu0
      %5774 = vmatprep.mubr.f32.mxu0 0.0
      %5775 = vmatmul.mubr.f32.gmra.mxu0 %v5557
      %v5776 = vpop.f32.mrf.mxu0
      %v5777 = vadd.f32 %v5456, %v5776
      %v5778 = vpop.f32.mrf.mxu0
      %5779 = vmatprep.mubr.f32.mxu0 0.0
      %5780 = vmatmul.mubr.f32.gmra.mxu0 %v5560
      %v5781 = vpop.f32.mrf.mxu0
      %v5782 = vadd.f32 %v5461, %v5781
      %v5783 = vpop.f32.mrf.mxu0
      %5784 = vmatprep.mubr.f32.mxu0 0.0
      %5785 = vmatmul.mubr.f32.gmra.mxu0 %v5563
      %v5786 = vpop.f32.mrf.mxu0
      %v5787 = vadd.f32 %v5466, %v5786
      %v5788 = vpop.f32.mrf.mxu0
      %5789 = vdwg.mxu0
      %s5790 = scalar_lea.vmem [#allocation3], 48
      %v5791 = vld [vmem:[%s5790] sm:$0xff]
      %v5792 = vld [vmem:[%s5790 + $0x8] sm:$0xff]
      %v5793 = vld [vmem:[%s5790 + $0x18] sm:$0xff]
      %v5794 = vld [vmem:[%s5790 + $0x20] sm:$0xff]
      %v5795 = vld [vmem:[%s5790 + $0x30] sm:$0xff]
      %v5796 = vld [vmem:[%s5790 + $0x38] sm:$0xff]
      %v5797 = vld [vmem:[%s5790 + $0x48] sm:$0xff]
      %v5798 = vld [vmem:[%s5790 + $0x50] sm:$0xff]
      %v5799 = vld [vmem:[%s5790 + $0x60] sm:$0xff]
      %v5800 = vld [vmem:[%s5790 + $0x68] sm:$0xff]
      %v5801 = vld [vmem:[%s5790 + $0x78] sm:$0xff]
      %v5802 = vld [vmem:[%s5790 + $0x80] sm:$0xff]
      %v5803 = vld [vmem:[%s5790 + $0x90] sm:$0xff]
      %v5804 = vld [vmem:[%s5790 + $0x98] sm:$0xff]
      %v5805 = vld [vmem:[%s5790 + $0xa8] sm:$0xff]
      %v5806 = vld [vmem:[%s5790 + $0xb0] sm:$0xff]
      %v5807 = vld [vmem:[%s5790 + $0xc0] sm:$0xff]
      %v5808 = vld [vmem:[%s5790 + $0xc8] sm:$0xff]
      %v5809 = vld [vmem:[%s5790 + $0xd8] sm:$0xff]
      %v5810 = vld [vmem:[%s5790 + $0xe0] sm:$0xff]
      %v5811 = vld [vmem:[%s5790 + $0xf0] sm:$0xff]
      %v5812 = vld [vmem:[%s5790 + $0xf8] sm:$0xff]
      %v5813 = vld [vmem:[%s5790 + $0x108] sm:$0xff]
      %v5814 = vld [vmem:[%s5790 + $0x110] sm:$0xff]
      %v5815 = vld [vmem:[%s5790 + $0x120] sm:$0xff]
      %v5816 = vld [vmem:[%s5790 + $0x128] sm:$0xff]
      %v5817 = vld [vmem:[%s5790 + $0x138] sm:$0xff]
      %v5818 = vld [vmem:[%s5790 + $0x140] sm:$0xff]
      %v5819 = vld [vmem:[%s5790 + $0x150] sm:$0xff]
      %v5820 = vld [vmem:[%s5790 + $0x158] sm:$0xff]
      %v5821 = vld [vmem:[%s5790 + $0x168] sm:$0xff]
      %v5822 = vld [vmem:[%s5790 + $0x170] sm:$0xff]
      %v5823 = vld [vmem:[%s5790 + $0x1] sm:$0xff]
      %v5824 = vld [vmem:[%s5790 + $0x9] sm:$0xff]
      %v5825 = vld [vmem:[%s5790 + $0x19] sm:$0xff]
      %v5826 = vld [vmem:[%s5790 + $0x21] sm:$0xff]
      %v5827 = vld [vmem:[%s5790 + $0x31] sm:$0xff]
      %v5828 = vld [vmem:[%s5790 + $0x39] sm:$0xff]
      %v5829 = vld [vmem:[%s5790 + $0x49] sm:$0xff]
      %v5830 = vld [vmem:[%s5790 + $0x51] sm:$0xff]
      %v5831 = vld [vmem:[%s5790 + $0x61] sm:$0xff]
      %v5832 = vld [vmem:[%s5790 + $0x69] sm:$0xff]
      %v5833 = vld [vmem:[%s5790 + $0x79] sm:$0xff]
      %v5834 = vld [vmem:[%s5790 + $0x81] sm:$0xff]
      %v5835 = vld [vmem:[%s5790 + $0x91] sm:$0xff]
      %v5836 = vld [vmem:[%s5790 + $0x99] sm:$0xff]
      %v5837 = vld [vmem:[%s5790 + $0xa9] sm:$0xff]
      %v5838 = vld [vmem:[%s5790 + $0xb1] sm:$0xff]
      %v5839 = vld [vmem:[%s5790 + $0xc1] sm:$0xff]
      %v5840 = vld [vmem:[%s5790 + $0xc9] sm:$0xff]
      %v5841 = vld [vmem:[%s5790 + $0xd9] sm:$0xff]
      %v5842 = vld [vmem:[%s5790 + $0xe1] sm:$0xff]
      %v5843 = vld [vmem:[%s5790 + $0xf1] sm:$0xff]
      %v5844 = vld [vmem:[%s5790 + $0xf9] sm:$0xff]
      %v5845 = vld [vmem:[%s5790 + $0x109] sm:$0xff]
      %v5846 = vld [vmem:[%s5790 + $0x111] sm:$0xff]
      %v5847 = vld [vmem:[%s5790 + $0x121] sm:$0xff]
      %v5848 = vld [vmem:[%s5790 + $0x129] sm:$0xff]
      %v5849 = vld [vmem:[%s5790 + $0x139] sm:$0xff]
      %v5850 = vld [vmem:[%s5790 + $0x141] sm:$0xff]
      %v5851 = vld [vmem:[%s5790 + $0x151] sm:$0xff]
      %v5852 = vld [vmem:[%s5790 + $0x159] sm:$0xff]
      %v5853 = vld [vmem:[%s5790 + $0x169] sm:$0xff]
      %v5854 = vld [vmem:[%s5790 + $0x171] sm:$0xff]
      %v5855 = vld [vmem:[%s5790 + $0x2] sm:$0xff]
      %v5856 = vld [vmem:[%s5790 + $0xa] sm:$0xff]
      %v5857 = vld [vmem:[%s5790 + $0x1a] sm:$0xff]
      %v5858 = vld [vmem:[%s5790 + $0x22] sm:$0xff]
      %v5859 = vld [vmem:[%s5790 + $0x32] sm:$0xff]
      %v5860 = vld [vmem:[%s5790 + $0x3a] sm:$0xff]
      %v5861 = vld [vmem:[%s5790 + $0x4a] sm:$0xff]
      %v5862 = vld [vmem:[%s5790 + $0x52] sm:$0xff]
      %v5863 = vld [vmem:[%s5790 + $0x62] sm:$0xff]
      %v5864 = vld [vmem:[%s5790 + $0x6a] sm:$0xff]
      %v5865 = vld [vmem:[%s5790 + $0x7a] sm:$0xff]
      %v5866 = vld [vmem:[%s5790 + $0x82] sm:$0xff]
      %v5867 = vld [vmem:[%s5790 + $0x92] sm:$0xff]
      %v5868 = vld [vmem:[%s5790 + $0x9a] sm:$0xff]
      %v5869 = vld [vmem:[%s5790 + $0xaa] sm:$0xff]
      %v5870 = vld [vmem:[%s5790 + $0xb2] sm:$0xff]
      %v5871 = vld [vmem:[%s5790 + $0xc2] sm:$0xff]
      %v5872 = vld [vmem:[%s5790 + $0xca] sm:$0xff]
      %v5873 = vld [vmem:[%s5790 + $0xda] sm:$0xff]
      %v5874 = vld [vmem:[%s5790 + $0xe2] sm:$0xff]
      %v5875 = vld [vmem:[%s5790 + $0xf2] sm:$0xff]
      %v5876 = vld [vmem:[%s5790 + $0xfa] sm:$0xff]
      %v5877 = vld [vmem:[%s5790 + $0x10a] sm:$0xff]
      %v5878 = vld [vmem:[%s5790 + $0x112] sm:$0xff]
      %v5879 = vld [vmem:[%s5790 + $0x122] sm:$0xff]
      %v5880 = vld [vmem:[%s5790 + $0x12a] sm:$0xff]
      %v5881 = vld [vmem:[%s5790 + $0x13a] sm:$0xff]
      %v5882 = vld [vmem:[%s5790 + $0x142] sm:$0xff]
      %v5883 = vld [vmem:[%s5790 + $0x152] sm:$0xff]
      %v5884 = vld [vmem:[%s5790 + $0x15a] sm:$0xff]
      %v5885 = vld [vmem:[%s5790 + $0x16a] sm:$0xff]
      %v5886 = vld [vmem:[%s5790 + $0x172] sm:$0xff]
      %5919 = vrot.lane.b32.xlu0 %v5823, 8
      %v5920 = vpop.permute.xlu0 %5919
      %5921 = vrot.lane.b32.xlu0 %v5824, 8
      %v5922 = vpop.permute.xlu0 %5921
      %5923 = vrot.lane.b32.xlu0 %v5825, 8
      %v5924 = vpop.permute.xlu0 %5923
      %5925 = vrot.lane.b32.xlu0 %v5826, 8
      %v5926 = vpop.permute.xlu0 %5925
      %5927 = vrot.lane.b32.xlu0 %v5827, 8
      %v5928 = vpop.permute.xlu0 %5927
      %5929 = vrot.lane.b32.xlu0 %v5828, 8
      %v5930 = vpop.permute.xlu0 %5929
      %5931 = vrot.lane.b32.xlu0 %v5829, 8
      %v5932 = vpop.permute.xlu0 %5931
      %5933 = vrot.lane.b32.xlu0 %v5830, 8
      %v5934 = vpop.permute.xlu0 %5933
      %5935 = vrot.lane.b32.xlu0 %v5831, 8
      %v5936 = vpop.permute.xlu0 %5935
      %5937 = vrot.lane.b32.xlu0 %v5832, 8
      %v5938 = vpop.permute.xlu0 %5937
      %5939 = vrot.lane.b32.xlu0 %v5833, 8
      %v5940 = vpop.permute.xlu0 %5939
      %5941 = vrot.lane.b32.xlu0 %v5834, 8
      %v5942 = vpop.permute.xlu0 %5941
      %5943 = vrot.lane.b32.xlu0 %v5835, 8
      %v5944 = vpop.permute.xlu0 %5943
      %5945 = vrot.lane.b32.xlu0 %v5836, 8
      %v5946 = vpop.permute.xlu0 %5945
      %5947 = vrot.lane.b32.xlu0 %v5837, 8
      %v5948 = vpop.permute.xlu0 %5947
      %5949 = vrot.lane.b32.xlu0 %v5838, 8
      %v5950 = vpop.permute.xlu0 %5949
      %5951 = vrot.lane.b32.xlu0 %v5839, 8
      %v5952 = vpop.permute.xlu0 %5951
      %5953 = vrot.lane.b32.xlu0 %v5840, 8
      %v5954 = vpop.permute.xlu0 %5953
      %5955 = vrot.lane.b32.xlu0 %v5841, 8
      %v5956 = vpop.permute.xlu0 %5955
      %5957 = vrot.lane.b32.xlu0 %v5842, 8
      %v5958 = vpop.permute.xlu0 %5957
      %5959 = vrot.lane.b32.xlu0 %v5843, 8
      %v5960 = vpop.permute.xlu0 %5959
      %5961 = vrot.lane.b32.xlu0 %v5844, 8
      %v5962 = vpop.permute.xlu0 %5961
      %5963 = vrot.lane.b32.xlu0 %v5845, 8
      %v5964 = vpop.permute.xlu0 %5963
      %5965 = vrot.lane.b32.xlu0 %v5846, 8
      %v5966 = vpop.permute.xlu0 %5965
      %5967 = vrot.lane.b32.xlu0 %v5847, 8
      %v5968 = vpop.permute.xlu0 %5967
      %5969 = vrot.lane.b32.xlu0 %v5848, 8
      %v5970 = vpop.permute.xlu0 %5969
      %5971 = vrot.lane.b32.xlu0 %v5849, 8
      %v5972 = vpop.permute.xlu0 %5971
      %5973 = vrot.lane.b32.xlu0 %v5850, 8
      %v5974 = vpop.permute.xlu0 %5973
      %5975 = vrot.lane.b32.xlu0 %v5851, 8
      %v5976 = vpop.permute.xlu0 %5975
      %5977 = vrot.lane.b32.xlu0 %v5852, 8
      %v5978 = vpop.permute.xlu0 %5977
      %5979 = vrot.lane.b32.xlu0 %v5853, 8
      %v5980 = vpop.permute.xlu0 %5979
      %5981 = vrot.lane.b32.xlu0 %v5854, 8
      %v5982 = vpop.permute.xlu0 %5981
      %6047 = vrot.lane.b32.xlu0 %v5855, 16
      %v6048 = vpop.permute.xlu0 %6047
      %6049 = vrot.lane.b32.xlu0 %v5856, 16
      %v6050 = vpop.permute.xlu0 %6049
      %6051 = vrot.lane.b32.xlu0 %v5857, 16
      %v6052 = vpop.permute.xlu0 %6051
      %6053 = vrot.lane.b32.xlu0 %v5858, 16
      %v6054 = vpop.permute.xlu0 %6053
      %6055 = vrot.lane.b32.xlu0 %v5859, 16
      %v6056 = vpop.permute.xlu0 %6055
      %6057 = vrot.lane.b32.xlu0 %v5860, 16
      %v6058 = vpop.permute.xlu0 %6057
      %6059 = vrot.lane.b32.xlu0 %v5861, 16
      %v6060 = vpop.permute.xlu0 %6059
      %6061 = vrot.lane.b32.xlu0 %v5862, 16
      %v6062 = vpop.permute.xlu0 %6061
      %6063 = vrot.lane.b32.xlu0 %v5863, 16
      %v6064 = vpop.permute.xlu0 %6063
      %6065 = vrot.lane.b32.xlu0 %v5864, 16
      %v6066 = vpop.permute.xlu0 %6065
      %6067 = vrot.lane.b32.xlu0 %v5865, 16
      %v6068 = vpop.permute.xlu0 %6067
      %6069 = vrot.lane.b32.xlu0 %v5866, 16
      %v6070 = vpop.permute.xlu0 %6069
      %6071 = vrot.lane.b32.xlu0 %v5867, 16
      %v6072 = vpop.permute.xlu0 %6071
      %6073 = vrot.lane.b32.xlu0 %v5868, 16
      %v6074 = vpop.permute.xlu0 %6073
      %6075 = vrot.lane.b32.xlu0 %v5869, 16
      %v6076 = vpop.permute.xlu0 %6075
      %6077 = vrot.lane.b32.xlu0 %v5870, 16
      %v6078 = vpop.permute.xlu0 %6077
      %6079 = vrot.lane.b32.xlu0 %v5871, 16
      %v6080 = vpop.permute.xlu0 %6079
      %6081 = vrot.lane.b32.xlu0 %v5872, 16
      %v6082 = vpop.permute.xlu0 %6081
      %6083 = vrot.lane.b32.xlu0 %v5873, 16
      %v6084 = vpop.permute.xlu0 %6083
      %6085 = vrot.lane.b32.xlu0 %v5874, 16
      %v6086 = vpop.permute.xlu0 %6085
      %6087 = vrot.lane.b32.xlu0 %v5875, 16
      %v6088 = vpop.permute.xlu0 %6087
      %6089 = vrot.lane.b32.xlu0 %v5876, 16
      %v6090 = vpop.permute.xlu0 %6089
      %6091 = vrot.lane.b32.xlu0 %v5877, 16
      %v6092 = vpop.permute.xlu0 %6091
      %6093 = vrot.lane.b32.xlu0 %v5878, 16
      %v6094 = vpop.permute.xlu0 %6093
      %6095 = vrot.lane.b32.xlu0 %v5879, 16
      %v6096 = vpop.permute.xlu0 %6095
      %6097 = vrot.lane.b32.xlu0 %v5880, 16
      %v6098 = vpop.permute.xlu0 %6097
      %6099 = vrot.lane.b32.xlu0 %v5881, 16
      %v6100 = vpop.permute.xlu0 %6099
      %6101 = vrot.lane.b32.xlu0 %v5882, 16
      %v6102 = vpop.permute.xlu0 %6101
      %6103 = vrot.lane.b32.xlu0 %v5883, 16
      %v6104 = vpop.permute.xlu0 %6103
      %6105 = vrot.lane.b32.xlu0 %v5884, 16
      %v6106 = vpop.permute.xlu0 %6105
      %6107 = vrot.lane.b32.xlu0 %v5885, 16
      %v6108 = vpop.permute.xlu0 %6107
      %6109 = vrot.lane.b32.xlu0 %v5886, 16
      %v6110 = vpop.permute.xlu0 %6109
      %v6143 = vsel %vm372, %v5791, %v5920
      %v6144 = vsel %vm372, %v5792, %v5922
      %v6145 = vsel %vm372, %v5793, %v5924
      %v6146 = vsel %vm372, %v5794, %v5926
      %v6147 = vsel %vm372, %v5795, %v5928
      %v6148 = vsel %vm372, %v5796, %v5930
      %v6149 = vsel %vm372, %v5797, %v5932
      %v6150 = vsel %vm372, %v5798, %v5934
      %v6151 = vsel %vm372, %v5799, %v5936
      %v6152 = vsel %vm372, %v5800, %v5938
      %v6153 = vsel %vm372, %v5801, %v5940
      %v6154 = vsel %vm372, %v5802, %v5942
      %v6155 = vsel %vm372, %v5803, %v5944
      %v6156 = vsel %vm372, %v5804, %v5946
      %v6157 = vsel %vm372, %v5805, %v5948
      %v6158 = vsel %vm372, %v5806, %v5950
      %v6159 = vsel %vm372, %v5807, %v5952
      %v6160 = vsel %vm372, %v5808, %v5954
      %v6161 = vsel %vm372, %v5809, %v5956
      %v6162 = vsel %vm372, %v5810, %v5958
      %v6163 = vsel %vm372, %v5811, %v5960
      %v6164 = vsel %vm372, %v5812, %v5962
      %v6165 = vsel %vm372, %v5813, %v5964
      %v6166 = vsel %vm372, %v5814, %v5966
      %v6167 = vsel %vm372, %v5815, %v5968
      %v6168 = vsel %vm372, %v5816, %v5970
      %v6169 = vsel %vm372, %v5817, %v5972
      %v6170 = vsel %vm372, %v5818, %v5974
      %v6171 = vsel %vm372, %v5819, %v5976
      %v6172 = vsel %vm372, %v5820, %v5978
      %v6173 = vsel %vm372, %v5821, %v5980
      %v6174 = vsel %vm372, %v5822, %v5982
      %v6175 = vsel %vm326, %v6143, %v6048
      %v6176 = vsel %vm326, %v6144, %v6050
      %v6177 = vsel %vm326, %v6145, %v6052
      %v6178 = vsel %vm326, %v6146, %v6054
      %v6179 = vsel %vm326, %v6147, %v6056
      %v6180 = vsel %vm326, %v6148, %v6058
      %v6181 = vsel %vm326, %v6149, %v6060
      %v6182 = vsel %vm326, %v6150, %v6062
      %v6183 = vsel %vm326, %v6151, %v6064
      %v6184 = vsel %vm326, %v6152, %v6066
      %v6185 = vsel %vm326, %v6153, %v6068
      %v6186 = vsel %vm326, %v6154, %v6070
      %v6187 = vsel %vm326, %v6155, %v6072
      %v6188 = vsel %vm326, %v6156, %v6074
      %v6189 = vsel %vm326, %v6157, %v6076
      %v6190 = vsel %vm326, %v6158, %v6078
      %v6191 = vsel %vm326, %v6159, %v6080
      %v6192 = vsel %vm326, %v6160, %v6082
      %v6193 = vsel %vm326, %v6161, %v6084
      %v6194 = vsel %vm326, %v6162, %v6086
      %v6195 = vsel %vm326, %v6163, %v6088
      %v6196 = vsel %vm326, %v6164, %v6090
      %v6197 = vsel %vm326, %v6165, %v6092
      %v6198 = vsel %vm326, %v6166, %v6094
      %v6199 = vsel %vm326, %v6167, %v6096
      %v6200 = vsel %vm326, %v6168, %v6098
      %v6201 = vsel %vm326, %v6169, %v6100
      %v6202 = vsel %vm326, %v6170, %v6102
      %v6203 = vsel %vm326, %v6171, %v6104
      %v6204 = vsel %vm326, %v6172, %v6106
      %v6205 = vsel %vm326, %v6173, %v6108
      %v6206 = vsel %vm326, %v6174, %v6110
      %s6207 = scalar_lea.vmem %s6, 48
      %v6208 = vld [vmem:[%s6207] sm:$0xff]
      %v6209 = vld [vmem:[%s6207 + $0x8] sm:$0xff]
      %v6210 = vld [vmem:[%s6207 + $0x10] sm:$0xff]
      %v6212 = vsel %vm5147, %v6175, 0
      %v6215 = vsel %vm5147, %v6176, 0
      %v6218 = vsel %vm5147, %v6177, 0
      %v6221 = vsel %vm5147, %v6178, 0
      %v6224 = vsel %vm5147, %v6179, 0
      %v6227 = vsel %vm5147, %v6180, 0
      %v6230 = vsel %vm5147, %v6181, 0
      %v6233 = vsel %vm5147, %v6182, 0
      %v6236 = vsel %vm5147, %v6183, 0
      %v6239 = vsel %vm5147, %v6184, 0
      %v6242 = vsel %vm5147, %v6185, 0
      %v6245 = vsel %vm5147, %v6186, 0
      %v6248 = vsel %vm5147, %v6187, 0
      %v6251 = vsel %vm5147, %v6188, 0
      %v6254 = vsel %vm5147, %v6189, 0
      %v6257 = vsel %vm5147, %v6190, 0
      %v6260 = vsel %vm5147, %v6191, 0
      %v6263 = vsel %vm5147, %v6192, 0
      %v6266 = vsel %vm5147, %v6193, 0
      %v6269 = vsel %vm5147, %v6194, 0
      %v6272 = vsel %vm5147, %v6195, 0
      %v6275 = vsel %vm5147, %v6196, 0
      %v6278 = vsel %vm5147, %v6197, 0
      %v6281 = vsel %vm5147, %v6198, 0
      %v6284 = vsel %vm5147, %v6199, 0
      %v6287 = vsel %vm5147, %v6200, 0
      %v6290 = vsel %vm5147, %v6201, 0
      %v6293 = vsel %vm5147, %v6202, 0
      %v6296 = vsel %vm5147, %v6203, 0
      %v6299 = vsel %vm5147, %v6204, 0
      %v6302 = vsel %vm5147, %v6205, 0
      %v6305 = vsel %vm5147, %v6206, 0
      %6307 = vmatprep.subr.mxu0 0.0
      %6308 = vmatpush1.msra.mxu0 0.0
      %6309 = vmatprep.subr.mxu0 0.0
      %6310 = vmatpush1.msra.mxu0 0.0
      %6311 = vmatprep.subr.mxu0 0.0
      %6312 = vmatpush1.msra.mxu0 0.0
      %6313 = vmatprep.subr.mxu0 0.0
      %6314 = vmatpush1.msra.mxu0 0.0
      %6315 = vmatprep.subr.mxu0 0.0
      %6316 = vmatpush1.msra.mxu0 0.0
      %6317 = vmatprep.subr.mxu0 0.0
      %6318 = vmatpush1.msra.mxu0 0.0
      %6319 = vmatprep.subr.mxu0 0.0
      %6320 = vmatpush1.msra.mxu0 0.0
      %6321 = vmatprep.subr.mxu0 0.0
      %6322 = vmatpush1.msra.mxu0 0.0
      %6323 = vmatprep.subr.mxu0 0.0
      %6324 = vmatpush1.msra.mxu0 0.0
      %6325 = vmatprep.subr.mxu0 0.0
      %6326 = vmatpush1.msra.mxu0 0.0
      %6327 = vmatprep.subr.mxu0 0.0
      %6328 = vmatpush1.msra.mxu0 0.0
      %6329 = vmatprep.subr.mxu0 0.0
      %6330 = vmatpush1.msra.mxu0 0.0
      %6331 = vmatprep.subr.mxu0 0.0
      %6332 = vmatpush1.msra.mxu0 0.0
      %6333 = vmatprep.subr.mxu0 0.0
      %6334 = vmatpush1.msra.mxu0 %v6210
      %6335 = vmatprep.subr.mxu0 0.0
      %6336 = vmatpush1.msra.mxu0 %v6209
      %6337 = vmatprep.subr.mxu0 0.0
      %6338 = vmatpush1.msra.mxu0 %v6208
      %6339 = vmatprep.subr.mxu0 0.0
      %6340 = vmatpush2.msra.mxu0 0.0
      %6341 = vmatprep.subr.mxu0 0.0
      %6342 = vmatpush2.msra.mxu0 0.0
      %6343 = vmatprep.subr.mxu0 0.0
      %6344 = vmatpush2.msra.mxu0 0.0
      %6345 = vmatprep.subr.mxu0 0.0
      %6346 = vmatpush2.msra.mxu0 0.0
      %6347 = vmatprep.subr.mxu0 0.0
      %6348 = vmatpush2.msra.mxu0 0.0
      %6349 = vmatprep.subr.mxu0 0.0
      %6350 = vmatpush2.msra.mxu0 0.0
      %6351 = vmatprep.subr.mxu0 0.0
      %6352 = vmatpush2.msra.mxu0 0.0
      %6353 = vmatprep.subr.mxu0 0.0
      %6354 = vmatpush2.msra.mxu0 0.0
      %6355 = vmatprep.subr.mxu0 0.0
      %6356 = vmatpush2.msra.mxu0 0.0
      %6357 = vmatprep.subr.mxu0 0.0
      %6358 = vmatpush2.msra.mxu0 0.0
      %6359 = vmatprep.subr.mxu0 0.0
      %6360 = vmatpush2.msra.mxu0 0.0
      %6361 = vmatprep.subr.mxu0 0.0
      %6362 = vmatpush2.msra.mxu0 0.0
      %6363 = vmatprep.subr.mxu0 0.0
      %6364 = vmatpush2.msra.mxu0 0.0
      %6365 = vmatprep.subr.mxu0 0.0
      %6366 = vmatpush2.msra.mxu0 0.0
      %6367 = vmatprep.subr.mxu0 0.0
      %6368 = vmatpush2.msra.mxu0 0.0
      %6369 = vmatprep.subr.mxu0 0.0
      %6370 = vmatpush2.msra.mxu0 0.0
      %6371 = vmatprep.mubr.f32.mxu0 0.0
      %6372 = vmatmul.mubr.f32.gmra.mxu0 %v6212
      %v6373 = vpop.f32.mrf.mxu0
      %v6374 = vadd.f32 0.0, %v6373
      %v6375 = vpop.f32.mrf.mxu0
      %6376 = vmatprep.mubr.f32.mxu0 0.0
      %6377 = vmatmul.mubr.f32.gmra.mxu0 %v6215
      %v6378 = vpop.f32.mrf.mxu0
      %v6379 = vadd.f32 0.0, %v6378
      %v6380 = vpop.f32.mrf.mxu0
      %6381 = vmatprep.mubr.f32.mxu0 0.0
      %6382 = vmatmul.mubr.f32.gmra.mxu0 %v6218
      %v6383 = vpop.f32.mrf.mxu0
      %v6384 = vadd.f32 0.0, %v6383
      %v6385 = vpop.f32.mrf.mxu0
      %6386 = vmatprep.mubr.f32.mxu0 0.0
      %6387 = vmatmul.mubr.f32.gmra.mxu0 %v6221
      %v6388 = vpop.f32.mrf.mxu0
      %v6389 = vadd.f32 0.0, %v6388
      %v6390 = vpop.f32.mrf.mxu0
      %6391 = vmatprep.mubr.f32.mxu0 0.0
      %6392 = vmatmul.mubr.f32.gmra.mxu0 %v6224
      %v6393 = vpop.f32.mrf.mxu0
      %v6394 = vadd.f32 0.0, %v6393
      %v6395 = vpop.f32.mrf.mxu0
      %6396 = vmatprep.mubr.f32.mxu0 0.0
      %6397 = vmatmul.mubr.f32.gmra.mxu0 %v6227
      %v6398 = vpop.f32.mrf.mxu0
      %v6399 = vadd.f32 0.0, %v6398
      %v6400 = vpop.f32.mrf.mxu0
      %6401 = vmatprep.mubr.f32.mxu0 0.0
      %6402 = vmatmul.mubr.f32.gmra.mxu0 %v6230
      %v6403 = vpop.f32.mrf.mxu0
      %v6404 = vadd.f32 0.0, %v6403
      %v6405 = vpop.f32.mrf.mxu0
      %6406 = vmatprep.mubr.f32.mxu0 0.0
      %6407 = vmatmul.mubr.f32.gmra.mxu0 %v6233
      %v6408 = vpop.f32.mrf.mxu0
      %v6409 = vadd.f32 0.0, %v6408
      %v6410 = vpop.f32.mrf.mxu0
      %6411 = vmatprep.mubr.f32.mxu0 0.0
      %6412 = vmatmul.mubr.f32.gmra.mxu0 %v6236
      %v6413 = vpop.f32.mrf.mxu0
      %v6414 = vadd.f32 0.0, %v6413
      %v6415 = vpop.f32.mrf.mxu0
      %6416 = vmatprep.mubr.f32.mxu0 0.0
      %6417 = vmatmul.mubr.f32.gmra.mxu0 %v6239
      %v6418 = vpop.f32.mrf.mxu0
      %v6419 = vadd.f32 0.0, %v6418
      %v6420 = vpop.f32.mrf.mxu0
      %6421 = vmatprep.mubr.f32.mxu0 0.0
      %6422 = vmatmul.mubr.f32.gmra.mxu0 %v6242
      %v6423 = vpop.f32.mrf.mxu0
      %v6424 = vadd.f32 0.0, %v6423
      %v6425 = vpop.f32.mrf.mxu0
      %6426 = vmatprep.mubr.f32.mxu0 0.0
      %6427 = vmatmul.mubr.f32.gmra.mxu0 %v6245
      %v6428 = vpop.f32.mrf.mxu0
      %v6429 = vadd.f32 0.0, %v6428
      %v6430 = vpop.f32.mrf.mxu0
      %6431 = vmatprep.mubr.f32.mxu0 0.0
      %6432 = vmatmul.mubr.f32.gmra.mxu0 %v6248
      %v6433 = vpop.f32.mrf.mxu0
      %v6434 = vadd.f32 0.0, %v6433
      %v6435 = vpop.f32.mrf.mxu0
      %6436 = vmatprep.mubr.f32.mxu0 0.0
      %6437 = vmatmul.mubr.f32.gmra.mxu0 %v6251
      %v6438 = vpop.f32.mrf.mxu0
      %v6439 = vadd.f32 0.0, %v6438
      %v6440 = vpop.f32.mrf.mxu0
      %6441 = vmatprep.mubr.f32.mxu0 0.0
      %6442 = vmatmul.mubr.f32.gmra.mxu0 %v6254
      %v6443 = vpop.f32.mrf.mxu0
      %v6444 = vadd.f32 0.0, %v6443
      %v6445 = vpop.f32.mrf.mxu0
      %6446 = vmatprep.mubr.f32.mxu0 0.0
      %6447 = vmatmul.mubr.f32.gmra.mxu0 %v6257
      %v6448 = vpop.f32.mrf.mxu0
      %v6449 = vadd.f32 0.0, %v6448
      %v6450 = vpop.f32.mrf.mxu0
      %6451 = vmatprep.mubr.f32.mxu0 0.0
      %6452 = vmatmul.mubr.f32.gmra.mxu0 %v6260
      %v6453 = vpop.f32.mrf.mxu0
      %v6454 = vadd.f32 0.0, %v6453
      %v6455 = vpop.f32.mrf.mxu0
      %6456 = vmatprep.mubr.f32.mxu0 0.0
      %6457 = vmatmul.mubr.f32.gmra.mxu0 %v6263
      %v6458 = vpop.f32.mrf.mxu0
      %v6459 = vadd.f32 0.0, %v6458
      %v6460 = vpop.f32.mrf.mxu0
      %6461 = vmatprep.mubr.f32.mxu0 0.0
      %6462 = vmatmul.mubr.f32.gmra.mxu0 %v6266
      %v6463 = vpop.f32.mrf.mxu0
      %v6464 = vadd.f32 0.0, %v6463
      %v6465 = vpop.f32.mrf.mxu0
      %6466 = vmatprep.mubr.f32.mxu0 0.0
      %6467 = vmatmul.mubr.f32.gmra.mxu0 %v6269
      %v6468 = vpop.f32.mrf.mxu0
      %v6469 = vadd.f32 0.0, %v6468
      %v6470 = vpop.f32.mrf.mxu0
      %6471 = vmatprep.mubr.f32.mxu0 0.0
      %6472 = vmatmul.mubr.f32.gmra.mxu0 %v6272
      %v6473 = vpop.f32.mrf.mxu0
      %v6474 = vadd.f32 0.0, %v6473
      %v6475 = vpop.f32.mrf.mxu0
      %6476 = vmatprep.mubr.f32.mxu0 0.0
      %6477 = vmatmul.mubr.f32.gmra.mxu0 %v6275
      %v6478 = vpop.f32.mrf.mxu0
      %v6479 = vadd.f32 0.0, %v6478
      %v6480 = vpop.f32.mrf.mxu0
      %6481 = vmatprep.mubr.f32.mxu0 0.0
      %6482 = vmatmul.mubr.f32.gmra.mxu0 %v6278
      %v6483 = vpop.f32.mrf.mxu0
      %v6484 = vadd.f32 0.0, %v6483
      %v6485 = vpop.f32.mrf.mxu0
      %6486 = vmatprep.mubr.f32.mxu0 0.0
      %6487 = vmatmul.mubr.f32.gmra.mxu0 %v6281
      %v6488 = vpop.f32.mrf.mxu0
      %v6489 = vadd.f32 0.0, %v6488
      %v6490 = vpop.f32.mrf.mxu0
      %6491 = vmatprep.mubr.f32.mxu0 0.0
      %6492 = vmatmul.mubr.f32.gmra.mxu0 %v6284
      %v6493 = vpop.f32.mrf.mxu0
      %v6494 = vadd.f32 0.0, %v6493
      %v6495 = vpop.f32.mrf.mxu0
      %6496 = vmatprep.mubr.f32.mxu0 0.0
      %6497 = vmatmul.mubr.f32.gmra.mxu0 %v6287
      %v6498 = vpop.f32.mrf.mxu0
      %v6499 = vadd.f32 0.0, %v6498
      %v6500 = vpop.f32.mrf.mxu0
      %6501 = vmatprep.mubr.f32.mxu0 0.0
      %6502 = vmatmul.mubr.f32.gmra.mxu0 %v6290
      %v6503 = vpop.f32.mrf.mxu0
      %v6504 = vadd.f32 0.0, %v6503
      %v6505 = vpop.f32.mrf.mxu0
      %6506 = vmatprep.mubr.f32.mxu0 0.0
      %6507 = vmatmul.mubr.f32.gmra.mxu0 %v6293
      %v6508 = vpop.f32.mrf.mxu0
      %v6509 = vadd.f32 0.0, %v6508
      %v6510 = vpop.f32.mrf.mxu0
      %6511 = vmatprep.mubr.f32.mxu0 0.0
      %6512 = vmatmul.mubr.f32.gmra.mxu0 %v6296
      %v6513 = vpop.f32.mrf.mxu0
      %v6514 = vadd.f32 0.0, %v6513
      %v6515 = vpop.f32.mrf.mxu0
      %6516 = vmatprep.mubr.f32.mxu0 0.0
      %6517 = vmatmul.mubr.f32.gmra.mxu0 %v6299
      %v6518 = vpop.f32.mrf.mxu0
      %v6519 = vadd.f32 0.0, %v6518
      %v6520 = vpop.f32.mrf.mxu0
      %6521 = vmatprep.mubr.f32.mxu0 0.0
      %6522 = vmatmul.mubr.f32.gmra.mxu0 %v6302
      %v6523 = vpop.f32.mrf.mxu0
      %v6524 = vadd.f32 0.0, %v6523
      %v6525 = vpop.f32.mrf.mxu0
      %6526 = vmatprep.mubr.f32.mxu0 0.0
      %6527 = vmatmul.mubr.f32.gmra.mxu0 %v6305
      %v6528 = vpop.f32.mrf.mxu0
      %v6529 = vadd.f32 0.0, %v6528
      %v6530 = vpop.f32.mrf.mxu0
      %6531 = vdwg.mxu0
      %v6532 = vadd.f32 %v5632, %v6374
      %v6533 = vadd.f32 %v5637, %v6379
      %v6534 = vadd.f32 %v5642, %v6384
      %v6535 = vadd.f32 %v5647, %v6389
      %v6536 = vadd.f32 %v5652, %v6394
      %v6537 = vadd.f32 %v5657, %v6399
      %v6538 = vadd.f32 %v5662, %v6404
      %v6539 = vadd.f32 %v5667, %v6409
      %v6540 = vadd.f32 %v5672, %v6414
      %v6541 = vadd.f32 %v5677, %v6419
      %v6542 = vadd.f32 %v5682, %v6424
      %v6543 = vadd.f32 %v5687, %v6429
      %v6544 = vadd.f32 %v5692, %v6434
      %v6545 = vadd.f32 %v5697, %v6439
      %v6546 = vadd.f32 %v5702, %v6444
      %v6547 = vadd.f32 %v5707, %v6449
      %v6548 = vadd.f32 %v5712, %v6454
      %v6549 = vadd.f32 %v5717, %v6459
      %v6550 = vadd.f32 %v5722, %v6464
      %v6551 = vadd.f32 %v5727, %v6469
      %v6552 = vadd.f32 %v5732, %v6474
      %v6553 = vadd.f32 %v5737, %v6479
      %v6554 = vadd.f32 %v5742, %v6484
      %v6555 = vadd.f32 %v5747, %v6489
      %v6556 = vadd.f32 %v5752, %v6494
      %v6557 = vadd.f32 %v5757, %v6499
      %v6558 = vadd.f32 %v5762, %v6504
      %v6559 = vadd.f32 %v5767, %v6509
      %v6560 = vadd.f32 %v5772, %v6514
      %v6561 = vadd.f32 %v5777, %v6519
      %v6562 = vadd.f32 %v5782, %v6524
      %v6563 = vadd.f32 %v5787, %v6529
      %v6564 = vld [vmem:[%s7] sm:$0x1]
      %v6566 = vlaneseq
      %v6567 = vshrl.u32 %v6566, 7
      %v6568 = vsub.s32 0, %v6567
      %v6569 = vrot.slane %v6564, %v6568
      %v6571 = vadd.f32 %v6532, %v6569
      %v6572 = vadd.f32 %v6533, %v6569
      %v6573 = vadd.f32 %v6534, %v6569
      %v6574 = vadd.f32 %v6535, %v6569
      %v6575 = vadd.f32 %v6536, %v6569
      %v6576 = vadd.f32 %v6537, %v6569
      %v6577 = vadd.f32 %v6538, %v6569
      %v6578 = vadd.f32 %v6539, %v6569
      %v6579 = vadd.f32 %v6540, %v6569
      %v6580 = vadd.f32 %v6541, %v6569
      %v6581 = vadd.f32 %v6542, %v6569
      %v6582 = vadd.f32 %v6543, %v6569
      %v6583 = vadd.f32 %v6544, %v6569
      %v6584 = vadd.f32 %v6545, %v6569
      %v6585 = vadd.f32 %v6546, %v6569
      %v6586 = vadd.f32 %v6547, %v6569
      %v6587 = vadd.f32 %v6548, %v6569
      %v6588 = vadd.f32 %v6549, %v6569
      %v6589 = vadd.f32 %v6550, %v6569
      %v6590 = vadd.f32 %v6551, %v6569
      %v6591 = vadd.f32 %v6552, %v6569
      %v6592 = vadd.f32 %v6553, %v6569
      %v6593 = vadd.f32 %v6554, %v6569
      %v6594 = vadd.f32 %v6555, %v6569
      %v6595 = vadd.f32 %v6556, %v6569
      %v6596 = vadd.f32 %v6557, %v6569
      %v6597 = vadd.f32 %v6558, %v6569
      %v6598 = vadd.f32 %v6559, %v6569
      %v6599 = vadd.f32 %v6560, %v6569
      %v6600 = vadd.f32 %v6561, %v6569
      %v6601 = vadd.f32 %v6562, %v6569
      %v6602 = vadd.f32 %v6563, %v6569
      %v6603 = vmax.f32 %v6571, 0.0
      %v6604 = vmax.f32 %v6572, 0.0
      %v6605 = vmax.f32 %v6573, 0.0
      %v6606 = vmax.f32 %v6574, 0.0
      %v6607 = vmax.f32 %v6575, 0.0
      %v6608 = vmax.f32 %v6576, 0.0
      %v6609 = vmax.f32 %v6577, 0.0
      %v6610 = vmax.f32 %v6578, 0.0
      %v6611 = vmax.f32 %v6579, 0.0
      %v6612 = vmax.f32 %v6580, 0.0
      %v6613 = vmax.f32 %v6581, 0.0
      %v6614 = vmax.f32 %v6582, 0.0
      %v6615 = vmax.f32 %v6583, 0.0
      %v6616 = vmax.f32 %v6584, 0.0
      %v6617 = vmax.f32 %v6585, 0.0
      %v6618 = vmax.f32 %v6586, 0.0
      %v6619 = vmax.f32 %v6587, 0.0
      %v6620 = vmax.f32 %v6588, 0.0
      %v6621 = vmax.f32 %v6589, 0.0
      %v6622 = vmax.f32 %v6590, 0.0
      %v6623 = vmax.f32 %v6591, 0.0
      %v6624 = vmax.f32 %v6592, 0.0
      %v6625 = vmax.f32 %v6593, 0.0
      %v6626 = vmax.f32 %v6594, 0.0
      %v6627 = vmax.f32 %v6595, 0.0
      %v6628 = vmax.f32 %v6596, 0.0
      %v6629 = vmax.f32 %v6597, 0.0
      %v6630 = vmax.f32 %v6598, 0.0
      %v6631 = vmax.f32 %v6599, 0.0
      %v6632 = vmax.f32 %v6600, 0.0
      %v6633 = vmax.f32 %v6601, 0.0
      %v6634 = vmax.f32 %v6602, 0.0
      %6635 = vst.msk [vmem:[%s325] sm:$0xff] %vm372, %v6603
      %6636 = vst.msk [vmem:[%s325 + $0x8] sm:$0xff] %vm372, %v6604
      %6637 = vst.msk [vmem:[%s325 + $0x10] sm:$0xff] %vm372, %v6605
      %6638 = vst.msk [vmem:[%s325 + $0x18] sm:$0xff] %vm372, %v6606
      %6639 = vst.msk [vmem:[%s325 + $0x20] sm:$0xff] %vm372, %v6607
      %6640 = vst.msk [vmem:[%s325 + $0x28] sm:$0xff] %vm372, %v6608
      %6641 = vst.msk [vmem:[%s325 + $0x30] sm:$0xff] %vm372, %v6609
      %6642 = vst.msk [vmem:[%s325 + $0x38] sm:$0xff] %vm372, %v6610
      %6643 = vst.msk [vmem:[%s325 + $0x40] sm:$0xff] %vm372, %v6611
      %6644 = vst.msk [vmem:[%s325 + $0x48] sm:$0xff] %vm372, %v6612
      %6645 = vst.msk [vmem:[%s325 + $0x50] sm:$0xff] %vm372, %v6613
      %6646 = vst.msk [vmem:[%s325 + $0x58] sm:$0xff] %vm372, %v6614
      %6647 = vst.msk [vmem:[%s325 + $0x60] sm:$0xff] %vm372, %v6615
      %6648 = vst.msk [vmem:[%s325 + $0x68] sm:$0xff] %vm372, %v6616
      %6649 = vst.msk [vmem:[%s325 + $0x70] sm:$0xff] %vm372, %v6617
      %6650 = vst.msk [vmem:[%s325 + $0x78] sm:$0xff] %vm372, %v6618
      %6651 = vst.msk [vmem:[%s325 + $0x80] sm:$0xff] %vm372, %v6619
      %6652 = vst.msk [vmem:[%s325 + $0x88] sm:$0xff] %vm372, %v6620
      %6653 = vst.msk [vmem:[%s325 + $0x90] sm:$0xff] %vm372, %v6621
      %6654 = vst.msk [vmem:[%s325 + $0x98] sm:$0xff] %vm372, %v6622
      %6655 = vst.msk [vmem:[%s325 + $0xa0] sm:$0xff] %vm372, %v6623
      %6656 = vst.msk [vmem:[%s325 + $0xa8] sm:$0xff] %vm372, %v6624
      %6657 = vst.msk [vmem:[%s325 + $0xb0] sm:$0xff] %vm372, %v6625
      %6658 = vst.msk [vmem:[%s325 + $0xb8] sm:$0xff] %vm372, %v6626
      %6659 = vst.msk [vmem:[%s325 + $0xc0] sm:$0xff] %vm372, %v6627
      %6660 = vst.msk [vmem:[%s325 + $0xc8] sm:$0xff] %vm372, %v6628
      %6661 = vst.msk [vmem:[%s325 + $0xd0] sm:$0xff] %vm372, %v6629
      %6662 = vst.msk [vmem:[%s325 + $0xd8] sm:$0xff] %vm372, %v6630
      %6663 = vst.msk [vmem:[%s325 + $0xe0] sm:$0xff] %vm372, %v6631
      %6664 = vst.msk [vmem:[%s325 + $0xe8] sm:$0xff] %vm372, %v6632
      %6665 = vst.msk [vmem:[%s325 + $0xf0] sm:$0xff] %vm372, %v6633
      %6666 = vst.msk [vmem:[%s325 + $0xf8] sm:$0xff] %vm372, %v6634
      %p6667 = scmp.lt.s32.totalorder %s19, 1
      %s6668 = scalar_select %p6667, %s19, 1
      %s6669 = smul.addr %s6668, 32
      %s6670 = smul.addr %s6669, 8
      %s6671 = scalar_lea.vmem %s8, %s6670
      // Predicated region
      $region53: #{tpu_custom_call.1} parent=51 // pred_check
        %p6672 = pneg %p215
      $region54: #{tpu_custom_call.1} parent=51 // pred_check_branch
        %6674 = sbr.rel (%p6672) target = $region56
      $region55: #{tpu_custom_call.1} parent=51 // pred_region
        _
      $region56: #{tpu_custom_call.1} parent=51 // pred_fallthru
        _
    $region52: #{tpu_custom_call.1} parent=5 // pred_fallthru
      _
    %p6675 = scmp.le.s32.totalorder 2, %s14
    // Predicated region
    $region57: #{tpu_custom_call.1} parent=5 // pred_check
      %p6676 = pneg %p6675
    $region58: #{tpu_custom_call.1} parent=5 // pred_check_branch
      %6678 = sbr.rel (%p6676) target = $region60
    $region59: #{tpu_custom_call.1} parent=5 // pred_region
      %s6679 = ssub.s32 %s14, 2
      // Predicated region
      $region61: #{tpu_custom_call.1} parent=59 // pred_check
        %p6680 = pneg %p221
      $region62: #{tpu_custom_call.1} parent=59 // pred_check_branch
        %6682 = sbr.rel (%p6680) target = $region64
      $region63: #{tpu_custom_call.1} parent=59 // pred_region
        %p6683 = scmp.lt.s32.totalorder %s20, 1
        %s6684 = scalar_select %p6683, %s20, 1
        %s6685 = smul.addr %s6684, 32
        %s6686 = smul.addr %s6685, 8
        %s6687 = scalar_lea.vmem %s8, %s6686
      $region64: #{tpu_custom_call.1} parent=59 // pred_fallthru
        _
    $region60: #{tpu_custom_call.1} parent=5 // pred_fallthru
      _
  $region6: #{tpu_custom_call.1} parent=0 // loop_footer
    %s18 = sadd.s32 1, %s14
  $region7: #{tpu_custom_call.1} parent=0 // loop_footer_branch
    %13 = sbr.rel target = $region3
  $region8: #{tpu_custom_call.1} parent=0 // loop_exit
    _

</llo_original>
